<compile_context>
chip_gen: v5e
topology: v5e:2x2
jax: 0.10.0
libtpu: 0.0.40
codegen_flags: <defaults>
</compile_context>

<pallas_src>
import jax
import jax.numpy as jnp
from jax import lax
from jax.experimental import pallas as pl
from jax.experimental.pallas import tpu as pltpu

# ------------------------- config (stands in for `args`) -------------------------
NUM_NODES    = 16    # args.num_nodes
HIDDEN_SIZE  = 32    # args.hidden_size (node_dim / embed_dim / temp dims)
LAG          = 8     # args.lag  (input_len)
HORIZON      = 4     # args.horizon (output_len)
D_MODEL      = 8     # args.d_model
D_MODEL_SPAT = 32    # args.d_model_spat
D_MODEL_TEMP = 32    # args.d_model_temp
INPUT_DIM    = 3
NUM_LAYER    = 3
ONLY_SPAT    = False
NUM_EMBED    = 1 if ONLY_SPAT else 2
HIDDEN_DIM   = HIDDEN_SIZE * NUM_EMBED + HIDDEN_SIZE * 3   # = 160
W_START_OUT  = D_MODEL_SPAT + HIDDEN_SIZE                  # composed start_fc slab width

VMEM_SPEC = pl.BlockSpec(memory_space=pltpu.MemorySpace.VMEM)


# ------------------------------- in-kernel helpers --------------------------------
def _gat_layer(x, maskf, w_ext, rowvec):
    """Single GAT head over a dense 0/1 (block-diagonal) mask.

    w_ext  = [W | W @ a_dst] (D, D+1): one MXU push yields both h and the per-row score.
    rowvec = [a_src ; bias]  (2, D).
    Masked entries get exactly zero weight, so batching graphs block-diagonally is exact.
    """
    d = w_ext.shape[1] - 1
    h_ext = jnp.dot(x, w_ext, preferred_element_type=jnp.float32)       # (M, D+1)
    h = h_ext[:, :d]                                                    # (M, D)
    sd = h_ext[:, d:]                                                   # (M, 1) target score
    ss = lax.dot_general(rowvec[0:1, :], h, (((1,), (1,)), ((), ())),
                         preferred_element_type=jnp.float32)            # (1, M) source score
    e = sd + ss                                                         # e[i, j]
    e = jnp.where(e > 0, e, 0.2 * e)                                    # LeakyReLU(0.2)
    e = e - jnp.max(e, axis=-1, keepdims=True)                          # stable (row has self-loop)
    p = jnp.exp(e) * maskf                                              # exact zero on masked edges
    denom = jnp.maximum(jnp.sum(p, axis=-1, keepdims=True), 1e-20)      # NaN guard
    alpha = p * pl.reciprocal(denom, approx=True)                       # EUP reciprocal
    return jnp.dot(alpha, h, preferred_element_type=jnp.float32) + rowvec[1:2, :]


def _gat2(x, maskf, gat_w, gat_r):
    """2-layer GAT (stand-in for GATIB eval path) with ELU between layers."""
    g = _gat_layer(x, maskf, gat_w[0], gat_r[0])
    g = jnp.where(g > 0, g, jnp.exp(jnp.minimum(g, 0.0)) - 1.0)         # ELU
    return _gat_layer(g, maskf, gat_w[1], gat_r[1])


# ------------------------------ the fused kernel -----------------------------------
def _stgib_kernel(x_ref, adjs_ref, adjt_ref, emb_ref,
                  w_start_ref, gatw_s_ref, gatr_s_ref, w_isT_ref,
                  w_tt_ref, gatw_t_ref, gatr_t_ref, w_itT_ref, w_ts_ref,
                  brow_ref, bcol_ref, enc_w_ref, enc_b_ref,
                  wreg_ref, breg_ref, out_ref):
    """Whole STGIB forward.

    x_ref   : (B*N, L*INPUT_DIM)  raw input, node-major rows
    adjs_ref: (B*N, B*N)          block-diagonal 0/1 spatial mask
    adjt_ref: (B*L, B*L)          block-diagonal 0/1 temporal mask
    emb_ref : (B*N, 96)           [node_emb | T_i_D_emb | D_i_W_emb]
    out_ref : (HORIZON, B*N)      prediction, lane-dense orientation
    """
    B = x_ref.shape[0] // NUM_NODES

    brow = brow_ref[...]                                                # (1, 128)
    b_start = brow[:, :W_START_OUT]
    b_tt = brow[:, W_START_OUT:W_START_OUT + D_MODEL_TEMP]
    b_ts = brow[:, W_START_OUT + D_MODEL_TEMP:]
    bcol = bcol_ref[...]                                                # (192, 1)
    b_is = bcol[:D_MODEL * LAG, :]                                      # (64, 1)
    b_it = bcol[D_MODEL * LAG:, :]                                      # (128, 1)

    # ---- composed start_fc -> {TransSpat | time_series_emb(residual)} in ONE matmul
    start = (jnp.dot(x_ref[...], w_start_ref[...], preferred_element_type=jnp.float32)
             + b_start)                                                 # (B*N, 64)
    spa_in = start[:, :D_MODEL_SPAT]
    ts_res = start[:, D_MODEL_SPAT:]

    # ---- spatial GIB (2-layer GAT, block-diagonal over batch) --------------------
    gib_s = _gat2(spa_in, adjs_ref[...], gatw_s_ref[...], gatr_s_ref[...])

    # InverseTransSpat emitted directly TRANSPOSED: rows (d, l) d-major, cols (b, n)
    spa_T = lax.dot_general(w_isT_ref[...], gib_s, (((1,), (1,)), ((), ())),
                            preferred_element_type=jnp.float32) + b_is  # (D*L, B*N)

    # node-major -> time-major reshuffle: static slices + concats (stays in vregs)
    rows = []
    for b in range(B):
        rows.append(jnp.concatenate(
            [spa_T[d * LAG:(d + 1) * LAG, b * NUM_NODES:(b + 1) * NUM_NODES]
             for d in range(D_MODEL)], axis=1))                         # (L, D*N)
    temp_pre = jnp.concatenate(rows, axis=0)                            # (B*L, D*N) lane-dense

    # TransTemp
    temp_in = (jnp.dot(temp_pre, w_tt_ref[...], preferred_element_type=jnp.float32)
               + b_tt)                                                  # (B*L, Dtemp)

    # ---- temporal GIB -------------------------------------------------------------
    gib_t = _gat2(temp_in, adjt_ref[...], gatw_t_ref[...], gatr_t_ref[...])

    # InverseTransTemp emitted TRANSPOSED: rows (d, n) d-major, cols (b, l)
    z_T = lax.dot_general(w_itT_ref[...], gib_t, (((1,), (1,)), ((), ())),
                          preferred_element_type=jnp.float32) + b_it    # (D*N, B*L)

    # time-major -> node-major reshuffle + time_series_emb (temporal branch), batched
    blocks = []
    for b in range(B):
        blocks.append(jnp.concatenate(
            [z_T[d * NUM_NODES:(d + 1) * NUM_NODES, b * LAG:(b + 1) * LAG]
             for d in range(D_MODEL)], axis=1))                         # (N, D*L)
    big_all = jnp.concatenate(blocks, axis=0)                           # (B*N, D*L)
    ts_temp = (jnp.dot(big_all, w_ts_ref[...], preferred_element_type=jnp.float32)
               + b_ts)                                                  # (B*N, embed)

    # ---- hidden with HIDDEN_DIM on the lane axis ----------------------------------
    # concat order matches torch.cat: [ts_res, ts_temp, node_emb, tid_emb, diw_emb]
    hid = jnp.concatenate([ts_res, ts_temp, emb_ref[...]], axis=-1)     # (B*N, 160)

    # encoder: NUM_LAYER x MLP_res, single matmuls over all B graphs
    enc_w = enc_w_ref[...]
    enc_b = enc_b_ref[...]
    for i in range(NUM_LAYER):
        h = jnp.maximum(
            jnp.dot(hid, enc_w[i, :HIDDEN_DIM, :], preferred_element_type=jnp.float32)
            + enc_b[i, 0], 0.0)
        hid = (hid
               + jnp.dot(h, enc_w[i, HIDDEN_DIM:, :], preferred_element_type=jnp.float32)
               + enc_b[i, 1])

    # regression 1x1 conv, emitted lane-dense as (HORIZON, B*N)
    out_ref[...] = (lax.dot_general(wreg_ref[...], hid, (((1,), (1,)), ((), ())),
                                    preferred_element_type=jnp.float32)
                    + breg_ref[...])


# ------------------------------ parameter init ------------------------------------
def _xavier_uniform(key, shape):
    bound = (6.0 / (shape[0] + shape[1])) ** 0.5
    return jax.random.uniform(key, shape, jnp.float32, -bound, bound)


def _linear_init(key, fan_in, fan_out):
    k1, k2 = jax.random.split(key)
    bound = 1.0 / (fan_in ** 0.5)
    w = jax.random.uniform(k1, (fan_in, fan_out), jnp.float32, -bound, bound)
    b = jax.random.uniform(k2, (fan_out,), jnp.float32, -bound, bound)
    return w, b


def _gat_layer_init(key, d):
    kw, ka = jax.random.split(key)
    w = _xavier_uniform(kw, (d, d))
    a = jax.random.uniform(ka, (2, d), jnp.float32, -0.1, 0.1)
    return (w, a[0:1], a[1:2], jnp.zeros((1, d), jnp.float32))          # w, a_src, a_dst, bias


def init_params(key):
    """PyTorch-style parameterization (same structure as the reference module)."""
    keys = jax.random.split(key, 24)
    p = {}
    p["node_emb"] = _xavier_uniform(keys[0], (NUM_NODES, HIDDEN_SIZE))
    p["tid_emb"] = _xavier_uniform(keys[1], (288, HIDDEN_SIZE))
    p["diw_emb"] = _xavier_uniform(keys[2], (7, HIDDEN_SIZE))
    p["start_fc"] = _linear_init(keys[3], INPUT_DIM, D_MODEL)
    p["ts_emb"] = _linear_init(keys[4], D_MODEL * LAG, HIDDEN_SIZE)      # 1x1 conv
    p["trans_spat"] = _linear_init(keys[5], D_MODEL * LAG, D_MODEL_SPAT)
    p["inv_spat"] = _linear_init(keys[6], D_MODEL_SPAT, D_MODEL * LAG)
    p["trans_temp"] = _linear_init(keys[7], D_MODEL * NUM_NODES, D_MODEL_TEMP)
    p["inv_temp"] = _linear_init(keys[8], D_MODEL_TEMP, D_MODEL * NUM_NODES)
    p["spat_gib"] = _gat_layer_init(keys[9], D_MODEL_SPAT) + _gat_layer_init(keys[10], D_MODEL_SPAT)
    p["temp_gib"] = _gat_layer_init(keys[11], D_MODEL_TEMP) + _gat_layer_init(keys[12], D_MODEL_TEMP)
    enc = []
    for i in range(NUM_LAYER):
        k1, k2 = jax.random.split(keys[13 + i])
        enc.append((_linear_init(k1, HIDDEN_DIM, HIDDEN_DIM),
                    _linear_init(k2, HIDDEN_DIM, HIDDEN_DIM)))
    p["encoder"] = enc
    p["regression"] = _linear_init(keys[16], HIDDEN_DIM, HORIZON)        # 1x1 conv
    return p


def _pack_gat(p8):
    """Pack a 2-layer GAT into [W | W@a_dst] (2,D,D+1) and [a_src;bias] (2,2,D)."""
    w1, a1s, a1d, b1, w2, a2s, a2d, b2 = p8
    w_ext = jnp.stack([jnp.concatenate([w1, w1 @ a1d.T], axis=1),
                       jnp.concatenate([w2, w2 @ a2d.T], axis=1)])
    rows = jnp.stack([jnp.concatenate([a1s, b1], axis=0),
                      jnp.concatenate([a2s, b2], axis=0)])
    return w_ext, rows


def prepare_kernel_params(p):
    """One-time composition / permutation / packing of weights into kernel layout."""
    ws, bs = p["start_fc"]                # (3, D_MODEL), (D_MODEL,)
    wtsp, btsp = p["trans_spat"]          # (L*D, Dspat)
    wts, bts = p["ts_emb"]                # (L*D, embed)
    wis, bis = p["inv_spat"]              # (Dspat, L*D)
    wtt, btt = p["trans_temp"]            # (N*D, Dtemp)
    wit, bit = p["inv_temp"]              # (Dtemp, N*D)

    def compose_start(w_big, b_big):
        # (start_fc -> reshape(L-major,D-minor) -> w_big) as one (L*INPUT_DIM -> C) linear
        wb = w_big.reshape(LAG, D_MODEL, -1)                            # (L, D, C)
        w_c = jnp.einsum("cd,ldo->lco", ws, wb).reshape(LAG * INPUT_DIM, -1)
        b_c = b_big + bs @ wb.sum(axis=0)
        return w_c, b_c

    w_spa_c, b_spa_c = compose_start(wtsp, btsp)                        # (24, 32), (32,)
    w_tsc, b_tsc = compose_start(wts, bts)                              # (24, 32), (32,)

    kp = {}
    kp["w_start"] = jnp.concatenate([w_spa_c, w_tsc], axis=1)           # (24, 64)

    # InverseTransSpat: transposed, with (d, l) d-major row order
    w_is_dmaj = wis.reshape(D_MODEL_SPAT, LAG, D_MODEL).transpose(0, 2, 1).reshape(D_MODEL_SPAT, -1)
    kp["w_isT"] = w_is_dmaj.T                                           # (D*L, Dspat) = (64, 32)
    b_is_col = bis.reshape(LAG, D_MODEL).T.reshape(-1, 1)               # (D*L, 1)

    # TransTemp with (d, n) d-major row order
    kp["w_tt"] = wtt.reshape(NUM_NODES, D_MODEL, D_MODEL_TEMP).transpose(1, 0, 2).reshape(
        D_MODEL * NUM_NODES, D_MODEL_TEMP)                              # (128, 32)

    # InverseTransTemp: transposed, with (d, n) d-major row order
    w_it_dmaj = wit.reshape(D_MODEL_TEMP, NUM_NODES, D_MODEL).transpose(0, 2, 1).reshape(D_MODEL_TEMP, -1)
    kp["w_itT"] = w_it_dmaj.T                                           # (D*N, Dtemp) = (128, 32)
    b_it_col = bit.reshape(NUM_NODES, D_MODEL).T.reshape(-1, 1)         # (D*N, 1)

    # ts_emb with (d, l) d-major row order (temporal branch)
    kp["w_ts"] = wts.reshape(LAG, D_MODEL, HIDDEN_SIZE).transpose(1, 0, 2).reshape(
        D_MODEL * LAG, HIDDEN_SIZE)                                     # (64, 32)

    kp["bias_row"] = jnp.concatenate([b_spa_c, b_tsc, btt, bts]).reshape(1, -1)   # (1, 128)
    kp["bias_col"] = jnp.concatenate([b_is_col, b_it_col], axis=0)                # (192, 1)

    kp["gat_w_s"], kp["gat_r_s"] = _pack_gat(p["spat_gib"])
    kp["gat_w_t"], kp["gat_r_t"] = _pack_gat(p["temp_gib"])

    # encoder (standard orientation: HIDDEN_DIM on lanes) + regression
    enc_w, enc_b = [], []
    for (w1, b1), (w2, b2) in p["encoder"]:
        enc_w.append(jnp.concatenate([w1, w2], axis=0))                 # (2*HID, HID)
        enc_b.append(jnp.stack([b1.reshape(1, -1), b2.reshape(1, -1)]))  # (2, 1, HID)
    kp["enc_w"] = jnp.stack(enc_w)                                       # (3, 320, 160)
    kp["enc_b"] = jnp.stack(enc_b)                                       # (3, 2, 1, 160)

    wreg, breg = p["regression"]
    kp["w_regT"] = wreg.T                                                # (HORIZON, HIDDEN_DIM)
    kp["b_reg"] = breg.reshape(-1, 1)                                    # (HORIZON, 1)

    kp["node_emb"] = p["node_emb"]
    kp["tid_emb"] = p["tid_emb"]
    kp["diw_emb"] = p["diw_emb"]
    return kp


# ---------------------------------- forward ---------------------------------------
def stgib_forward(kp, history_data, adj_s_bd, adj_t_bd):
    """history_data: (B, L, N, 3); adj_*_bd: precomputed block-diagonal 0/1 masks."""
    B, L, N, _ = history_data.shape
    X = history_data[..., :INPUT_DIM]
    tid_idx = history_data[:, -1, :, 1].astype(jnp.int32)               # (B, N)
    diw_idx = history_data[:, -1, :, 2].astype(jnp.int32)
    tid = jnp.take(kp["tid_emb"], tid_idx, axis=0).reshape(B * N, HIDDEN_SIZE)
    diw = jnp.take(kp["diw_emb"], diw_idx, axis=0).reshape(B * N, HIDDEN_SIZE)
    node = jnp.tile(kp["node_emb"], (B, 1))                             # (B*N, 32)
    emb_slab = jnp.concatenate([node, tid, diw], axis=1)                # (B*N, 96)

    # node-major flattened raw input (feeds the composed start_fc linears)
    x_ln = jnp.transpose(X, (0, 2, 1, 3)).reshape(B * N, L * INPUT_DIM)

    pred_t = pl.pallas_call(
        _stgib_kernel,
        out_shape=jax.ShapeDtypeStruct((HORIZON, B * N), jnp.float32),
        in_specs=[VMEM_SPEC] * 19,
        out_specs=VMEM_SPEC,
    )(x_ln, adj_s_bd, adj_t_bd, emb_slab,
      kp["w_start"], kp["gat_w_s"], kp["gat_r_s"], kp["w_isT"],
      kp["w_tt"], kp["gat_w_t"], kp["gat_r_t"], kp["w_itT"], kp["w_ts"],
      kp["bias_row"], kp["bias_col"], kp["enc_w"], kp["enc_b"],
      kp["w_regT"], kp["b_reg"])

    # (HORIZON, B*N) -> PyTorch NCHW conv output layout (B, horizon, N, 1)
    return jnp.transpose(pred_t.reshape(HORIZON, B, N), (1, 0, 2))[..., None]


# ------------------------------------ main -----------------------------------------
if __name__ == "__main__":
    key = jax.random.PRNGKey(0)
    kp_key, kx, kt, kd = jax.random.split(key, 4)
    params = init_params(kp_key)
    kparams = prepare_kernel_params(params)       # one-time weight composition/packing

    B = 2
    vals = jax.random.normal(kx, (B, LAG, NUM_NODES, 1), jnp.float32)
    tid = jax.random.randint(kt, (B, LAG, NUM_NODES, 1), 0, 288).astype(jnp.float32)
    diw = jax.random.randint(kd, (B, LAG, NUM_NODES, 1), 0, 7).astype(jnp.float32)
    history_data = jnp.concatenate([vals, tid, diw], axis=-1)            # (B, L, N, 3)

    # spatial graph: ring adjacency (sp_adj_w) + self loops -> dense 0/1 mask
    idx = jnp.arange(NUM_NODES)
    ring = jnp.zeros((NUM_NODES, NUM_NODES)).at[idx, (idx + 1) % NUM_NODES].set(1.0)
    sp_adj_w = ring + ring.T
    spat_adj_mask = ((sp_adj_w > 0) | jnp.eye(NUM_NODES, dtype=bool)).astype(jnp.float32)
    # temporal graph: tem_adj = ones((lag, lag))  (fully connected)
    temp_adj_mask = jnp.ones((LAG, LAG), jnp.float32)

    # block-diagonal batched masks, built once OUTSIDE the jitted per-call path
    adj_s_bd = jnp.kron(jnp.eye(B, dtype=jnp.float32), spat_adj_mask)    # (B*N, B*N)
    adj_t_bd = jnp.kron(jnp.eye(B, dtype=jnp.float32), temp_adj_mask)    # (B*L, B*L)

    out = jax.jit(stgib_forward)(kparams, history_data, adj_s_bd, adj_t_bd)
    jax.block_until_ready(out)
    assert out.shape == (B, HORIZON, NUM_NODES, 1), out.shape
    assert bool(jnp.all(jnp.isfinite(out)))
    print("KERNEL_OK")
</pallas_src>

<mosaic_0001>
module attributes {stable_mosaic.version = 11 : i64} {
  func.func @_stgib_kernel(%arg0: memref<32x24xf32, #tpu.memory_space<vmem>>, %arg1: memref<32x32xf32, #tpu.memory_space<vmem>>, %arg2: memref<16x16xf32, #tpu.memory_space<vmem>>, %arg3: memref<32x96xf32, #tpu.memory_space<vmem>>, %arg4: memref<24x64xf32, #tpu.memory_space<vmem>>, %arg5: memref<2x32x33xf32, #tpu.memory_space<vmem>>, %arg6: memref<2x2x32xf32, #tpu.memory_space<vmem>>, %arg7: memref<64x32xf32, #tpu.memory_space<vmem>>, %arg8: memref<128x32xf32, #tpu.memory_space<vmem>>, %arg9: memref<2x32x33xf32, #tpu.memory_space<vmem>>, %arg10: memref<2x2x32xf32, #tpu.memory_space<vmem>>, %arg11: memref<128x32xf32, #tpu.memory_space<vmem>>, %arg12: memref<64x32xf32, #tpu.memory_space<vmem>>, %arg13: memref<1x128xf32, #tpu.memory_space<vmem>>, %arg14: memref<192x1xf32, #tpu.memory_space<vmem>>, %arg15: memref<3x320x160xf32, #tpu.memory_space<vmem>>, %arg16: memref<3x2x1x160xf32, #tpu.memory_space<vmem>>, %arg17: memref<4x160xf32, #tpu.memory_space<vmem>>, %arg18: memref<4x1xf32, #tpu.memory_space<vmem>>, %arg19: memref<4x32xf32, #tpu.memory_space<vmem>>) attributes {dimension_semantics = [], scalar_prefetch = 0 : i64, scratch_operands = 0 : i64, tpu.core_type = #tpu.core_type<tc>} {
    %c0 = arith.constant 0 : index
    %c0_0 = arith.constant 0 : index
    %0 = vector.load %arg13[%c0, %c0_0] : memref<1x128xf32, #tpu.memory_space<vmem>>, vector<1x128xf32>
    %1 = vector.extract_strided_slice %0 {offsets = [0, 0], sizes = [1, 64], strides = [1, 1]} : vector<1x128xf32> to vector<1x64xf32>
    %2 = vector.extract_strided_slice %0 {offsets = [0, 64], sizes = [1, 32], strides = [1, 1]} : vector<1x128xf32> to vector<1x32xf32>
    %3 = vector.extract_strided_slice %0 {offsets = [0, 96], sizes = [1, 32], strides = [1, 1]} : vector<1x128xf32> to vector<1x32xf32>
    %c0_1 = arith.constant 0 : index
    %c0_2 = arith.constant 0 : index
    %4 = vector.load %arg14[%c0_1, %c0_2] : memref<192x1xf32, #tpu.memory_space<vmem>>, vector<192x1xf32>
    %5 = vector.extract_strided_slice %4 {offsets = [0, 0], sizes = [64, 1], strides = [1, 1]} : vector<192x1xf32> to vector<64x1xf32>
    %6 = vector.extract_strided_slice %4 {offsets = [64, 0], sizes = [128, 1], strides = [1, 1]} : vector<192x1xf32> to vector<128x1xf32>
    %c0_3 = arith.constant 0 : index
    %c0_4 = arith.constant 0 : index
    %7 = vector.load %arg0[%c0_3, %c0_4] : memref<32x24xf32, #tpu.memory_space<vmem>>, vector<32x24xf32>
    %c0_5 = arith.constant 0 : index
    %c0_6 = arith.constant 0 : index
    %8 = vector.load %arg4[%c0_5, %c0_6] : memref<24x64xf32, #tpu.memory_space<vmem>>, vector<24x64xf32>
    %cst = arith.constant dense<0.000000e+00> : vector<32x64xf32>
    %9 = tpu.matmul %7, %8, %cst {dimension_numbers = #tpu.dot_dimension_numbers<[1], [0], [0], [1], [0, 0, 1, 1], [], []>} : vector<32x24xf32>, vector<24x64xf32>, vector<32x64xf32> -> vector<32x64xf32>
    %10 = vector.broadcast %1 : vector<1x64xf32> to vector<32x64xf32>
    %11 = arith.addf %9, %10 : vector<32x64xf32>
    %12 = vector.extract_strided_slice %11 {offsets = [0, 0], sizes = [32, 32], strides = [1, 1]} : vector<32x64xf32> to vector<32x32xf32>
    %13 = vector.extract_strided_slice %11 {offsets = [0, 32], sizes = [32, 32], strides = [1, 1]} : vector<32x64xf32> to vector<32x32xf32>
    %c0_7 = arith.constant 0 : index
    %c0_8 = arith.constant 0 : index
    %14 = vector.load %arg1[%c0_7, %c0_8] : memref<32x32xf32, #tpu.memory_space<vmem>>, vector<32x32xf32>
    %c0_9 = arith.constant 0 : index
    %c0_10 = arith.constant 0 : index
    %c0_11 = arith.constant 0 : index
    %15 = vector.load %arg5[%c0_9, %c0_10, %c0_11] : memref<2x32x33xf32, #tpu.memory_space<vmem>>, vector<2x32x33xf32>
    %c0_12 = arith.constant 0 : index
    %c0_13 = arith.constant 0 : index
    %c0_14 = arith.constant 0 : index
    %16 = vector.load %arg6[%c0_12, %c0_13, %c0_14] : memref<2x2x32xf32, #tpu.memory_space<vmem>>, vector<2x2x32xf32>
    %17 = vector.extract_strided_slice %15 {offsets = [0, 0, 0], sizes = [1, 32, 33], strides = [1, 1, 1]} : vector<2x32x33xf32> to vector<1x32x33xf32>
    %18 = vector.shape_cast %17 : vector<1x32x33xf32> to vector<32x33xf32>
    %19 = vector.extract_strided_slice %16 {offsets = [0, 0, 0], sizes = [1, 2, 32], strides = [1, 1, 1]} : vector<2x2x32xf32> to vector<1x2x32xf32>
    %20 = vector.shape_cast %19 : vector<1x2x32xf32> to vector<2x32xf32>
    %cst_15 = arith.constant dense<0.000000e+00> : vector<32x33xf32>
    %21 = tpu.matmul %12, %18, %cst_15 {dimension_numbers = #tpu.dot_dimension_numbers<[1], [0], [0], [1], [0, 0, 1, 1], [], []>} : vector<32x32xf32>, vector<32x33xf32>, vector<32x33xf32> -> vector<32x33xf32>
    %22 = vector.extract_strided_slice %21 {offsets = [0, 0], sizes = [32, 32], strides = [1, 1]} : vector<32x33xf32> to vector<32x32xf32>
    %23 = vector.extract_strided_slice %21 {offsets = [0, 32], sizes = [32, 1], strides = [1, 1]} : vector<32x33xf32> to vector<32x1xf32>
    %24 = vector.extract_strided_slice %20 {offsets = [0, 0], sizes = [1, 32], strides = [1, 1]} : vector<2x32xf32> to vector<1x32xf32>
    %cst_16 = arith.constant dense<0.000000e+00> : vector<1x32xf32>
    %25 = tpu.matmul %24, %22, %cst_16 {dimension_numbers = #tpu.dot_dimension_numbers<[1], [1], [0], [0], [0, 0, 1, 0], [], []>} : vector<1x32xf32>, vector<32x32xf32>, vector<1x32xf32> -> vector<1x32xf32>
    %26 = vector.broadcast %23 : vector<32x1xf32> to vector<32x32xf32>
    %27 = vector.broadcast %25 : vector<1x32xf32> to vector<32x32xf32>
    %28 = arith.addf %26, %27 : vector<32x32xf32>
    %cst_17 = arith.constant 0.000000e+00 : f32
    %29 = vector.broadcast %cst_17 : f32 to vector<32x32xf32>
    %30 = arith.cmpf ogt, %28, %29 : vector<32x32xf32>
    %cst_18 = arith.constant 2.000000e-01 : f32
    %31 = vector.broadcast %cst_18 : f32 to vector<32x32xf32>
    %32 = arith.mulf %31, %28 : vector<32x32xf32>
    %33 = arith.select %30, %28, %32 : vector<32x32xi1>, vector<32x32xf32>
    %cst_19 = arith.constant dense<0xFF800000> : vector<32xf32>
    %34 = vector.multi_reduction <maximumf>, %33, %cst_19 [1] : vector<32x32xf32> to vector<32xf32>
    %35 = vector.shape_cast %34 : vector<32xf32> to vector<32x1xf32>
    %36 = vector.broadcast %35 : vector<32x1xf32> to vector<32x32xf32>
    %37 = arith.subf %33, %36 : vector<32x32xf32>
    %38 = math.exp %37 : vector<32x32xf32>
    %39 = arith.mulf %38, %14 : vector<32x32xf32>
    %cst_20 = arith.constant dense<0.000000e+00> : vector<32xf32>
    %40 = vector.multi_reduction <add>, %39, %cst_20 [1] : vector<32x32xf32> to vector<32xf32>
    %41 = vector.shape_cast %40 : vector<32xf32> to vector<32x1xf32>
    %cst_21 = arith.constant 9.99999968E-21 : f32
    %42 = vector.broadcast %cst_21 : f32 to vector<32x1xf32>
    %43 = arith.maximumf %41, %42 : vector<32x1xf32>
    %44 = tpu.reciprocal %43 {approx = true} : vector<32x1xf32> -> vector<32x1xf32>
    %45 = vector.broadcast %44 : vector<32x1xf32> to vector<32x32xf32>
    %46 = arith.mulf %39, %45 : vector<32x32xf32>
    %cst_22 = arith.constant dense<0.000000e+00> : vector<32x32xf32>
    %47 = tpu.matmul %46, %22, %cst_22 {dimension_numbers = #tpu.dot_dimension_numbers<[1], [0], [0], [1], [0, 0, 1, 1], [], []>} : vector<32x32xf32>, vector<32x32xf32>, vector<32x32xf32> -> vector<32x32xf32>
    %48 = vector.extract_strided_slice %20 {offsets = [1, 0], sizes = [1, 32], strides = [1, 1]} : vector<2x32xf32> to vector<1x32xf32>
    %49 = vector.broadcast %48 : vector<1x32xf32> to vector<32x32xf32>
    %50 = arith.addf %47, %49 : vector<32x32xf32>
    %cst_23 = arith.constant 0.000000e+00 : f32
    %51 = vector.broadcast %cst_23 : f32 to vector<32x32xf32>
    %52 = arith.cmpf ogt, %50, %51 : vector<32x32xf32>
    %cst_24 = arith.constant 0.000000e+00 : f32
    %53 = vector.broadcast %cst_24 : f32 to vector<32x32xf32>
    %54 = arith.minimumf %50, %53 : vector<32x32xf32>
    %55 = math.exp %54 : vector<32x32xf32>
    %cst_25 = arith.constant 1.000000e+00 : f32
    %56 = vector.broadcast %cst_25 : f32 to vector<32x32xf32>
    %57 = arith.subf %55, %56 : vector<32x32xf32>
    %58 = arith.select %52, %50, %57 : vector<32x32xi1>, vector<32x32xf32>
    %59 = vector.extract_strided_slice %15 {offsets = [1, 0, 0], sizes = [1, 32, 33], strides = [1, 1, 1]} : vector<2x32x33xf32> to vector<1x32x33xf32>
    %60 = vector.shape_cast %59 : vector<1x32x33xf32> to vector<32x33xf32>
    %61 = vector.extract_strided_slice %16 {offsets = [1, 0, 0], sizes = [1, 2, 32], strides = [1, 1, 1]} : vector<2x2x32xf32> to vector<1x2x32xf32>
    %62 = vector.shape_cast %61 : vector<1x2x32xf32> to vector<2x32xf32>
    %cst_26 = arith.constant dense<0.000000e+00> : vector<32x33xf32>
    %63 = tpu.matmul %58, %60, %cst_26 {dimension_numbers = #tpu.dot_dimension_numbers<[1], [0], [0], [1], [0, 0, 1, 1], [], []>} : vector<32x32xf32>, vector<32x33xf32>, vector<32x33xf32> -> vector<32x33xf32>
    %64 = vector.extract_strided_slice %63 {offsets = [0, 0], sizes = [32, 32], strides = [1, 1]} : vector<32x33xf32> to vector<32x32xf32>
    %65 = vector.extract_strided_slice %63 {offsets = [0, 32], sizes = [32, 1], strides = [1, 1]} : vector<32x33xf32> to vector<32x1xf32>
    %66 = vector.extract_strided_slice %62 {offsets = [0, 0], sizes = [1, 32], strides = [1, 1]} : vector<2x32xf32> to vector<1x32xf32>
    %cst_27 = arith.constant dense<0.000000e+00> : vector<1x32xf32>
    %67 = tpu.matmul %66, %64, %cst_27 {dimension_numbers = #tpu.dot_dimension_numbers<[1], [1], [0], [0], [0, 0, 1, 0], [], []>} : vector<1x32xf32>, vector<32x32xf32>, vector<1x32xf32> -> vector<1x32xf32>
    %68 = vector.broadcast %65 : vector<32x1xf32> to vector<32x32xf32>
    %69 = vector.broadcast %67 : vector<1x32xf32> to vector<32x32xf32>
    %70 = arith.addf %68, %69 : vector<32x32xf32>
    %cst_28 = arith.constant 0.000000e+00 : f32
    %71 = vector.broadcast %cst_28 : f32 to vector<32x32xf32>
    %72 = arith.cmpf ogt, %70, %71 : vector<32x32xf32>
    %cst_29 = arith.constant 2.000000e-01 : f32
    %73 = vector.broadcast %cst_29 : f32 to vector<32x32xf32>
    %74 = arith.mulf %73, %70 : vector<32x32xf32>
    %75 = arith.select %72, %70, %74 : vector<32x32xi1>, vector<32x32xf32>
    %cst_30 = arith.constant dense<0xFF800000> : vector<32xf32>
    %76 = vector.multi_reduction <maximumf>, %75, %cst_30 [1] : vector<32x32xf32> to vector<32xf32>
    %77 = vector.shape_cast %76 : vector<32xf32> to vector<32x1xf32>
    %78 = vector.broadcast %77 : vector<32x1xf32> to vector<32x32xf32>
    %79 = arith.subf %75, %78 : vector<32x32xf32>
    %80 = math.exp %79 : vector<32x32xf32>
    %81 = arith.mulf %80, %14 : vector<32x32xf32>
    %cst_31 = arith.constant dense<0.000000e+00> : vector<32xf32>
    %82 = vector.multi_reduction <add>, %81, %cst_31 [1] : vector<32x32xf32> to vector<32xf32>
    %83 = vector.shape_cast %82 : vector<32xf32> to vector<32x1xf32>
    %cst_32 = arith.constant 9.99999968E-21 : f32
    %84 = vector.broadcast %cst_32 : f32 to vector<32x1xf32>
    %85 = arith.maximumf %83, %84 : vector<32x1xf32>
    %86 = tpu.reciprocal %85 {approx = true} : vector<32x1xf32> -> vector<32x1xf32>
    %87 = vector.broadcast %86 : vector<32x1xf32> to vector<32x32xf32>
    %88 = arith.mulf %81, %87 : vector<32x32xf32>
    %cst_33 = arith.constant dense<0.000000e+00> : vector<32x32xf32>
    %89 = tpu.matmul %88, %64, %cst_33 {dimension_numbers = #tpu.dot_dimension_numbers<[1], [0], [0], [1], [0, 0, 1, 1], [], []>} : vector<32x32xf32>, vector<32x32xf32>, vector<32x32xf32> -> vector<32x32xf32>
    %90 = vector.extract_strided_slice %62 {offsets = [1, 0], sizes = [1, 32], strides = [1, 1]} : vector<2x32xf32> to vector<1x32xf32>
    %91 = vector.broadcast %90 : vector<1x32xf32> to vector<32x32xf32>
    %92 = arith.addf %89, %91 : vector<32x32xf32>
    %c0_34 = arith.constant 0 : index
    %c0_35 = arith.constant 0 : index
    %93 = vector.load %arg7[%c0_34, %c0_35] : memref<64x32xf32, #tpu.memory_space<vmem>>, vector<64x32xf32>
    %cst_36 = arith.constant dense<0.000000e+00> : vector<64x32xf32>
    %94 = tpu.matmul %93, %92, %cst_36 {dimension_numbers = #tpu.dot_dimension_numbers<[1], [1], [0], [0], [0, 0, 1, 0], [], []>} : vector<64x32xf32>, vector<32x32xf32>, vector<64x32xf32> -> vector<64x32xf32>
    %95 = vector.broadcast %5 : vector<64x1xf32> to vector<64x32xf32>
    %96 = arith.addf %94, %95 : vector<64x32xf32>
    %97 = vector.extract_strided_slice %96 {offsets = [0, 0], sizes = [8, 16], strides = [1, 1]} : vector<64x32xf32> to vector<8x16xf32>
    %98 = vector.extract_strided_slice %96 {offsets = [8, 0], sizes = [8, 16], strides = [1, 1]} : vector<64x32xf32> to vector<8x16xf32>
    %99 = vector.extract_strided_slice %96 {offsets = [16, 0], sizes = [8, 16], strides = [1, 1]} : vector<64x32xf32> to vector<8x16xf32>
    %100 = vector.extract_strided_slice %96 {offsets = [24, 0], sizes = [8, 16], strides = [1, 1]} : vector<64x32xf32> to vector<8x16xf32>
    %101 = vector.extract_strided_slice %96 {offsets = [32, 0], sizes = [8, 16], strides = [1, 1]} : vector<64x32xf32> to vector<8x16xf32>
    %102 = vector.extract_strided_slice %96 {offsets = [40, 0], sizes = [8, 16], strides = [1, 1]} : vector<64x32xf32> to vector<8x16xf32>
    %103 = vector.extract_strided_slice %96 {offsets = [48, 0], sizes = [8, 16], strides = [1, 1]} : vector<64x32xf32> to vector<8x16xf32>
    %104 = vector.extract_strided_slice %96 {offsets = [56, 0], sizes = [8, 16], strides = [1, 1]} : vector<64x32xf32> to vector<8x16xf32>
    %105 = tpu.concatenate %97, %98, %99, %100, %101, %102, %103, %104 in 1 : vector<8x16xf32>, vector<8x16xf32>, vector<8x16xf32>, vector<8x16xf32>, vector<8x16xf32>, vector<8x16xf32>, vector<8x16xf32>, vector<8x16xf32> -> vector<8x128xf32>
    %106 = vector.extract_strided_slice %96 {offsets = [0, 16], sizes = [8, 16], strides = [1, 1]} : vector<64x32xf32> to vector<8x16xf32>
    %107 = vector.extract_strided_slice %96 {offsets = [8, 16], sizes = [8, 16], strides = [1, 1]} : vector<64x32xf32> to vector<8x16xf32>
    %108 = vector.extract_strided_slice %96 {offsets = [16, 16], sizes = [8, 16], strides = [1, 1]} : vector<64x32xf32> to vector<8x16xf32>
    %109 = vector.extract_strided_slice %96 {offsets = [24, 16], sizes = [8, 16], strides = [1, 1]} : vector<64x32xf32> to vector<8x16xf32>
    %110 = vector.extract_strided_slice %96 {offsets = [32, 16], sizes = [8, 16], strides = [1, 1]} : vector<64x32xf32> to vector<8x16xf32>
    %111 = vector.extract_strided_slice %96 {offsets = [40, 16], sizes = [8, 16], strides = [1, 1]} : vector<64x32xf32> to vector<8x16xf32>
    %112 = vector.extract_strided_slice %96 {offsets = [48, 16], sizes = [8, 16], strides = [1, 1]} : vector<64x32xf32> to vector<8x16xf32>
    %113 = vector.extract_strided_slice %96 {offsets = [56, 16], sizes = [8, 16], strides = [1, 1]} : vector<64x32xf32> to vector<8x16xf32>
    %114 = tpu.concatenate %106, %107, %108, %109, %110, %111, %112, %113 in 1 : vector<8x16xf32>, vector<8x16xf32>, vector<8x16xf32>, vector<8x16xf32>, vector<8x16xf32>, vector<8x16xf32>, vector<8x16xf32>, vector<8x16xf32> -> vector<8x128xf32>
    %115 = tpu.concatenate %105, %114 in 0 : vector<8x128xf32>, vector<8x128xf32> -> vector<16x128xf32>
    %c0_37 = arith.constant 0 : index
    %c0_38 = arith.constant 0 : index
    %116 = vector.load %arg8[%c0_37, %c0_38] : memref<128x32xf32, #tpu.memory_space<vmem>>, vector<128x32xf32>
    %cst_39 = arith.constant dense<0.000000e+00> : vector<16x32xf32>
    %117 = tpu.matmul %115, %116, %cst_39 {dimension_numbers = #tpu.dot_dimension_numbers<[1], [0], [0], [1], [0, 0, 1, 1], [], []>} : vector<16x128xf32>, vector<128x32xf32>, vector<16x32xf32> -> vector<16x32xf32>
    %118 = vector.broadcast %2 : vector<1x32xf32> to vector<16x32xf32>
    %119 = arith.addf %117, %118 : vector<16x32xf32>
    %c0_40 = arith.constant 0 : index
    %c0_41 = arith.constant 0 : index
    %120 = vector.load %arg2[%c0_40, %c0_41] : memref<16x16xf32, #tpu.memory_space<vmem>>, vector<16x16xf32>
    %c0_42 = arith.constant 0 : index
    %c0_43 = arith.constant 0 : index
    %c0_44 = arith.constant 0 : index
    %121 = vector.load %arg9[%c0_42, %c0_43, %c0_44] : memref<2x32x33xf32, #tpu.memory_space<vmem>>, vector<2x32x33xf32>
    %c0_45 = arith.constant 0 : index
    %c0_46 = arith.constant 0 : index
    %c0_47 = arith.constant 0 : index
    %122 = vector.load %arg10[%c0_45, %c0_46, %c0_47] : memref<2x2x32xf32, #tpu.memory_space<vmem>>, vector<2x2x32xf32>
    %123 = vector.extract_strided_slice %121 {offsets = [0, 0, 0], sizes = [1, 32, 33], strides = [1, 1, 1]} : vector<2x32x33xf32> to vector<1x32x33xf32>
    %124 = vector.shape_cast %123 : vector<1x32x33xf32> to vector<32x33xf32>
    %125 = vector.extract_strided_slice %122 {offsets = [0, 0, 0], sizes = [1, 2, 32], strides = [1, 1, 1]} : vector<2x2x32xf32> to vector<1x2x32xf32>
    %126 = vector.shape_cast %125 : vector<1x2x32xf32> to vector<2x32xf32>
    %cst_48 = arith.constant dense<0.000000e+00> : vector<16x33xf32>
    %127 = tpu.matmul %119, %124, %cst_48 {dimension_numbers = #tpu.dot_dimension_numbers<[1], [0], [0], [1], [0, 0, 1, 1], [], []>} : vector<16x32xf32>, vector<32x33xf32>, vector<16x33xf32> -> vector<16x33xf32>
    %128 = vector.extract_strided_slice %127 {offsets = [0, 0], sizes = [16, 32], strides = [1, 1]} : vector<16x33xf32> to vector<16x32xf32>
    %129 = vector.extract_strided_slice %127 {offsets = [0, 32], sizes = [16, 1], strides = [1, 1]} : vector<16x33xf32> to vector<16x1xf32>
    %130 = vector.extract_strided_slice %126 {offsets = [0, 0], sizes = [1, 32], strides = [1, 1]} : vector<2x32xf32> to vector<1x32xf32>
    %cst_49 = arith.constant dense<0.000000e+00> : vector<1x16xf32>
    %131 = tpu.matmul %130, %128, %cst_49 {dimension_numbers = #tpu.dot_dimension_numbers<[1], [1], [0], [0], [0, 0, 1, 0], [], []>} : vector<1x32xf32>, vector<16x32xf32>, vector<1x16xf32> -> vector<1x16xf32>
    %132 = vector.broadcast %129 : vector<16x1xf32> to vector<16x16xf32>
    %133 = vector.broadcast %131 : vector<1x16xf32> to vector<16x16xf32>
    %134 = arith.addf %132, %133 : vector<16x16xf32>
    %cst_50 = arith.constant 0.000000e+00 : f32
    %135 = vector.broadcast %cst_50 : f32 to vector<16x16xf32>
    %136 = arith.cmpf ogt, %134, %135 : vector<16x16xf32>
    %cst_51 = arith.constant 2.000000e-01 : f32
    %137 = vector.broadcast %cst_51 : f32 to vector<16x16xf32>
    %138 = arith.mulf %137, %134 : vector<16x16xf32>
    %139 = arith.select %136, %134, %138 : vector<16x16xi1>, vector<16x16xf32>
    %cst_52 = arith.constant dense<0xFF800000> : vector<16xf32>
    %140 = vector.multi_reduction <maximumf>, %139, %cst_52 [1] : vector<16x16xf32> to vector<16xf32>
    %141 = vector.shape_cast %140 : vector<16xf32> to vector<16x1xf32>
    %142 = vector.broadcast %141 : vector<16x1xf32> to vector<16x16xf32>
    %143 = arith.subf %139, %142 : vector<16x16xf32>
    %144 = math.exp %143 : vector<16x16xf32>
    %145 = arith.mulf %144, %120 : vector<16x16xf32>
    %cst_53 = arith.constant dense<0.000000e+00> : vector<16xf32>
    %146 = vector.multi_reduction <add>, %145, %cst_53 [1] : vector<16x16xf32> to vector<16xf32>
    %147 = vector.shape_cast %146 : vector<16xf32> to vector<16x1xf32>
    %cst_54 = arith.constant 9.99999968E-21 : f32
    %148 = vector.broadcast %cst_54 : f32 to vector<16x1xf32>
    %149 = arith.maximumf %147, %148 : vector<16x1xf32>
    %150 = tpu.reciprocal %149 {approx = true} : vector<16x1xf32> -> vector<16x1xf32>
    %151 = vector.broadcast %150 : vector<16x1xf32> to vector<16x16xf32>
    %152 = arith.mulf %145, %151 : vector<16x16xf32>
    %cst_55 = arith.constant dense<0.000000e+00> : vector<16x32xf32>
    %153 = tpu.matmul %152, %128, %cst_55 {dimension_numbers = #tpu.dot_dimension_numbers<[1], [0], [0], [1], [0, 0, 1, 1], [], []>} : vector<16x16xf32>, vector<16x32xf32>, vector<16x32xf32> -> vector<16x32xf32>
    %154 = vector.extract_strided_slice %126 {offsets = [1, 0], sizes = [1, 32], strides = [1, 1]} : vector<2x32xf32> to vector<1x32xf32>
    %155 = vector.broadcast %154 : vector<1x32xf32> to vector<16x32xf32>
    %156 = arith.addf %153, %155 : vector<16x32xf32>
    %cst_56 = arith.constant 0.000000e+00 : f32
    %157 = vector.broadcast %cst_56 : f32 to vector<16x32xf32>
    %158 = arith.cmpf ogt, %156, %157 : vector<16x32xf32>
    %cst_57 = arith.constant 0.000000e+00 : f32
    %159 = vector.broadcast %cst_57 : f32 to vector<16x32xf32>
    %160 = arith.minimumf %156, %159 : vector<16x32xf32>
    %161 = math.exp %160 : vector<16x32xf32>
    %cst_58 = arith.constant 1.000000e+00 : f32
    %162 = vector.broadcast %cst_58 : f32 to vector<16x32xf32>
    %163 = arith.subf %161, %162 : vector<16x32xf32>
    %164 = arith.select %158, %156, %163 : vector<16x32xi1>, vector<16x32xf32>
    %165 = vector.extract_strided_slice %121 {offsets = [1, 0, 0], sizes = [1, 32, 33], strides = [1, 1, 1]} : vector<2x32x33xf32> to vector<1x32x33xf32>
    %166 = vector.shape_cast %165 : vector<1x32x33xf32> to vector<32x33xf32>
    %167 = vector.extract_strided_slice %122 {offsets = [1, 0, 0], sizes = [1, 2, 32], strides = [1, 1, 1]} : vector<2x2x32xf32> to vector<1x2x32xf32>
    %168 = vector.shape_cast %167 : vector<1x2x32xf32> to vector<2x32xf32>
    %cst_59 = arith.constant dense<0.000000e+00> : vector<16x33xf32>
    %169 = tpu.matmul %164, %166, %cst_59 {dimension_numbers = #tpu.dot_dimension_numbers<[1], [0], [0], [1], [0, 0, 1, 1], [], []>} : vector<16x32xf32>, vector<32x33xf32>, vector<16x33xf32> -> vector<16x33xf32>
    %170 = vector.extract_strided_slice %169 {offsets = [0, 0], sizes = [16, 32], strides = [1, 1]} : vector<16x33xf32> to vector<16x32xf32>
    %171 = vector.extract_strided_slice %169 {offsets = [0, 32], sizes = [16, 1], strides = [1, 1]} : vector<16x33xf32> to vector<16x1xf32>
    %172 = vector.extract_strided_slice %168 {offsets = [0, 0], sizes = [1, 32], strides = [1, 1]} : vector<2x32xf32> to vector<1x32xf32>
    %cst_60 = arith.constant dense<0.000000e+00> : vector<1x16xf32>
    %173 = tpu.matmul %172, %170, %cst_60 {dimension_numbers = #tpu.dot_dimension_numbers<[1], [1], [0], [0], [0, 0, 1, 0], [], []>} : vector<1x32xf32>, vector<16x32xf32>, vector<1x16xf32> -> vector<1x16xf32>
    %174 = vector.broadcast %171 : vector<16x1xf32> to vector<16x16xf32>
    %175 = vector.broadcast %173 : vector<1x16xf32> to vector<16x16xf32>
    %176 = arith.addf %174, %175 : vector<16x16xf32>
    %cst_61 = arith.constant 0.000000e+00 : f32
    %177 = vector.broadcast %cst_61 : f32 to vector<16x16xf32>
    %178 = arith.cmpf ogt, %176, %177 : vector<16x16xf32>
    %cst_62 = arith.constant 2.000000e-01 : f32
    %179 = vector.broadcast %cst_62 : f32 to vector<16x16xf32>
    %180 = arith.mulf %179, %176 : vector<16x16xf32>
    %181 = arith.select %178, %176, %180 : vector<16x16xi1>, vector<16x16xf32>
    %cst_63 = arith.constant dense<0xFF800000> : vector<16xf32>
    %182 = vector.multi_reduction <maximumf>, %181, %cst_63 [1] : vector<16x16xf32> to vector<16xf32>
    %183 = vector.shape_cast %182 : vector<16xf32> to vector<16x1xf32>
    %184 = vector.broadcast %183 : vector<16x1xf32> to vector<16x16xf32>
    %185 = arith.subf %181, %184 : vector<16x16xf32>
    %186 = math.exp %185 : vector<16x16xf32>
    %187 = arith.mulf %186, %120 : vector<16x16xf32>
    %cst_64 = arith.constant dense<0.000000e+00> : vector<16xf32>
    %188 = vector.multi_reduction <add>, %187, %cst_64 [1] : vector<16x16xf32> to vector<16xf32>
    %189 = vector.shape_cast %188 : vector<16xf32> to vector<16x1xf32>
    %cst_65 = arith.constant 9.99999968E-21 : f32
    %190 = vector.broadcast %cst_65 : f32 to vector<16x1xf32>
    %191 = arith.maximumf %189, %190 : vector<16x1xf32>
    %192 = tpu.reciprocal %191 {approx = true} : vector<16x1xf32> -> vector<16x1xf32>
    %193 = vector.broadcast %192 : vector<16x1xf32> to vector<16x16xf32>
    %194 = arith.mulf %187, %193 : vector<16x16xf32>
    %cst_66 = arith.constant dense<0.000000e+00> : vector<16x32xf32>
    %195 = tpu.matmul %194, %170, %cst_66 {dimension_numbers = #tpu.dot_dimension_numbers<[1], [0], [0], [1], [0, 0, 1, 1], [], []>} : vector<16x16xf32>, vector<16x32xf32>, vector<16x32xf32> -> vector<16x32xf32>
    %196 = vector.extract_strided_slice %168 {offsets = [1, 0], sizes = [1, 32], strides = [1, 1]} : vector<2x32xf32> to vector<1x32xf32>
    %197 = vector.broadcast %196 : vector<1x32xf32> to vector<16x32xf32>
    %198 = arith.addf %195, %197 : vector<16x32xf32>
    %c0_67 = arith.constant 0 : index
    %c0_68 = arith.constant 0 : index
    %199 = vector.load %arg11[%c0_67, %c0_68] : memref<128x32xf32, #tpu.memory_space<vmem>>, vector<128x32xf32>
    %cst_69 = arith.constant dense<0.000000e+00> : vector<128x16xf32>
    %200 = tpu.matmul %199, %198, %cst_69 {dimension_numbers = #tpu.dot_dimension_numbers<[1], [1], [0], [0], [0, 0, 1, 0], [], []>} : vector<128x32xf32>, vector<16x32xf32>, vector<128x16xf32> -> vector<128x16xf32>
    %201 = vector.broadcast %6 : vector<128x1xf32> to vector<128x16xf32>
    %202 = arith.addf %200, %201 : vector<128x16xf32>
    %203 = vector.extract_strided_slice %202 {offsets = [0, 0], sizes = [16, 8], strides = [1, 1]} : vector<128x16xf32> to vector<16x8xf32>
    %204 = vector.extract_strided_slice %202 {offsets = [16, 0], sizes = [16, 8], strides = [1, 1]} : vector<128x16xf32> to vector<16x8xf32>
    %205 = vector.extract_strided_slice %202 {offsets = [32, 0], sizes = [16, 8], strides = [1, 1]} : vector<128x16xf32> to vector<16x8xf32>
    %206 = vector.extract_strided_slice %202 {offsets = [48, 0], sizes = [16, 8], strides = [1, 1]} : vector<128x16xf32> to vector<16x8xf32>
    %207 = vector.extract_strided_slice %202 {offsets = [64, 0], sizes = [16, 8], strides = [1, 1]} : vector<128x16xf32> to vector<16x8xf32>
    %208 = vector.extract_strided_slice %202 {offsets = [80, 0], sizes = [16, 8], strides = [1, 1]} : vector<128x16xf32> to vector<16x8xf32>
    %209 = vector.extract_strided_slice %202 {offsets = [96, 0], sizes = [16, 8], strides = [1, 1]} : vector<128x16xf32> to vector<16x8xf32>
    %210 = vector.extract_strided_slice %202 {offsets = [112, 0], sizes = [16, 8], strides = [1, 1]} : vector<128x16xf32> to vector<16x8xf32>
    %211 = tpu.concatenate %203, %204, %205, %206, %207, %208, %209, %210 in 1 : vector<16x8xf32>, vector<16x8xf32>, vector<16x8xf32>, vector<16x8xf32>, vector<16x8xf32>, vector<16x8xf32>, vector<16x8xf32>, vector<16x8xf32> -> vector<16x64xf32>
    %212 = vector.extract_strided_slice %202 {offsets = [0, 8], sizes = [16, 8], strides = [1, 1]} : vector<128x16xf32> to vector<16x8xf32>
    %213 = vector.extract_strided_slice %202 {offsets = [16, 8], sizes = [16, 8], strides = [1, 1]} : vector<128x16xf32> to vector<16x8xf32>
    %214 = vector.extract_strided_slice %202 {offsets = [32, 8], sizes = [16, 8], strides = [1, 1]} : vector<128x16xf32> to vector<16x8xf32>
    %215 = vector.extract_strided_slice %202 {offsets = [48, 8], sizes = [16, 8], strides = [1, 1]} : vector<128x16xf32> to vector<16x8xf32>
    %216 = vector.extract_strided_slice %202 {offsets = [64, 8], sizes = [16, 8], strides = [1, 1]} : vector<128x16xf32> to vector<16x8xf32>
    %217 = vector.extract_strided_slice %202 {offsets = [80, 8], sizes = [16, 8], strides = [1, 1]} : vector<128x16xf32> to vector<16x8xf32>
    %218 = vector.extract_strided_slice %202 {offsets = [96, 8], sizes = [16, 8], strides = [1, 1]} : vector<128x16xf32> to vector<16x8xf32>
    %219 = vector.extract_strided_slice %202 {offsets = [112, 8], sizes = [16, 8], strides = [1, 1]} : vector<128x16xf32> to vector<16x8xf32>
    %220 = tpu.concatenate %212, %213, %214, %215, %216, %217, %218, %219 in 1 : vector<16x8xf32>, vector<16x8xf32>, vector<16x8xf32>, vector<16x8xf32>, vector<16x8xf32>, vector<16x8xf32>, vector<16x8xf32>, vector<16x8xf32> -> vector<16x64xf32>
    %221 = tpu.concatenate %211, %220 in 0 : vector<16x64xf32>, vector<16x64xf32> -> vector<32x64xf32>
    %c0_70 = arith.constant 0 : index
    %c0_71 = arith.constant 0 : index
    %222 = vector.load %arg12[%c0_70, %c0_71] : memref<64x32xf32, #tpu.memory_space<vmem>>, vector<64x32xf32>
    %cst_72 = arith.constant dense<0.000000e+00> : vector<32x32xf32>
    %223 = tpu.matmul %221, %222, %cst_72 {dimension_numbers = #tpu.dot_dimension_numbers<[1], [0], [0], [1], [0, 0, 1, 1], [], []>} : vector<32x64xf32>, vector<64x32xf32>, vector<32x32xf32> -> vector<32x32xf32>
    %224 = vector.broadcast %3 : vector<1x32xf32> to vector<32x32xf32>
    %225 = arith.addf %223, %224 : vector<32x32xf32>
    %c0_73 = arith.constant 0 : index
    %c0_74 = arith.constant 0 : index
    %226 = vector.load %arg3[%c0_73, %c0_74] : memref<32x96xf32, #tpu.memory_space<vmem>>, vector<32x96xf32>
    %227 = tpu.concatenate %13, %225, %226 in 1 : vector<32x32xf32>, vector<32x32xf32>, vector<32x96xf32> -> vector<32x160xf32>
    %c0_75 = arith.constant 0 : index
    %c0_76 = arith.constant 0 : index
    %c0_77 = arith.constant 0 : index
    %228 = vector.load %arg15[%c0_75, %c0_76, %c0_77] : memref<3x320x160xf32, #tpu.memory_space<vmem>>, vector<3x320x160xf32>
    %c0_78 = arith.constant 0 : index
    %c0_79 = arith.constant 0 : index
    %c0_80 = arith.constant 0 : index
    %c0_81 = arith.constant 0 : index
    %229 = vector.load %arg16[%c0_78, %c0_79, %c0_80, %c0_81] : memref<3x2x1x160xf32, #tpu.memory_space<vmem>>, vector<3x2x1x160xf32>
    %230 = vector.extract_strided_slice %228 {offsets = [0, 0, 0], sizes = [1, 160, 160], strides = [1, 1, 1]} : vector<3x320x160xf32> to vector<1x160x160xf32>
    %231 = vector.shape_cast %230 : vector<1x160x160xf32> to vector<160x160xf32>
    %cst_82 = arith.constant dense<0.000000e+00> : vector<32x160xf32>
    %232 = tpu.matmul %227, %231, %cst_82 {dimension_numbers = #tpu.dot_dimension_numbers<[1], [0], [0], [1], [0, 0, 1, 1], [], []>} : vector<32x160xf32>, vector<160x160xf32>, vector<32x160xf32> -> vector<32x160xf32>
    %233 = vector.extract_strided_slice %229 {offsets = [0, 0, 0, 0], sizes = [1, 1, 1, 160], strides = [1, 1, 1, 1]} : vector<3x2x1x160xf32> to vector<1x1x1x160xf32>
    %234 = vector.shape_cast %233 : vector<1x1x1x160xf32> to vector<1x160xf32>
    %235 = vector.broadcast %234 : vector<1x160xf32> to vector<32x160xf32>
    %236 = arith.addf %232, %235 : vector<32x160xf32>
    %cst_83 = arith.constant 0.000000e+00 : f32
    %237 = vector.broadcast %cst_83 : f32 to vector<32x160xf32>
    %238 = arith.maximumf %236, %237 : vector<32x160xf32>
    %239 = vector.extract_strided_slice %228 {offsets = [0, 160, 0], sizes = [1, 160, 160], strides = [1, 1, 1]} : vector<3x320x160xf32> to vector<1x160x160xf32>
    %240 = vector.shape_cast %239 : vector<1x160x160xf32> to vector<160x160xf32>
    %cst_84 = arith.constant dense<0.000000e+00> : vector<32x160xf32>
    %241 = tpu.matmul %238, %240, %cst_84 {dimension_numbers = #tpu.dot_dimension_numbers<[1], [0], [0], [1], [0, 0, 1, 1], [], []>} : vector<32x160xf32>, vector<160x160xf32>, vector<32x160xf32> -> vector<32x160xf32>
    %242 = arith.addf %227, %241 : vector<32x160xf32>
    %243 = vector.extract_strided_slice %229 {offsets = [0, 1, 0, 0], sizes = [1, 1, 1, 160], strides = [1, 1, 1, 1]} : vector<3x2x1x160xf32> to vector<1x1x1x160xf32>
    %244 = vector.shape_cast %243 : vector<1x1x1x160xf32> to vector<1x160xf32>
    %245 = vector.broadcast %244 : vector<1x160xf32> to vector<32x160xf32>
    %246 = arith.addf %242, %245 : vector<32x160xf32>
    %247 = vector.extract_strided_slice %228 {offsets = [1, 0, 0], sizes = [1, 160, 160], strides = [1, 1, 1]} : vector<3x320x160xf32> to vector<1x160x160xf32>
    %248 = vector.shape_cast %247 : vector<1x160x160xf32> to vector<160x160xf32>
    %cst_85 = arith.constant dense<0.000000e+00> : vector<32x160xf32>
    %249 = tpu.matmul %246, %248, %cst_85 {dimension_numbers = #tpu.dot_dimension_numbers<[1], [0], [0], [1], [0, 0, 1, 1], [], []>} : vector<32x160xf32>, vector<160x160xf32>, vector<32x160xf32> -> vector<32x160xf32>
    %250 = vector.extract_strided_slice %229 {offsets = [1, 0, 0, 0], sizes = [1, 1, 1, 160], strides = [1, 1, 1, 1]} : vector<3x2x1x160xf32> to vector<1x1x1x160xf32>
    %251 = vector.shape_cast %250 : vector<1x1x1x160xf32> to vector<1x160xf32>
    %252 = vector.broadcast %251 : vector<1x160xf32> to vector<32x160xf32>
    %253 = arith.addf %249, %252 : vector<32x160xf32>
    %cst_86 = arith.constant 0.000000e+00 : f32
    %254 = vector.broadcast %cst_86 : f32 to vector<32x160xf32>
    %255 = arith.maximumf %253, %254 : vector<32x160xf32>
    %256 = vector.extract_strided_slice %228 {offsets = [1, 160, 0], sizes = [1, 160, 160], strides = [1, 1, 1]} : vector<3x320x160xf32> to vector<1x160x160xf32>
    %257 = vector.shape_cast %256 : vector<1x160x160xf32> to vector<160x160xf32>
    %cst_87 = arith.constant dense<0.000000e+00> : vector<32x160xf32>
    %258 = tpu.matmul %255, %257, %cst_87 {dimension_numbers = #tpu.dot_dimension_numbers<[1], [0], [0], [1], [0, 0, 1, 1], [], []>} : vector<32x160xf32>, vector<160x160xf32>, vector<32x160xf32> -> vector<32x160xf32>
    %259 = arith.addf %246, %258 : vector<32x160xf32>
    %260 = vector.extract_strided_slice %229 {offsets = [1, 1, 0, 0], sizes = [1, 1, 1, 160], strides = [1, 1, 1, 1]} : vector<3x2x1x160xf32> to vector<1x1x1x160xf32>
    %261 = vector.shape_cast %260 : vector<1x1x1x160xf32> to vector<1x160xf32>
    %262 = vector.broadcast %261 : vector<1x160xf32> to vector<32x160xf32>
    %263 = arith.addf %259, %262 : vector<32x160xf32>
    %264 = vector.extract_strided_slice %228 {offsets = [2, 0, 0], sizes = [1, 160, 160], strides = [1, 1, 1]} : vector<3x320x160xf32> to vector<1x160x160xf32>
    %265 = vector.shape_cast %264 : vector<1x160x160xf32> to vector<160x160xf32>
    %cst_88 = arith.constant dense<0.000000e+00> : vector<32x160xf32>
    %266 = tpu.matmul %263, %265, %cst_88 {dimension_numbers = #tpu.dot_dimension_numbers<[1], [0], [0], [1], [0, 0, 1, 1], [], []>} : vector<32x160xf32>, vector<160x160xf32>, vector<32x160xf32> -> vector<32x160xf32>
    %267 = vector.extract_strided_slice %229 {offsets = [2, 0, 0, 0], sizes = [1, 1, 1, 160], strides = [1, 1, 1, 1]} : vector<3x2x1x160xf32> to vector<1x1x1x160xf32>
    %268 = vector.shape_cast %267 : vector<1x1x1x160xf32> to vector<1x160xf32>
    %269 = vector.broadcast %268 : vector<1x160xf32> to vector<32x160xf32>
    %270 = arith.addf %266, %269 : vector<32x160xf32>
    %cst_89 = arith.constant 0.000000e+00 : f32
    %271 = vector.broadcast %cst_89 : f32 to vector<32x160xf32>
    %272 = arith.maximumf %270, %271 : vector<32x160xf32>
    %273 = vector.extract_strided_slice %228 {offsets = [2, 160, 0], sizes = [1, 160, 160], strides = [1, 1, 1]} : vector<3x320x160xf32> to vector<1x160x160xf32>
    %274 = vector.shape_cast %273 : vector<1x160x160xf32> to vector<160x160xf32>
    %cst_90 = arith.constant dense<0.000000e+00> : vector<32x160xf32>
    %275 = tpu.matmul %272, %274, %cst_90 {dimension_numbers = #tpu.dot_dimension_numbers<[1], [0], [0], [1], [0, 0, 1, 1], [], []>} : vector<32x160xf32>, vector<160x160xf32>, vector<32x160xf32> -> vector<32x160xf32>
    %276 = arith.addf %263, %275 : vector<32x160xf32>
    %277 = vector.extract_strided_slice %229 {offsets = [2, 1, 0, 0], sizes = [1, 1, 1, 160], strides = [1, 1, 1, 1]} : vector<3x2x1x160xf32> to vector<1x1x1x160xf32>
    %278 = vector.shape_cast %277 : vector<1x1x1x160xf32> to vector<1x160xf32>
    %279 = vector.broadcast %278 : vector<1x160xf32> to vector<32x160xf32>
    %280 = arith.addf %276, %279 : vector<32x160xf32>
    %c0_91 = arith.constant 0 : index
    %c0_92 = arith.constant 0 : index
    %281 = vector.load %arg17[%c0_91, %c0_92] : memref<4x160xf32, #tpu.memory_space<vmem>>, vector<4x160xf32>
    %cst_93 = arith.constant dense<0.000000e+00> : vector<4x32xf32>
    %282 = tpu.matmul %281, %280, %cst_93 {dimension_numbers = #tpu.dot_dimension_numbers<[1], [1], [0], [0], [0, 0, 1, 0], [], []>} : vector<4x160xf32>, vector<32x160xf32>, vector<4x32xf32> -> vector<4x32xf32>
    %c0_94 = arith.constant 0 : index
    %c0_95 = arith.constant 0 : index
    %283 = vector.load %arg18[%c0_94, %c0_95] : memref<4x1xf32, #tpu.memory_space<vmem>>, vector<4x1xf32>
    %284 = vector.broadcast %283 : vector<4x1xf32> to vector<4x32xf32>
    %285 = arith.addf %282, %284 : vector<4x32xf32>
    %c0_96 = arith.constant 0 : index
    %c0_97 = arith.constant 0 : index
    %286 = vector.load %arg19[%c0_96, %c0_97] : memref<4x32xf32, #tpu.memory_space<vmem>>, vector<4x32xf32>
    tpu.vector_store %arg19[%c0_96, %c0_97], %285 {strides = array<i32>} : memref<4x32xf32, #tpu.memory_space<vmem>>, vector<4x32xf32>,
    return
  }
}

</mosaic_0001>

<llo_original>
// kernel: stgib_forward.1
$region0: #{stgib_forward.1}
  #allocation0 [shape = 'u32[]', space=smem, size = 0x4, offset = 0x4, fixed_abs, tag = 'smem constant byte address 0x4 - core index']
  #allocation1 [shape = 'u32[72,128]{1,0:T(1,128)}', space=vmem, size = 0x9000, scoped, tag = 'internal scratch']
  %s0 = inlined_call_operand.vmem [shape: f32[32,24], index: 0, kind: input, shape index: {}]
  %s1 = inlined_call_operand.vmem [shape: f32[32,32], index: 1, kind: input, shape index: {}]
  %s2 = inlined_call_operand.vmem [shape: f32[16,16], index: 2, kind: input, shape index: {}]
  %s3 = inlined_call_operand.vmem [shape: f32[32,96], index: 3, kind: input, shape index: {}]
  %s4 = inlined_call_operand.vmem [shape: f32[24,64], index: 4, kind: input, shape index: {}]
  %s5 = inlined_call_operand.vmem [shape: f32[2,32,33], index: 5, kind: input, shape index: {}]
  %s6 = inlined_call_operand.vmem [shape: f32[2,2,32], index: 6, kind: input, shape index: {}]
  %s7 = inlined_call_operand.vmem [shape: f32[64,32], index: 7, kind: input, shape index: {}]
  %s8 = inlined_call_operand.vmem [shape: f32[128,32], index: 8, kind: input, shape index: {}]
  %s9 = inlined_call_operand.vmem [shape: f32[2,32,33], index: 9, kind: input, shape index: {}]
  %s10 = inlined_call_operand.vmem [shape: f32[2,2,32], index: 10, kind: input, shape index: {}]
  %s11 = inlined_call_operand.vmem [shape: f32[128,32], index: 11, kind: input, shape index: {}]
  %s12 = inlined_call_operand.vmem [shape: f32[64,32], index: 12, kind: input, shape index: {}]
  %s13 = inlined_call_operand.vmem [shape: f32[1,128], index: 13, kind: input, shape index: {}]
  %s14 = inlined_call_operand.vmem [shape: f32[192,1], index: 14, kind: input, shape index: {}]
  %s15 = inlined_call_operand.vmem [shape: f32[3,320,160], index: 15, kind: input, shape index: {}]
  %s16 = inlined_call_operand.vmem [shape: f32[3,2,1,160], index: 16, kind: input, shape index: {}]
  %s17 = inlined_call_operand.vmem [shape: f32[4,160], index: 17, kind: input, shape index: {}]
  %s18 = inlined_call_operand.vmem [shape: f32[4,1], index: 18, kind: input, shape index: {}]
  %s19 = inlined_call_operand.vmem [shape: f32[4,32], index: 19, kind: output, shape index: {}]
  %s20 = sld [smem:[#allocation0]]
  $region86: #{stgib_forward.1} parent=0
    _
  %s22 = ssub.s32 1, %s20
  %s23 = scalar_select 0, %s22, %s20
  // Predicated region
  $region2: #{stgib_forward.1} parent=0 // pred_check
    _
  $region3: #{stgib_forward.1} parent=0 // pred_check_branch
    %25 = sbr.rel (0) target = $region5
  $region4: #{stgib_forward.1} parent=0 // pred_region
    _
  $region5: #{stgib_forward.1} parent=0 // pred_fallthru
    _
  // Predicated region
  $region6: #{stgib_forward.1} parent=0 // pred_check
    _
  $region7: #{stgib_forward.1} parent=0 // pred_check_branch
    %27 = sbr.rel (0) target = $region9
  $region8: #{stgib_forward.1} parent=0 // pred_region
    _
  $region9: #{stgib_forward.1} parent=0 // pred_fallthru
    _
  // Predicated region
  $region10: #{stgib_forward.1} parent=0 // pred_check
    _
  $region11: #{stgib_forward.1} parent=0 // pred_check_branch
    %29 = sbr.rel (0) target = $region13
  $region12: #{stgib_forward.1} parent=0 // pred_region
    _
  $region13: #{stgib_forward.1} parent=0 // pred_fallthru
    _
  // Predicated region
  $region14: #{stgib_forward.1} parent=0 // pred_check
    _
  $region15: #{stgib_forward.1} parent=0 // pred_check_branch
    %31 = sbr.rel (0) target = $region17
  $region16: #{stgib_forward.1} parent=0 // pred_region
    _
  $region17: #{stgib_forward.1} parent=0 // pred_fallthru
    _
  // Predicated region
  $region18: #{stgib_forward.1} parent=0 // pred_check
    _
  $region19: #{stgib_forward.1} parent=0 // pred_check_branch
    %33 = sbr.rel (0) target = $region21
  $region20: #{stgib_forward.1} parent=0 // pred_region
    _
  $region21: #{stgib_forward.1} parent=0 // pred_fallthru
    _
  // Predicated region
  $region22: #{stgib_forward.1} parent=0 // pred_check
    _
  $region23: #{stgib_forward.1} parent=0 // pred_check_branch
    %35 = sbr.rel (0) target = $region25
  $region24: #{stgib_forward.1} parent=0 // pred_region
    _
  $region25: #{stgib_forward.1} parent=0 // pred_fallthru
    _
  // Predicated region
  $region26: #{stgib_forward.1} parent=0 // pred_check
    _
  $region27: #{stgib_forward.1} parent=0 // pred_check_branch
    %37 = sbr.rel (0) target = $region29
  $region28: #{stgib_forward.1} parent=0 // pred_region
    _
  $region29: #{stgib_forward.1} parent=0 // pred_fallthru
    _
  // Predicated region
  $region30: #{stgib_forward.1} parent=0 // pred_check
    _
  $region31: #{stgib_forward.1} parent=0 // pred_check_branch
    %39 = sbr.rel (0) target = $region33
  $region32: #{stgib_forward.1} parent=0 // pred_region
    _
  $region33: #{stgib_forward.1} parent=0 // pred_fallthru
    _
  // Predicated region
  $region34: #{stgib_forward.1} parent=0 // pred_check
    _
  $region35: #{stgib_forward.1} parent=0 // pred_check_branch
    %41 = sbr.rel (0) target = $region37
  $region36: #{stgib_forward.1} parent=0 // pred_region
    _
  $region37: #{stgib_forward.1} parent=0 // pred_fallthru
    _
  // Predicated region
  $region38: #{stgib_forward.1} parent=0 // pred_check
    _
  $region39: #{stgib_forward.1} parent=0 // pred_check_branch
    %43 = sbr.rel (0) target = $region41
  $region40: #{stgib_forward.1} parent=0 // pred_region
    _
  $region41: #{stgib_forward.1} parent=0 // pred_fallthru
    _
  // Predicated region
  $region42: #{stgib_forward.1} parent=0 // pred_check
    _
  $region43: #{stgib_forward.1} parent=0 // pred_check_branch
    %45 = sbr.rel (0) target = $region45
  $region44: #{stgib_forward.1} parent=0 // pred_region
    _
  $region45: #{stgib_forward.1} parent=0 // pred_fallthru
    _
  // Predicated region
  $region46: #{stgib_forward.1} parent=0 // pred_check
    _
  $region47: #{stgib_forward.1} parent=0 // pred_check_branch
    %47 = sbr.rel (0) target = $region49
  $region48: #{stgib_forward.1} parent=0 // pred_region
    _
  $region49: #{stgib_forward.1} parent=0 // pred_fallthru
    _
  // Predicated region
  $region50: #{stgib_forward.1} parent=0 // pred_check
    _
  $region51: #{stgib_forward.1} parent=0 // pred_check_branch
    %49 = sbr.rel (0) target = $region53
  $region52: #{stgib_forward.1} parent=0 // pred_region
    _
  $region53: #{stgib_forward.1} parent=0 // pred_fallthru
    _
  // Predicated region
  $region54: #{stgib_forward.1} parent=0 // pred_check
    _
  $region55: #{stgib_forward.1} parent=0 // pred_check_branch
    %51 = sbr.rel (0) target = $region57
  $region56: #{stgib_forward.1} parent=0 // pred_region
    _
  $region57: #{stgib_forward.1} parent=0 // pred_fallthru
    _
  // Predicated region
  $region58: #{stgib_forward.1} parent=0 // pred_check
    _
  $region59: #{stgib_forward.1} parent=0 // pred_check_branch
    %53 = sbr.rel (0) target = $region61
  $region60: #{stgib_forward.1} parent=0 // pred_region
    _
  $region61: #{stgib_forward.1} parent=0 // pred_fallthru
    _
  // Predicated region
  $region62: #{stgib_forward.1} parent=0 // pred_check
    _
  $region63: #{stgib_forward.1} parent=0 // pred_check_branch
    %55 = sbr.rel (0) target = $region65
  $region64: #{stgib_forward.1} parent=0 // pred_region
    _
  $region65: #{stgib_forward.1} parent=0 // pred_fallthru
    _
  // Predicated region
  $region66: #{stgib_forward.1} parent=0 // pred_check
    _
  $region67: #{stgib_forward.1} parent=0 // pred_check_branch
    %57 = sbr.rel (0) target = $region69
  $region68: #{stgib_forward.1} parent=0 // pred_region
    _
  $region69: #{stgib_forward.1} parent=0 // pred_fallthru
    _
  // Predicated region
  $region70: #{stgib_forward.1} parent=0 // pred_check
    _
  $region71: #{stgib_forward.1} parent=0 // pred_check_branch
    %59 = sbr.rel (0) target = $region73
  $region72: #{stgib_forward.1} parent=0 // pred_region
    _
  $region73: #{stgib_forward.1} parent=0 // pred_fallthru
    _
  // Predicated region
  $region74: #{stgib_forward.1} parent=0 // pred_check
    _
  $region75: #{stgib_forward.1} parent=0 // pred_check_branch
    %61 = sbr.rel (0) target = $region77
  $region76: #{stgib_forward.1} parent=0 // pred_region
    _
  $region77: #{stgib_forward.1} parent=0 // pred_fallthru
    _
  %v62 = vld [vmem:[%s13] sm:$0x1]
  %v63 = vld [vmem:[%s14] sm:$0xff]
  %v64 = vld [vmem:[%s14 + $0x8] sm:$0xff]
  %v65 = vld [vmem:[%s14 + $0x10] sm:$0xff]
  %v66 = vld [vmem:[%s14 + $0x18] sm:$0xff]
  %v67 = vld [vmem:[%s14 + $0x20] sm:$0xff]
  %v68 = vld [vmem:[%s14 + $0x28] sm:$0xff]
  %v69 = vld [vmem:[%s14 + $0x30] sm:$0xff]
  %v70 = vld [vmem:[%s14 + $0x38] sm:$0xff]
  %v71 = vld [vmem:[%s14 + $0x40] sm:$0xff]
  %v72 = vld [vmem:[%s14 + $0x48] sm:$0xff]
  %v73 = vld [vmem:[%s14 + $0x50] sm:$0xff]
  %v74 = vld [vmem:[%s14 + $0x58] sm:$0xff]
  %v75 = vld [vmem:[%s14 + $0x60] sm:$0xff]
  %v76 = vld [vmem:[%s14 + $0x68] sm:$0xff]
  %v77 = vld [vmem:[%s14 + $0x70] sm:$0xff]
  %v78 = vld [vmem:[%s14 + $0x78] sm:$0xff]
  %v79 = vld [vmem:[%s14 + $0x80] sm:$0xff]
  %v80 = vld [vmem:[%s14 + $0x88] sm:$0xff]
  %v81 = vld [vmem:[%s14 + $0x90] sm:$0xff]
  %v82 = vld [vmem:[%s14 + $0x98] sm:$0xff]
  %v83 = vld [vmem:[%s14 + $0xa0] sm:$0xff]
  %v84 = vld [vmem:[%s14 + $0xa8] sm:$0xff]
  %v85 = vld [vmem:[%s14 + $0xb0] sm:$0xff]
  %v86 = vld [vmem:[%s14 + $0xb8] sm:$0xff]
  %v87 = vld [vmem:[%s0] sm:$0xff]
  %v88 = vld [vmem:[%s0 + $0x8] sm:$0xff]
  %v89 = vld [vmem:[%s0 + $0x10] sm:$0xff]
  %v90 = vld [vmem:[%s0 + $0x18] sm:$0xff]
  %v91 = vld [vmem:[%s4] sm:$0xff]
  %v92 = vld [vmem:[%s4 + $0x8] sm:$0xff]
  %v93 = vld [vmem:[%s4 + $0x10] sm:$0xff]
  %v95 = vperm.slane %v62, 0
  %vm97 = vcmask 195584
  %v99 = vsel %vm97, %v87, 0
  %v102 = vsel %vm97, %v88, 0
  %v105 = vsel %vm97, %v89, 0
  %v108 = vsel %vm97, %v90, 0
  %110 = vmatpush.msra.mxu0 0.0
  %111 = vmatpush.msra.mxu0 0.0
  %112 = vmatpush.msra.mxu0 0.0
  %113 = vmatpush.msra.mxu0 0.0
  %114 = vmatpush.msra.mxu0 0.0
  %115 = vmatpush.msra.mxu0 0.0
  %116 = vmatpush.msra.mxu0 0.0
  %117 = vmatpush.msra.mxu0 0.0
  %118 = vmatpush.msra.mxu0 0.0
  %119 = vmatpush.msra.mxu0 0.0
  %120 = vmatpush.msra.mxu0 0.0
  %121 = vmatpush.msra.mxu0 0.0
  %122 = vmatpush.msra.mxu0 0.0
  %123 = vmatpush.msra.mxu0 %v93
  %124 = vmatpush.msra.mxu0 %v92
  %125 = vmatpush.msra.mxu0 %v91
  %126 = vmatmul.f32.gmra.mxu0 %v99
  %v127 = vpop.f32.mrf.mxu0
  %v128 = vadd.f32 %v95, %v127
  %129 = vmatmul.f32.gmra.mxu0 %v102
  %v130 = vpop.f32.mrf.mxu0
  %v131 = vadd.f32 %v95, %v130
  %132 = vmatmul.f32.gmra.mxu0 %v105
  %v133 = vpop.f32.mrf.mxu0
  %v134 = vadd.f32 %v95, %v133
  %135 = vmatmul.f32.gmra.mxu0 %v108
  %v136 = vpop.f32.mrf.mxu0
  %v137 = vadd.f32 %v95, %v136
  %138 = vdwg.mxu0
  %v139 = vld [vmem:[%s1] sm:$0xff]
  %v140 = vld [vmem:[%s1 + $0x8] sm:$0xff]
  %v141 = vld [vmem:[%s1 + $0x10] sm:$0xff]
  %v142 = vld [vmem:[%s1 + $0x18] sm:$0xff]
  %v143 = vld [vmem:[%s5] sm:$0xff]
  %v144 = vld [vmem:[%s5 + $0x8] sm:$0xff]
  %v145 = vld [vmem:[%s5 + $0x10] sm:$0xff]
  %v146 = vld [vmem:[%s5 + $0x18] sm:$0xff]
  %v147 = vld [vmem:[%s5 + $0x20] sm:$0xff]
  %v148 = vld [vmem:[%s5 + $0x28] sm:$0xff]
  %v149 = vld [vmem:[%s5 + $0x30] sm:$0xff]
  %v150 = vld [vmem:[%s5 + $0x38] sm:$0xff]
  %v151 = vld [vmem:[%s6] sm:$0x3]
  %v152 = vld [vmem:[%s6 + $0x2] sm:$0x3]
  %vm153 = vcmask 261120
  %v155 = vsel %vm153, %v128, 0
  %v158 = vsel %vm153, %v131, 0
  %v161 = vsel %vm153, %v134, 0
  %v164 = vsel %vm153, %v137, 0
  %166 = vmatpush.msra.mxu0 0.0
  %167 = vmatpush.msra.mxu0 0.0
  %168 = vmatpush.msra.mxu0 0.0
  %169 = vmatpush.msra.mxu0 0.0
  %170 = vmatpush.msra.mxu0 0.0
  %171 = vmatpush.msra.mxu0 0.0
  %172 = vmatpush.msra.mxu0 0.0
  %173 = vmatpush.msra.mxu0 0.0
  %174 = vmatpush.msra.mxu0 0.0
  %175 = vmatpush.msra.mxu0 0.0
  %176 = vmatpush.msra.mxu0 0.0
  %177 = vmatpush.msra.mxu0 0.0
  %178 = vmatpush.msra.mxu0 %v146
  %179 = vmatpush.msra.mxu0 %v145
  %180 = vmatpush.msra.mxu0 %v144
  %181 = vmatpush.msra.mxu0 %v143
  %182 = vmatmul.f32.gmra.mxu0 %v155
  %v183 = vpop.f32.mrf.mxu0
  %v184 = vadd.f32 0.0, %v183
  %185 = vmatmul.f32.gmra.mxu0 %v158
  %v186 = vpop.f32.mrf.mxu0
  %v187 = vadd.f32 0.0, %v186
  %188 = vmatmul.f32.gmra.mxu0 %v161
  %v189 = vpop.f32.mrf.mxu0
  %v190 = vadd.f32 0.0, %v189
  %191 = vmatmul.f32.gmra.mxu0 %v164
  %v192 = vpop.f32.mrf.mxu0
  %v193 = vadd.f32 0.0, %v192
  %194 = vdwg.mxu0
  %v196 = vsel %vm153, %v151, 0
  %v199 = vsel %vm153, %v184, 0
  %v202 = vsel %vm153, %v187, 0
  %v205 = vsel %vm153, %v190, 0
  %v208 = vsel %vm153, %v193, 0
  %210 = vmatpush.xpose.msra.mxu0 0.0
  %211 = vmatpush.xpose.msra.mxu0 0.0
  %212 = vmatpush.xpose.msra.mxu0 0.0
  %213 = vmatpush.xpose.msra.mxu0 0.0
  %214 = vmatpush.xpose.msra.mxu0 0.0
  %215 = vmatpush.xpose.msra.mxu0 0.0
  %216 = vmatpush.xpose.msra.mxu0 0.0
  %217 = vmatpush.xpose.msra.mxu0 0.0
  %218 = vmatpush.xpose.msra.mxu0 0.0
  %219 = vmatpush.xpose.msra.mxu0 0.0
  %220 = vmatpush.xpose.msra.mxu0 0.0
  %221 = vmatpush.xpose.msra.mxu0 0.0
  %222 = vmatpush.xpose.msra.mxu0 %v208
  %223 = vmatpush.xpose.msra.mxu0 %v205
  %224 = vmatpush.xpose.msra.mxu0 %v202
  %225 = vmatpush.xpose.msra.mxu0 %v199
  %226 = vmatmul.f32.gmra.mxu0 %v196
  %v227 = vpop.f32.mrf.mxu0
  %v228 = vadd.f32 0.0, %v227
  %229 = vdwg.mxu0
  %230 = vset.pattern.permute.xlu0 32
  %231 = vperm.xlu0 %230, %v184
  %v232 = vpop.permute.xlu0 %231
  %234 = vset.pattern.permute.xlu0 32
  %235 = vperm.xlu0 %234, %v187
  %v236 = vpop.permute.xlu0 %235
  %238 = vset.pattern.permute.xlu0 32
  %239 = vperm.xlu0 %238, %v190
  %v240 = vpop.permute.xlu0 %239
  %242 = vset.pattern.permute.xlu0 32
  %243 = vperm.xlu0 %242, %v193
  %v244 = vpop.permute.xlu0 %243
  %v246 = vperm.slane %v228, 0
  %v247 = vadd.f32 %v232, %v246
  %v248 = vadd.f32 %v236, %v246
  %v249 = vadd.f32 %v240, %v246
  %v250 = vadd.f32 %v244, %v246
  %vm251 = vcmp.gt.f32.partialorder %v247, 0.0
  %vm252 = vcmp.gt.f32.partialorder %v248, 0.0
  %vm253 = vcmp.gt.f32.partialorder %v249, 0.0
  %vm254 = vcmp.gt.f32.partialorder %v250, 0.0
  %v255 = vmul.f32 %v247, 0.2
  %v256 = vmul.f32 %v248, 0.2
  %v257 = vmul.f32 %v249, 0.2
  %v258 = vmul.f32 %v250, 0.2
  %v259 = vsel %vm251, %v247, %v255
  %v260 = vsel %vm252, %v248, %v256
  %v261 = vsel %vm253, %v249, %v257
  %v262 = vsel %vm254, %v250, %v258
  %v263 = vsel %vm153, %v259, -inf
  %264 = vmax.xlane.f32.xlu0 %v263
  %v265 = vpop.xlane.xlu0 %264
  %v266 = vsel %vm153, %v260, -inf
  %267 = vmax.xlane.f32.xlu0 %v266
  %v268 = vpop.xlane.xlu0 %267
  %v269 = vsel %vm153, %v261, -inf
  %270 = vmax.xlane.f32.xlu0 %v269
  %v271 = vpop.xlane.xlu0 %270
  %v272 = vsel %vm153, %v262, -inf
  %273 = vmax.xlane.f32.xlu0 %v272
  %v274 = vpop.xlane.xlu0 %273
  %v275 = vsub.f32 %v259, %v265
  %v276 = vsub.f32 %v260, %v268
  %v277 = vsub.f32 %v261, %v271
  %v278 = vsub.f32 %v262, %v274
  %v279 = vmul.f32 %v275, 1.442695
  %v280 = vpow.pop %v279
  %v281 = vmul.f32 %v276, 1.442695
  %v282 = vpow.pop %v281
  %v283 = vmul.f32 %v277, 1.442695
  %v284 = vpow.pop %v283
  %v285 = vmul.f32 %v278, 1.442695
  %v286 = vpow.pop %v285
  %v287 = vmul.f32 %v280, %v139
  %v288 = vmul.f32 %v282, %v140
  %v289 = vmul.f32 %v284, %v141
  %v290 = vmul.f32 %v286, %v142
  %v291 = vsel %vm153, %v287, 0.0
  %292 = vadd.xlane.f32.xlu0 %v291
  %v293 = vpop.xlane.xlu0 %292
  %v294 = vsel %vm153, %v288, 0.0
  %295 = vadd.xlane.f32.xlu0 %v294
  %v296 = vpop.xlane.xlu0 %295
  %v297 = vsel %vm153, %v289, 0.0
  %298 = vadd.xlane.f32.xlu0 %v297
  %v299 = vpop.xlane.xlu0 %298
  %v300 = vsel %vm153, %v290, 0.0
  %301 = vadd.xlane.f32.xlu0 %v300
  %v302 = vpop.xlane.xlu0 %301
  %v303 = vmax.f32 %v293, 1e-20
  %v304 = vmax.f32 %v296, 1e-20
  %v305 = vmax.f32 %v299, 1e-20
  %v306 = vmax.f32 %v302, 1e-20
  %v307 = vrcp.pop %v303
  %v308 = vrcp.pop %v304
  %v309 = vrcp.pop %v305
  %v310 = vrcp.pop %v306
  %v311 = vmul.f32 %v287, %v307
  %v312 = vmul.f32 %v288, %v308
  %v313 = vmul.f32 %v289, %v309
  %v314 = vmul.f32 %v290, %v310
  %v315 = vperm.slane %v151, 1
  %v317 = vsel %vm153, %v311, 0
  %v320 = vsel %vm153, %v312, 0
  %v323 = vsel %vm153, %v313, 0
  %v326 = vsel %vm153, %v314, 0
  %328 = vmatpush.msra.mxu0 0.0
  %329 = vmatpush.msra.mxu0 0.0
  %330 = vmatpush.msra.mxu0 0.0
  %331 = vmatpush.msra.mxu0 0.0
  %332 = vmatpush.msra.mxu0 0.0
  %333 = vmatpush.msra.mxu0 0.0
  %334 = vmatpush.msra.mxu0 0.0
  %335 = vmatpush.msra.mxu0 0.0
  %336 = vmatpush.msra.mxu0 0.0
  %337 = vmatpush.msra.mxu0 0.0
  %338 = vmatpush.msra.mxu0 0.0
  %339 = vmatpush.msra.mxu0 0.0
  %340 = vmatpush.msra.mxu0 %v193
  %341 = vmatpush.msra.mxu0 %v190
  %342 = vmatpush.msra.mxu0 %v187
  %343 = vmatpush.msra.mxu0 %v184
  %344 = vmatmul.f32.gmra.mxu0 %v317
  %v345 = vpop.f32.mrf.mxu0
  %v346 = vadd.f32 %v315, %v345
  %347 = vmatmul.f32.gmra.mxu0 %v320
  %v348 = vpop.f32.mrf.mxu0
  %v349 = vadd.f32 %v315, %v348
  %350 = vmatmul.f32.gmra.mxu0 %v323
  %v351 = vpop.f32.mrf.mxu0
  %v352 = vadd.f32 %v315, %v351
  %353 = vmatmul.f32.gmra.mxu0 %v326
  %v354 = vpop.f32.mrf.mxu0
  %v355 = vadd.f32 %v315, %v354
  %356 = vdwg.mxu0
  %vm357 = vcmp.gt.f32.partialorder %v346, 0.0
  %vm358 = vcmp.gt.f32.partialorder %v349, 0.0
  %vm359 = vcmp.gt.f32.partialorder %v352, 0.0
  %vm360 = vcmp.gt.f32.partialorder %v355, 0.0
  %v361 = vmin.f32 %v346, 0.0
  %v362 = vmin.f32 %v349, 0.0
  %v363 = vmin.f32 %v352, 0.0
  %v364 = vmin.f32 %v355, 0.0
  %v365 = vmul.f32 %v361, 1.442695
  %v366 = vpow.pop %v365
  %v367 = vmul.f32 %v362, 1.442695
  %v368 = vpow.pop %v367
  %v369 = vmul.f32 %v363, 1.442695
  %v370 = vpow.pop %v369
  %v371 = vmul.f32 %v364, 1.442695
  %v372 = vpow.pop %v371
  %v373 = vsub.f32 %v366, 1.0
  %v374 = vsub.f32 %v368, 1.0
  %v375 = vsub.f32 %v370, 1.0
  %v376 = vsub.f32 %v372, 1.0
  %v377 = vsel %vm357, %v346, %v373
  %v378 = vsel %vm358, %v349, %v374
  %v379 = vsel %vm359, %v352, %v375
  %v380 = vsel %vm360, %v355, %v376
  %v382 = vsel %vm153, %v377, 0
  %v385 = vsel %vm153, %v378, 0
  %v388 = vsel %vm153, %v379, 0
  %v391 = vsel %vm153, %v380, 0
  %393 = vmatpush.msra.mxu0 0.0
  %394 = vmatpush.msra.mxu0 0.0
  %395 = vmatpush.msra.mxu0 0.0
  %396 = vmatpush.msra.mxu0 0.0
  %397 = vmatpush.msra.mxu0 0.0
  %398 = vmatpush.msra.mxu0 0.0
  %399 = vmatpush.msra.mxu0 0.0
  %400 = vmatpush.msra.mxu0 0.0
  %401 = vmatpush.msra.mxu0 0.0
  %402 = vmatpush.msra.mxu0 0.0
  %403 = vmatpush.msra.mxu0 0.0
  %404 = vmatpush.msra.mxu0 0.0
  %405 = vmatpush.msra.mxu0 %v150
  %406 = vmatpush.msra.mxu0 %v149
  %407 = vmatpush.msra.mxu0 %v148
  %408 = vmatpush.msra.mxu0 %v147
  %409 = vmatmul.f32.gmra.mxu0 %v382
  %v410 = vpop.f32.mrf.mxu0
  %v411 = vadd.f32 0.0, %v410
  %412 = vmatmul.f32.gmra.mxu0 %v385
  %v413 = vpop.f32.mrf.mxu0
  %v414 = vadd.f32 0.0, %v413
  %415 = vmatmul.f32.gmra.mxu0 %v388
  %v416 = vpop.f32.mrf.mxu0
  %v417 = vadd.f32 0.0, %v416
  %418 = vmatmul.f32.gmra.mxu0 %v391
  %v419 = vpop.f32.mrf.mxu0
  %v420 = vadd.f32 0.0, %v419
  %421 = vdwg.mxu0
  %v423 = vsel %vm153, %v152, 0
  %v426 = vsel %vm153, %v411, 0
  %v429 = vsel %vm153, %v414, 0
  %v432 = vsel %vm153, %v417, 0
  %v435 = vsel %vm153, %v420, 0
  %437 = vmatpush.xpose.msra.mxu0 0.0
  %438 = vmatpush.xpose.msra.mxu0 0.0
  %439 = vmatpush.xpose.msra.mxu0 0.0
  %440 = vmatpush.xpose.msra.mxu0 0.0
  %441 = vmatpush.xpose.msra.mxu0 0.0
  %442 = vmatpush.xpose.msra.mxu0 0.0
  %443 = vmatpush.xpose.msra.mxu0 0.0
  %444 = vmatpush.xpose.msra.mxu0 0.0
  %445 = vmatpush.xpose.msra.mxu0 0.0
  %446 = vmatpush.xpose.msra.mxu0 0.0
  %447 = vmatpush.xpose.msra.mxu0 0.0
  %448 = vmatpush.xpose.msra.mxu0 0.0
  %449 = vmatpush.xpose.msra.mxu0 %v435
  %450 = vmatpush.xpose.msra.mxu0 %v432
  %451 = vmatpush.xpose.msra.mxu0 %v429
  %452 = vmatpush.xpose.msra.mxu0 %v426
  %453 = vmatmul.f32.gmra.mxu0 %v423
  %v454 = vpop.f32.mrf.mxu0
  %v455 = vadd.f32 0.0, %v454
  %456 = vdwg.mxu0
  %457 = vset.pattern.permute.xlu0 32
  %458 = vperm.xlu0 %457, %v411
  %v459 = vpop.permute.xlu0 %458
  %461 = vset.pattern.permute.xlu0 32
  %462 = vperm.xlu0 %461, %v414
  %v463 = vpop.permute.xlu0 %462
  %465 = vset.pattern.permute.xlu0 32
  %466 = vperm.xlu0 %465, %v417
  %v467 = vpop.permute.xlu0 %466
  %469 = vset.pattern.permute.xlu0 32
  %470 = vperm.xlu0 %469, %v420
  %v471 = vpop.permute.xlu0 %470
  %v473 = vperm.slane %v455, 0
  %v474 = vadd.f32 %v459, %v473
  %v475 = vadd.f32 %v463, %v473
  %v476 = vadd.f32 %v467, %v473
  %v477 = vadd.f32 %v471, %v473
  %vm478 = vcmp.gt.f32.partialorder %v474, 0.0
  %vm479 = vcmp.gt.f32.partialorder %v475, 0.0
  %vm480 = vcmp.gt.f32.partialorder %v476, 0.0
  %vm481 = vcmp.gt.f32.partialorder %v477, 0.0
  %v482 = vmul.f32 %v474, 0.2
  %v483 = vmul.f32 %v475, 0.2
  %v484 = vmul.f32 %v476, 0.2
  %v485 = vmul.f32 %v477, 0.2
  %v486 = vsel %vm478, %v474, %v482
  %v487 = vsel %vm479, %v475, %v483
  %v488 = vsel %vm480, %v476, %v484
  %v489 = vsel %vm481, %v477, %v485
  %v490 = vsel %vm153, %v486, -inf
  %491 = vmax.xlane.f32.xlu0 %v490
  %v492 = vpop.xlane.xlu0 %491
  %v493 = vsel %vm153, %v487, -inf
  %494 = vmax.xlane.f32.xlu0 %v493
  %v495 = vpop.xlane.xlu0 %494
  %v496 = vsel %vm153, %v488, -inf
  %497 = vmax.xlane.f32.xlu0 %v496
  %v498 = vpop.xlane.xlu0 %497
  %v499 = vsel %vm153, %v489, -inf
  %500 = vmax.xlane.f32.xlu0 %v499
  %v501 = vpop.xlane.xlu0 %500
  %v502 = vsub.f32 %v486, %v492
  %v503 = vsub.f32 %v487, %v495
  %v504 = vsub.f32 %v488, %v498
  %v505 = vsub.f32 %v489, %v501
  %v506 = vmul.f32 %v502, 1.442695
  %v507 = vpow.pop %v506
  %v508 = vmul.f32 %v503, 1.442695
  %v509 = vpow.pop %v508
  %v510 = vmul.f32 %v504, 1.442695
  %v511 = vpow.pop %v510
  %v512 = vmul.f32 %v505, 1.442695
  %v513 = vpow.pop %v512
  %v514 = vmul.f32 %v507, %v139
  %v515 = vmul.f32 %v509, %v140
  %v516 = vmul.f32 %v511, %v141
  %v517 = vmul.f32 %v513, %v142
  %v518 = vsel %vm153, %v514, 0.0
  %519 = vadd.xlane.f32.xlu0 %v518
  %v520 = vpop.xlane.xlu0 %519
  %v521 = vsel %vm153, %v515, 0.0
  %522 = vadd.xlane.f32.xlu0 %v521
  %v523 = vpop.xlane.xlu0 %522
  %v524 = vsel %vm153, %v516, 0.0
  %525 = vadd.xlane.f32.xlu0 %v524
  %v526 = vpop.xlane.xlu0 %525
  %v527 = vsel %vm153, %v517, 0.0
  %528 = vadd.xlane.f32.xlu0 %v527
  %v529 = vpop.xlane.xlu0 %528
  %v530 = vmax.f32 %v520, 1e-20
  %v531 = vmax.f32 %v523, 1e-20
  %v532 = vmax.f32 %v526, 1e-20
  %v533 = vmax.f32 %v529, 1e-20
  %v534 = vrcp.pop %v530
  %v535 = vrcp.pop %v531
  %v536 = vrcp.pop %v532
  %v537 = vrcp.pop %v533
  %v538 = vmul.f32 %v514, %v534
  %v539 = vmul.f32 %v515, %v535
  %v540 = vmul.f32 %v516, %v536
  %v541 = vmul.f32 %v517, %v537
  %v542 = vperm.slane %v152, 1
  %v544 = vsel %vm153, %v538, 0
  %v547 = vsel %vm153, %v539, 0
  %v550 = vsel %vm153, %v540, 0
  %v553 = vsel %vm153, %v541, 0
  %555 = vmatpush.msra.mxu0 0.0
  %556 = vmatpush.msra.mxu0 0.0
  %557 = vmatpush.msra.mxu0 0.0
  %558 = vmatpush.msra.mxu0 0.0
  %559 = vmatpush.msra.mxu0 0.0
  %560 = vmatpush.msra.mxu0 0.0
  %561 = vmatpush.msra.mxu0 0.0
  %562 = vmatpush.msra.mxu0 0.0
  %563 = vmatpush.msra.mxu0 0.0
  %564 = vmatpush.msra.mxu0 0.0
  %565 = vmatpush.msra.mxu0 0.0
  %566 = vmatpush.msra.mxu0 0.0
  %567 = vmatpush.msra.mxu0 %v420
  %568 = vmatpush.msra.mxu0 %v417
  %569 = vmatpush.msra.mxu0 %v414
  %570 = vmatpush.msra.mxu0 %v411
  %571 = vmatmul.f32.gmra.mxu0 %v544
  %v572 = vpop.f32.mrf.mxu0
  %v573 = vadd.f32 %v542, %v572
  %574 = vmatmul.f32.gmra.mxu0 %v547
  %v575 = vpop.f32.mrf.mxu0
  %v576 = vadd.f32 %v542, %v575
  %577 = vmatmul.f32.gmra.mxu0 %v550
  %v578 = vpop.f32.mrf.mxu0
  %v579 = vadd.f32 %v542, %v578
  %580 = vmatmul.f32.gmra.mxu0 %v553
  %v581 = vpop.f32.mrf.mxu0
  %v582 = vadd.f32 %v542, %v581
  %583 = vdwg.mxu0
  %v584 = vld [vmem:[%s7] sm:$0xff]
  %v585 = vld [vmem:[%s7 + $0x8] sm:$0xff]
  %v586 = vld [vmem:[%s7 + $0x10] sm:$0xff]
  %v587 = vld [vmem:[%s7 + $0x18] sm:$0xff]
  %v588 = vld [vmem:[%s7 + $0x20] sm:$0xff]
  %v589 = vld [vmem:[%s7 + $0x28] sm:$0xff]
  %v590 = vld [vmem:[%s7 + $0x30] sm:$0xff]
  %v591 = vld [vmem:[%s7 + $0x38] sm:$0xff]
  %593 = vset.pattern.permute.xlu0 0
  %594 = vperm.xlu0 %593, %v63
  %v595 = vpop.permute.xlu0 %594
  %598 = vset.pattern.permute.xlu0 0
  %599 = vperm.xlu0 %598, %v64
  %v600 = vpop.permute.xlu0 %599
  %603 = vset.pattern.permute.xlu0 0
  %604 = vperm.xlu0 %603, %v65
  %v605 = vpop.permute.xlu0 %604
  %608 = vset.pattern.permute.xlu0 0
  %609 = vperm.xlu0 %608, %v66
  %v610 = vpop.permute.xlu0 %609
  %613 = vset.pattern.permute.xlu0 0
  %614 = vperm.xlu0 %613, %v67
  %v615 = vpop.permute.xlu0 %614
  %618 = vset.pattern.permute.xlu0 0
  %619 = vperm.xlu0 %618, %v68
  %v620 = vpop.permute.xlu0 %619
  %623 = vset.pattern.permute.xlu0 0
  %624 = vperm.xlu0 %623, %v69
  %v625 = vpop.permute.xlu0 %624
  %628 = vset.pattern.permute.xlu0 0
  %629 = vperm.xlu0 %628, %v70
  %v630 = vpop.permute.xlu0 %629
  %v633 = vsel %vm153, %v584, 0
  %v636 = vsel %vm153, %v585, 0
  %v639 = vsel %vm153, %v586, 0
  %v642 = vsel %vm153, %v587, 0
  %v645 = vsel %vm153, %v588, 0
  %v648 = vsel %vm153, %v589, 0
  %v651 = vsel %vm153, %v590, 0
  %v654 = vsel %vm153, %v591, 0
  %v657 = vsel %vm153, %v573, 0
  %v660 = vsel %vm153, %v576, 0
  %v663 = vsel %vm153, %v579, 0
  %v666 = vsel %vm153, %v582, 0
  %668 = vmatpush.xpose.msra.mxu0 0.0
  %669 = vmatpush.xpose.msra.mxu0 0.0
  %670 = vmatpush.xpose.msra.mxu0 0.0
  %671 = vmatpush.xpose.msra.mxu0 0.0
  %672 = vmatpush.xpose.msra.mxu0 0.0
  %673 = vmatpush.xpose.msra.mxu0 0.0
  %674 = vmatpush.xpose.msra.mxu0 0.0
  %675 = vmatpush.xpose.msra.mxu0 0.0
  %676 = vmatpush.xpose.msra.mxu0 0.0
  %677 = vmatpush.xpose.msra.mxu0 0.0
  %678 = vmatpush.xpose.msra.mxu0 0.0
  %679 = vmatpush.xpose.msra.mxu0 0.0
  %680 = vmatpush.xpose.msra.mxu0 %v666
  %681 = vmatpush.xpose.msra.mxu0 %v663
  %682 = vmatpush.xpose.msra.mxu0 %v660
  %683 = vmatpush.xpose.msra.mxu0 %v657
  %684 = vmatmul.f32.gmra.mxu0 %v633
  %v685 = vpop.f32.mrf.mxu0
  %v686 = vadd.f32 %v595, %v685
  %687 = vmatmul.f32.gmra.mxu0 %v636
  %v688 = vpop.f32.mrf.mxu0
  %v689 = vadd.f32 %v600, %v688
  %690 = vmatmul.f32.gmra.mxu0 %v639
  %v691 = vpop.f32.mrf.mxu0
  %v692 = vadd.f32 %v605, %v691
  %693 = vmatmul.f32.gmra.mxu0 %v642
  %v694 = vpop.f32.mrf.mxu0
  %v695 = vadd.f32 %v610, %v694
  %696 = vmatmul.f32.gmra.mxu0 %v645
  %v697 = vpop.f32.mrf.mxu0
  %v698 = vadd.f32 %v615, %v697
  %699 = vmatmul.f32.gmra.mxu0 %v648
  %v700 = vpop.f32.mrf.mxu0
  %v701 = vadd.f32 %v620, %v700
  %702 = vmatmul.f32.gmra.mxu0 %v651
  %v703 = vpop.f32.mrf.mxu0
  %v704 = vadd.f32 %v625, %v703
  %705 = vmatmul.f32.gmra.mxu0 %v654
  %v706 = vpop.f32.mrf.mxu0
  %v707 = vadd.f32 %v630, %v706
  %708 = vdwg.mxu0
  %710 = vrot.lane.b32.xlu0 %v689, 16
  %v711 = vpop.permute.xlu0 %710
  %714 = vrot.lane.b32.xlu0 %v692, 32
  %v715 = vpop.permute.xlu0 %714
  %718 = vrot.lane.b32.xlu0 %v695, 48
  %v719 = vpop.permute.xlu0 %718
  %722 = vrot.lane.b32.xlu0 %v698, 64
  %v723 = vpop.permute.xlu0 %722
  %726 = vrot.lane.b32.xlu0 %v701, 80
  %v727 = vpop.permute.xlu0 %726
  %730 = vrot.lane.b32.xlu0 %v704, 96
  %v731 = vpop.permute.xlu0 %730
  %734 = vrot.lane.b32.xlu0 %v707, 112
  %v735 = vpop.permute.xlu0 %734
  %vm737 = vcmask 130048
  %v738 = vsel %vm737, %v686, %v711
  %v739 = vsel %vm153, %v738, %v715
  %vm740 = vcmask 392192
  %v741 = vsel %vm740, %v739, %v719
  %vm742 = vcmask 523264
  %v743 = vsel %vm742, %v741, %v723
  %vm744 = vcmask 654336
  %v745 = vsel %vm744, %v743, %v727
  %vm746 = vcmask 785408
  %v747 = vsel %vm746, %v745, %v731
  %vm748 = vcmask 916480
  %v749 = vsel %vm748, %v747, %v735
  %751 = vrot.lane.b32.xlu0 %v686, 112
  %v752 = vpop.permute.xlu0 %751
  %754 = vrot.lane.b32.xlu0 %v692, 16
  %v755 = vpop.permute.xlu0 %754
  %757 = vrot.lane.b32.xlu0 %v695, 32
  %v758 = vpop.permute.xlu0 %757
  %760 = vrot.lane.b32.xlu0 %v698, 48
  %v761 = vpop.permute.xlu0 %760
  %763 = vrot.lane.b32.xlu0 %v701, 64
  %v764 = vpop.permute.xlu0 %763
  %766 = vrot.lane.b32.xlu0 %v704, 80
  %v767 = vpop.permute.xlu0 %766
  %769 = vrot.lane.b32.xlu0 %v707, 96
  %v770 = vpop.permute.xlu0 %769
  %v772 = vsel %vm737, %v752, %v689
  %v773 = vsel %vm153, %v772, %v755
  %v774 = vsel %vm740, %v773, %v758
  %v775 = vsel %vm742, %v774, %v761
  %v776 = vsel %vm744, %v775, %v764
  %v777 = vsel %vm746, %v776, %v767
  %v778 = vsel %vm748, %v777, %v770
  %v779 = vld [vmem:[%s8] sm:$0xff]
  %v780 = vld [vmem:[%s8 + $0x8] sm:$0xff]
  %v781 = vld [vmem:[%s8 + $0x10] sm:$0xff]
  %v782 = vld [vmem:[%s8 + $0x18] sm:$0xff]
  %v783 = vld [vmem:[%s8 + $0x20] sm:$0xff]
  %v784 = vld [vmem:[%s8 + $0x28] sm:$0xff]
  %v785 = vld [vmem:[%s8 + $0x30] sm:$0xff]
  %v786 = vld [vmem:[%s8 + $0x38] sm:$0xff]
  %v787 = vld [vmem:[%s8 + $0x40] sm:$0xff]
  %v788 = vld [vmem:[%s8 + $0x48] sm:$0xff]
  %v789 = vld [vmem:[%s8 + $0x50] sm:$0xff]
  %v790 = vld [vmem:[%s8 + $0x58] sm:$0xff]
  %v791 = vld [vmem:[%s8 + $0x60] sm:$0xff]
  %v792 = vld [vmem:[%s8 + $0x68] sm:$0xff]
  %v793 = vld [vmem:[%s8 + $0x70] sm:$0xff]
  %v794 = vld [vmem:[%s8 + $0x78] sm:$0xff]
  %795 = vrot.lane.b32.xlu0 %v95, 64
  %v796 = vpop.permute.xlu0 %795
  %798 = vmatpush.msra.mxu0 %v794
  %799 = vmatpush.msra.mxu0 %v793
  %800 = vmatpush.msra.mxu0 %v792
  %801 = vmatpush.msra.mxu0 %v791
  %802 = vmatpush.msra.mxu0 %v790
  %803 = vmatpush.msra.mxu0 %v789
  %804 = vmatpush.msra.mxu0 %v788
  %805 = vmatpush.msra.mxu0 %v787
  %806 = vmatpush.msra.mxu0 %v786
  %807 = vmatpush.msra.mxu0 %v785
  %808 = vmatpush.msra.mxu0 %v784
  %809 = vmatpush.msra.mxu0 %v783
  %810 = vmatpush.msra.mxu0 %v782
  %811 = vmatpush.msra.mxu0 %v781
  %812 = vmatpush.msra.mxu0 %v780
  %813 = vmatpush.msra.mxu0 %v779
  %814 = vmatmul.f32.gmra.mxu0 %v749
  %v815 = vpop.f32.mrf.mxu0
  %v816 = vadd.f32 %v796, %v815
  %817 = vmatmul.f32.gmra.mxu0 %v778
  %v818 = vpop.f32.mrf.mxu0
  %v819 = vadd.f32 %v796, %v818
  %820 = vdwg.mxu0
  %v821 = vld [vmem:[%s2] sm:$0xff]
  %v822 = vld [vmem:[%s2 + $0x8] sm:$0xff]
  %v823 = vld [vmem:[%s9] sm:$0xff]
  %v824 = vld [vmem:[%s9 + $0x8] sm:$0xff]
  %v825 = vld [vmem:[%s9 + $0x10] sm:$0xff]
  %v826 = vld [vmem:[%s9 + $0x18] sm:$0xff]
  %v827 = vld [vmem:[%s9 + $0x20] sm:$0xff]
  %v828 = vld [vmem:[%s9 + $0x28] sm:$0xff]
  %v829 = vld [vmem:[%s9 + $0x30] sm:$0xff]
  %v830 = vld [vmem:[%s9 + $0x38] sm:$0xff]
  %v831 = vld [vmem:[%s10] sm:$0x3]
  %v832 = vld [vmem:[%s10 + $0x2] sm:$0x3]
  %v834 = vsel %vm153, %v816, 0
  %v837 = vsel %vm153, %v819, 0
  %839 = vmatpush.msra.mxu0 0.0
  %840 = vmatpush.msra.mxu0 0.0
  %841 = vmatpush.msra.mxu0 0.0
  %842 = vmatpush.msra.mxu0 0.0
  %843 = vmatpush.msra.mxu0 0.0
  %844 = vmatpush.msra.mxu0 0.0
  %845 = vmatpush.msra.mxu0 0.0
  %846 = vmatpush.msra.mxu0 0.0
  %847 = vmatpush.msra.mxu0 0.0
  %848 = vmatpush.msra.mxu0 0.0
  %849 = vmatpush.msra.mxu0 0.0
  %850 = vmatpush.msra.mxu0 0.0
  %851 = vmatpush.msra.mxu0 %v826
  %852 = vmatpush.msra.mxu0 %v825
  %853 = vmatpush.msra.mxu0 %v824
  %854 = vmatpush.msra.mxu0 %v823
  %855 = vmatmul.f32.gmra.mxu0 %v834
  %v856 = vpop.f32.mrf.mxu0
  %v857 = vadd.f32 0.0, %v856
  %858 = vmatmul.f32.gmra.mxu0 %v837
  %v859 = vpop.f32.mrf.mxu0
  %v860 = vadd.f32 0.0, %v859
  %861 = vdwg.mxu0
  %v863 = vsel %vm153, %v831, 0
  %v866 = vsel %vm153, %v857, 0
  %v869 = vsel %vm153, %v860, 0
  %871 = vmatpush.xpose.msra.mxu0 0.0
  %872 = vmatpush.xpose.msra.mxu0 0.0
  %873 = vmatpush.xpose.msra.mxu0 0.0
  %874 = vmatpush.xpose.msra.mxu0 0.0
  %875 = vmatpush.xpose.msra.mxu0 0.0
  %876 = vmatpush.xpose.msra.mxu0 0.0
  %877 = vmatpush.xpose.msra.mxu0 0.0
  %878 = vmatpush.xpose.msra.mxu0 0.0
  %879 = vmatpush.xpose.msra.mxu0 0.0
  %880 = vmatpush.xpose.msra.mxu0 0.0
  %881 = vmatpush.xpose.msra.mxu0 0.0
  %882 = vmatpush.xpose.msra.mxu0 0.0
  %883 = vmatpush.xpose.msra.mxu0 0.0
  %884 = vmatpush.xpose.msra.mxu0 0.0
  %885 = vmatpush.xpose.msra.mxu0 %v869
  %886 = vmatpush.xpose.msra.mxu0 %v866
  %887 = vmatmul.f32.gmra.mxu0 %v863
  %v888 = vpop.f32.mrf.mxu0
  %v889 = vadd.f32 0.0, %v888
  %890 = vdwg.mxu0
  %891 = vset.pattern.permute.xlu0 32
  %892 = vperm.xlu0 %891, %v857
  %v893 = vpop.permute.xlu0 %892
  %895 = vset.pattern.permute.xlu0 32
  %896 = vperm.xlu0 %895, %v860
  %v897 = vpop.permute.xlu0 %896
  %v899 = vperm.slane %v889, 0
  %v900 = vadd.f32 %v893, %v899
  %v901 = vadd.f32 %v897, %v899
  %vm902 = vcmp.gt.f32.partialorder %v900, 0.0
  %vm903 = vcmp.gt.f32.partialorder %v901, 0.0
  %v904 = vmul.f32 %v900, 0.2
  %v905 = vmul.f32 %v901, 0.2
  %v906 = vsel %vm902, %v900, %v904
  %v907 = vsel %vm903, %v901, %v905
  %v908 = vsel %vm737, %v906, -inf
  %909 = vmax.xlane.f32.xlu0 %v908
  %v910 = vpop.xlane.xlu0 %909
  %v911 = vsel %vm737, %v907, -inf
  %912 = vmax.xlane.f32.xlu0 %v911
  %v913 = vpop.xlane.xlu0 %912
  %v914 = vsub.f32 %v906, %v910
  %v915 = vsub.f32 %v907, %v913
  %v916 = vmul.f32 %v914, 1.442695
  %v917 = vpow.pop %v916
  %v918 = vmul.f32 %v915, 1.442695
  %v919 = vpow.pop %v918
  %v920 = vmul.f32 %v917, %v821
  %v921 = vmul.f32 %v919, %v822
  %v922 = vsel %vm737, %v920, 0.0
  %923 = vadd.xlane.f32.xlu0 %v922
  %v924 = vpop.xlane.xlu0 %923
  %v925 = vsel %vm737, %v921, 0.0
  %926 = vadd.xlane.f32.xlu0 %v925
  %v927 = vpop.xlane.xlu0 %926
  %v928 = vmax.f32 %v924, 1e-20
  %v929 = vmax.f32 %v927, 1e-20
  %v930 = vrcp.pop %v928
  %v931 = vrcp.pop %v929
  %v932 = vmul.f32 %v920, %v930
  %v933 = vmul.f32 %v921, %v931
  %v934 = vperm.slane %v831, 1
  %v936 = vsel %vm737, %v932, 0
  %v939 = vsel %vm737, %v933, 0
  %941 = vmatpush.msra.mxu0 0.0
  %942 = vmatpush.msra.mxu0 0.0
  %943 = vmatpush.msra.mxu0 0.0
  %944 = vmatpush.msra.mxu0 0.0
  %945 = vmatpush.msra.mxu0 0.0
  %946 = vmatpush.msra.mxu0 0.0
  %947 = vmatpush.msra.mxu0 0.0
  %948 = vmatpush.msra.mxu0 0.0
  %949 = vmatpush.msra.mxu0 0.0
  %950 = vmatpush.msra.mxu0 0.0
  %951 = vmatpush.msra.mxu0 0.0
  %952 = vmatpush.msra.mxu0 0.0
  %953 = vmatpush.msra.mxu0 0.0
  %954 = vmatpush.msra.mxu0 0.0
  %955 = vmatpush.msra.mxu0 %v860
  %956 = vmatpush.msra.mxu0 %v857
  %957 = vmatmul.f32.gmra.mxu0 %v936
  %v958 = vpop.f32.mrf.mxu0
  %v959 = vadd.f32 %v934, %v958
  %960 = vmatmul.f32.gmra.mxu0 %v939
  %v961 = vpop.f32.mrf.mxu0
  %v962 = vadd.f32 %v934, %v961
  %963 = vdwg.mxu0
  %vm964 = vcmp.gt.f32.partialorder %v959, 0.0
  %vm965 = vcmp.gt.f32.partialorder %v962, 0.0
  %v966 = vmin.f32 %v959, 0.0
  %v967 = vmin.f32 %v962, 0.0
  %v968 = vmul.f32 %v966, 1.442695
  %v969 = vpow.pop %v968
  %v970 = vmul.f32 %v967, 1.442695
  %v971 = vpow.pop %v970
  %v972 = vsub.f32 %v969, 1.0
  %v973 = vsub.f32 %v971, 1.0
  %v974 = vsel %vm964, %v959, %v972
  %v975 = vsel %vm965, %v962, %v973
  %v977 = vsel %vm153, %v974, 0
  %v980 = vsel %vm153, %v975, 0
  %982 = vmatpush.msra.mxu0 0.0
  %983 = vmatpush.msra.mxu0 0.0
  %984 = vmatpush.msra.mxu0 0.0
  %985 = vmatpush.msra.mxu0 0.0
  %986 = vmatpush.msra.mxu0 0.0
  %987 = vmatpush.msra.mxu0 0.0
  %988 = vmatpush.msra.mxu0 0.0
  %989 = vmatpush.msra.mxu0 0.0
  %990 = vmatpush.msra.mxu0 0.0
  %991 = vmatpush.msra.mxu0 0.0
  %992 = vmatpush.msra.mxu0 0.0
  %993 = vmatpush.msra.mxu0 0.0
  %994 = vmatpush.msra.mxu0 %v830
  %995 = vmatpush.msra.mxu0 %v829
  %996 = vmatpush.msra.mxu0 %v828
  %997 = vmatpush.msra.mxu0 %v827
  %998 = vmatmul.f32.gmra.mxu0 %v977
  %v999 = vpop.f32.mrf.mxu0
  %v1000 = vadd.f32 0.0, %v999
  %1001 = vmatmul.f32.gmra.mxu0 %v980
  %v1002 = vpop.f32.mrf.mxu0
  %v1003 = vadd.f32 0.0, %v1002
  %1004 = vdwg.mxu0
  %v1006 = vsel %vm153, %v832, 0
  %v1009 = vsel %vm153, %v1000, 0
  %v1012 = vsel %vm153, %v1003, 0
  %1014 = vmatpush.xpose.msra.mxu0 0.0
  %1015 = vmatpush.xpose.msra.mxu0 0.0
  %1016 = vmatpush.xpose.msra.mxu0 0.0
  %1017 = vmatpush.xpose.msra.mxu0 0.0
  %1018 = vmatpush.xpose.msra.mxu0 0.0
  %1019 = vmatpush.xpose.msra.mxu0 0.0
  %1020 = vmatpush.xpose.msra.mxu0 0.0
  %1021 = vmatpush.xpose.msra.mxu0 0.0
  %1022 = vmatpush.xpose.msra.mxu0 0.0
  %1023 = vmatpush.xpose.msra.mxu0 0.0
  %1024 = vmatpush.xpose.msra.mxu0 0.0
  %1025 = vmatpush.xpose.msra.mxu0 0.0
  %1026 = vmatpush.xpose.msra.mxu0 0.0
  %1027 = vmatpush.xpose.msra.mxu0 0.0
  %1028 = vmatpush.xpose.msra.mxu0 %v1012
  %1029 = vmatpush.xpose.msra.mxu0 %v1009
  %1030 = vmatmul.f32.gmra.mxu0 %v1006
  %v1031 = vpop.f32.mrf.mxu0
  %v1032 = vadd.f32 0.0, %v1031
  %1033 = vdwg.mxu0
  %1034 = vset.pattern.permute.xlu0 32
  %1035 = vperm.xlu0 %1034, %v1000
  %v1036 = vpop.permute.xlu0 %1035
  %1038 = vset.pattern.permute.xlu0 32
  %1039 = vperm.xlu0 %1038, %v1003
  %v1040 = vpop.permute.xlu0 %1039
  %v1042 = vperm.slane %v1032, 0
  %v1043 = vadd.f32 %v1036, %v1042
  %v1044 = vadd.f32 %v1040, %v1042
  %vm1045 = vcmp.gt.f32.partialorder %v1043, 0.0
  %vm1046 = vcmp.gt.f32.partialorder %v1044, 0.0
  %v1047 = vmul.f32 %v1043, 0.2
  %v1048 = vmul.f32 %v1044, 0.2
  %v1049 = vsel %vm1045, %v1043, %v1047
  %v1050 = vsel %vm1046, %v1044, %v1048
  %v1051 = vsel %vm737, %v1049, -inf
  %1052 = vmax.xlane.f32.xlu0 %v1051
  %v1053 = vpop.xlane.xlu0 %1052
  %v1054 = vsel %vm737, %v1050, -inf
  %1055 = vmax.xlane.f32.xlu0 %v1054
  %v1056 = vpop.xlane.xlu0 %1055
  %v1057 = vsub.f32 %v1049, %v1053
  %v1058 = vsub.f32 %v1050, %v1056
  %v1059 = vmul.f32 %v1057, 1.442695
  %v1060 = vpow.pop %v1059
  %v1061 = vmul.f32 %v1058, 1.442695
  %v1062 = vpow.pop %v1061
  %v1063 = vmul.f32 %v1060, %v821
  %v1064 = vmul.f32 %v1062, %v822
  %v1065 = vsel %vm737, %v1063, 0.0
  %1066 = vadd.xlane.f32.xlu0 %v1065
  %v1067 = vpop.xlane.xlu0 %1066
  %v1068 = vsel %vm737, %v1064, 0.0
  %1069 = vadd.xlane.f32.xlu0 %v1068
  %v1070 = vpop.xlane.xlu0 %1069
  %v1071 = vmax.f32 %v1067, 1e-20
  %v1072 = vmax.f32 %v1070, 1e-20
  %v1073 = vrcp.pop %v1071
  %v1074 = vrcp.pop %v1072
  %v1075 = vmul.f32 %v1063, %v1073
  %v1076 = vmul.f32 %v1064, %v1074
  %v1077 = vperm.slane %v832, 1
  %v1079 = vsel %vm737, %v1075, 0
  %v1082 = vsel %vm737, %v1076, 0
  %1084 = vmatpush.msra.mxu0 0.0
  %1085 = vmatpush.msra.mxu0 0.0
  %1086 = vmatpush.msra.mxu0 0.0
  %1087 = vmatpush.msra.mxu0 0.0
  %1088 = vmatpush.msra.mxu0 0.0
  %1089 = vmatpush.msra.mxu0 0.0
  %1090 = vmatpush.msra.mxu0 0.0
  %1091 = vmatpush.msra.mxu0 0.0
  %1092 = vmatpush.msra.mxu0 0.0
  %1093 = vmatpush.msra.mxu0 0.0
  %1094 = vmatpush.msra.mxu0 0.0
  %1095 = vmatpush.msra.mxu0 0.0
  %1096 = vmatpush.msra.mxu0 0.0
  %1097 = vmatpush.msra.mxu0 0.0
  %1098 = vmatpush.msra.mxu0 %v1003
  %1099 = vmatpush.msra.mxu0 %v1000
  %1100 = vmatmul.f32.gmra.mxu0 %v1079
  %v1101 = vpop.f32.mrf.mxu0
  %v1102 = vadd.f32 %v1077, %v1101
  %1103 = vmatmul.f32.gmra.mxu0 %v1082
  %v1104 = vpop.f32.mrf.mxu0
  %v1105 = vadd.f32 %v1077, %v1104
  %1106 = vdwg.mxu0
  %v1107 = vld [vmem:[%s11] sm:$0xff]
  %v1108 = vld [vmem:[%s11 + $0x8] sm:$0xff]
  %v1109 = vld [vmem:[%s11 + $0x10] sm:$0xff]
  %v1110 = vld [vmem:[%s11 + $0x18] sm:$0xff]
  %v1111 = vld [vmem:[%s11 + $0x20] sm:$0xff]
  %v1112 = vld [vmem:[%s11 + $0x28] sm:$0xff]
  %v1113 = vld [vmem:[%s11 + $0x30] sm:$0xff]
  %v1114 = vld [vmem:[%s11 + $0x38] sm:$0xff]
  %v1115 = vld [vmem:[%s11 + $0x40] sm:$0xff]
  %v1116 = vld [vmem:[%s11 + $0x48] sm:$0xff]
  %v1117 = vld [vmem:[%s11 + $0x50] sm:$0xff]
  %v1118 = vld [vmem:[%s11 + $0x58] sm:$0xff]
  %v1119 = vld [vmem:[%s11 + $0x60] sm:$0xff]
  %v1120 = vld [vmem:[%s11 + $0x68] sm:$0xff]
  %v1121 = vld [vmem:[%s11 + $0x70] sm:$0xff]
  %v1122 = vld [vmem:[%s11 + $0x78] sm:$0xff]
  %1124 = vset.pattern.permute.xlu0 0
  %1125 = vperm.xlu0 %1124, %v71
  %v1126 = vpop.permute.xlu0 %1125
  %1129 = vset.pattern.permute.xlu0 0
  %1130 = vperm.xlu0 %1129, %v72
  %v1131 = vpop.permute.xlu0 %1130
  %1134 = vset.pattern.permute.xlu0 0
  %1135 = vperm.xlu0 %1134, %v73
  %v1136 = vpop.permute.xlu0 %1135
  %1139 = vset.pattern.permute.xlu0 0
  %1140 = vperm.xlu0 %1139, %v74
  %v1141 = vpop.permute.xlu0 %1140
  %1144 = vset.pattern.permute.xlu0 0
  %1145 = vperm.xlu0 %1144, %v75
  %v1146 = vpop.permute.xlu0 %1145
  %1149 = vset.pattern.permute.xlu0 0
  %1150 = vperm.xlu0 %1149, %v76
  %v1151 = vpop.permute.xlu0 %1150
  %1154 = vset.pattern.permute.xlu0 0
  %1155 = vperm.xlu0 %1154, %v77
  %v1156 = vpop.permute.xlu0 %1155
  %1159 = vset.pattern.permute.xlu0 0
  %1160 = vperm.xlu0 %1159, %v78
  %v1161 = vpop.permute.xlu0 %1160
  %1164 = vset.pattern.permute.xlu0 0
  %1165 = vperm.xlu0 %1164, %v79
  %v1166 = vpop.permute.xlu0 %1165
  %1169 = vset.pattern.permute.xlu0 0
  %1170 = vperm.xlu0 %1169, %v80
  %v1171 = vpop.permute.xlu0 %1170
  %1174 = vset.pattern.permute.xlu0 0
  %1175 = vperm.xlu0 %1174, %v81
  %v1176 = vpop.permute.xlu0 %1175
  %1179 = vset.pattern.permute.xlu0 0
  %1180 = vperm.xlu0 %1179, %v82
  %v1181 = vpop.permute.xlu0 %1180
  %1184 = vset.pattern.permute.xlu0 0
  %1185 = vperm.xlu0 %1184, %v83
  %v1186 = vpop.permute.xlu0 %1185
  %1189 = vset.pattern.permute.xlu0 0
  %1190 = vperm.xlu0 %1189, %v84
  %v1191 = vpop.permute.xlu0 %1190
  %1194 = vset.pattern.permute.xlu0 0
  %1195 = vperm.xlu0 %1194, %v85
  %v1196 = vpop.permute.xlu0 %1195
  %1199 = vset.pattern.permute.xlu0 0
  %1200 = vperm.xlu0 %1199, %v86
  %v1201 = vpop.permute.xlu0 %1200
  %v1204 = vsel %vm153, %v1107, 0
  %v1207 = vsel %vm153, %v1108, 0
  %v1210 = vsel %vm153, %v1109, 0
  %v1213 = vsel %vm153, %v1110, 0
  %v1216 = vsel %vm153, %v1111, 0
  %v1219 = vsel %vm153, %v1112, 0
  %v1222 = vsel %vm153, %v1113, 0
  %v1225 = vsel %vm153, %v1114, 0
  %v1228 = vsel %vm153, %v1115, 0
  %v1231 = vsel %vm153, %v1116, 0
  %v1234 = vsel %vm153, %v1117, 0
  %v1237 = vsel %vm153, %v1118, 0
  %v1240 = vsel %vm153, %v1119, 0
  %v1243 = vsel %vm153, %v1120, 0
  %v1246 = vsel %vm153, %v1121, 0
  %v1249 = vsel %vm153, %v1122, 0
  %v1252 = vsel %vm153, %v1102, 0
  %v1255 = vsel %vm153, %v1105, 0
  %1257 = vmatpush.xpose.msra.mxu0 0.0
  %1258 = vmatpush.xpose.msra.mxu0 0.0
  %1259 = vmatpush.xpose.msra.mxu0 0.0
  %1260 = vmatpush.xpose.msra.mxu0 0.0
  %1261 = vmatpush.xpose.msra.mxu0 0.0
  %1262 = vmatpush.xpose.msra.mxu0 0.0
  %1263 = vmatpush.xpose.msra.mxu0 0.0
  %1264 = vmatpush.xpose.msra.mxu0 0.0
  %1265 = vmatpush.xpose.msra.mxu0 0.0
  %1266 = vmatpush.xpose.msra.mxu0 0.0
  %1267 = vmatpush.xpose.msra.mxu0 0.0
  %1268 = vmatpush.xpose.msra.mxu0 0.0
  %1269 = vmatpush.xpose.msra.mxu0 0.0
  %1270 = vmatpush.xpose.msra.mxu0 0.0
  %1271 = vmatpush.xpose.msra.mxu0 %v1255
  %1272 = vmatpush.xpose.msra.mxu0 %v1252
  %1273 = vmatmul.f32.gmra.mxu0 %v1204
  %v1274 = vpop.f32.mrf.mxu0
  %v1275 = vadd.f32 %v1126, %v1274
  %1276 = vmatmul.f32.gmra.mxu0 %v1207
  %v1277 = vpop.f32.mrf.mxu0
  %v1278 = vadd.f32 %v1131, %v1277
  %1279 = vmatmul.f32.gmra.mxu0 %v1210
  %v1280 = vpop.f32.mrf.mxu0
  %v1281 = vadd.f32 %v1136, %v1280
  %1282 = vmatmul.f32.gmra.mxu0 %v1213
  %v1283 = vpop.f32.mrf.mxu0
  %v1284 = vadd.f32 %v1141, %v1283
  %1285 = vmatmul.f32.gmra.mxu0 %v1216
  %v1286 = vpop.f32.mrf.mxu0
  %v1287 = vadd.f32 %v1146, %v1286
  %1288 = vmatmul.f32.gmra.mxu0 %v1219
  %v1289 = vpop.f32.mrf.mxu0
  %v1290 = vadd.f32 %v1151, %v1289
  %1291 = vmatmul.f32.gmra.mxu0 %v1222
  %v1292 = vpop.f32.mrf.mxu0
  %v1293 = vadd.f32 %v1156, %v1292
  %1294 = vmatmul.f32.gmra.mxu0 %v1225
  %v1295 = vpop.f32.mrf.mxu0
  %v1296 = vadd.f32 %v1161, %v1295
  %1297 = vmatmul.f32.gmra.mxu0 %v1228
  %v1298 = vpop.f32.mrf.mxu0
  %v1299 = vadd.f32 %v1166, %v1298
  %1300 = vmatmul.f32.gmra.mxu0 %v1231
  %v1301 = vpop.f32.mrf.mxu0
  %v1302 = vadd.f32 %v1171, %v1301
  %1303 = vmatmul.f32.gmra.mxu0 %v1234
  %v1304 = vpop.f32.mrf.mxu0
  %v1305 = vadd.f32 %v1176, %v1304
  %1306 = vmatmul.f32.gmra.mxu0 %v1237
  %v1307 = vpop.f32.mrf.mxu0
  %v1308 = vadd.f32 %v1181, %v1307
  %1309 = vmatmul.f32.gmra.mxu0 %v1240
  %v1310 = vpop.f32.mrf.mxu0
  %v1311 = vadd.f32 %v1186, %v1310
  %1312 = vmatmul.f32.gmra.mxu0 %v1243
  %v1313 = vpop.f32.mrf.mxu0
  %v1314 = vadd.f32 %v1191, %v1313
  %1315 = vmatmul.f32.gmra.mxu0 %v1246
  %v1316 = vpop.f32.mrf.mxu0
  %v1317 = vadd.f32 %v1196, %v1316
  %1318 = vmatmul.f32.gmra.mxu0 %v1249
  %v1319 = vpop.f32.mrf.mxu0
  %v1320 = vadd.f32 %v1201, %v1319
  %1321 = vdwg.mxu0
  %1324 = vrot.lane.b32.xlu0 %v1281, 8
  %v1325 = vpop.permute.xlu0 %1324
  %1326 = vrot.lane.b32.xlu0 %v1284, 8
  %v1327 = vpop.permute.xlu0 %1326
  %1332 = vrot.lane.b32.xlu0 %v1287, 16
  %v1333 = vpop.permute.xlu0 %1332
  %1334 = vrot.lane.b32.xlu0 %v1290, 16
  %v1335 = vpop.permute.xlu0 %1334
  %1340 = vrot.lane.b32.xlu0 %v1293, 24
  %v1341 = vpop.permute.xlu0 %1340
  %1342 = vrot.lane.b32.xlu0 %v1296, 24
  %v1343 = vpop.permute.xlu0 %1342
  %1348 = vrot.lane.b32.xlu0 %v1299, 32
  %v1349 = vpop.permute.xlu0 %1348
  %1350 = vrot.lane.b32.xlu0 %v1302, 32
  %v1351 = vpop.permute.xlu0 %1350
  %1356 = vrot.lane.b32.xlu0 %v1305, 40
  %v1357 = vpop.permute.xlu0 %1356
  %1358 = vrot.lane.b32.xlu0 %v1308, 40
  %v1359 = vpop.permute.xlu0 %1358
  %1364 = vrot.lane.b32.xlu0 %v1311, 48
  %v1365 = vpop.permute.xlu0 %1364
  %1366 = vrot.lane.b32.xlu0 %v1314, 48
  %v1367 = vpop.permute.xlu0 %1366
  %1372 = vrot.lane.b32.xlu0 %v1317, 56
  %v1373 = vpop.permute.xlu0 %1372
  %1374 = vrot.lane.b32.xlu0 %v1320, 56
  %v1375 = vpop.permute.xlu0 %1374
  %vm1378 = vcmask 64512
  %v1379 = vsel %vm1378, %v1275, %v1325
  %v1380 = vsel %vm1378, %v1278, %v1327
  %v1381 = vsel %vm737, %v1379, %v1333
  %v1382 = vsel %vm737, %v1380, %v1335
  %v1383 = vsel %vm97, %v1381, %v1341
  %v1384 = vsel %vm97, %v1382, %v1343
  %v1385 = vsel %vm153, %v1383, %v1349
  %v1386 = vsel %vm153, %v1384, %v1351
  %vm1387 = vcmask 326656
  %v1388 = vsel %vm1387, %v1385, %v1357
  %v1389 = vsel %vm1387, %v1386, %v1359
  %v1390 = vsel %vm740, %v1388, %v1365
  %v1391 = vsel %vm740, %v1389, %v1367
  %vm1392 = vcmask 457728
  %v1393 = vsel %vm1392, %v1390, %v1373
  %v1394 = vsel %vm1392, %v1391, %v1375
  %1397 = vrot.lane.b32.xlu0 %v1275, 120
  %v1398 = vpop.permute.xlu0 %1397
  %1399 = vrot.lane.b32.xlu0 %v1278, 120
  %v1400 = vpop.permute.xlu0 %1399
  %1403 = vrot.lane.b32.xlu0 %v1287, 8
  %v1404 = vpop.permute.xlu0 %1403
  %1405 = vrot.lane.b32.xlu0 %v1290, 8
  %v1406 = vpop.permute.xlu0 %1405
  %1409 = vrot.lane.b32.xlu0 %v1293, 16
  %v1410 = vpop.permute.xlu0 %1409
  %1411 = vrot.lane.b32.xlu0 %v1296, 16
  %v1412 = vpop.permute.xlu0 %1411
  %1415 = vrot.lane.b32.xlu0 %v1299, 24
  %v1416 = vpop.permute.xlu0 %1415
  %1417 = vrot.lane.b32.xlu0 %v1302, 24
  %v1418 = vpop.permute.xlu0 %1417
  %1421 = vrot.lane.b32.xlu0 %v1305, 32
  %v1422 = vpop.permute.xlu0 %1421
  %1423 = vrot.lane.b32.xlu0 %v1308, 32
  %v1424 = vpop.permute.xlu0 %1423
  %1427 = vrot.lane.b32.xlu0 %v1311, 40
  %v1428 = vpop.permute.xlu0 %1427
  %1429 = vrot.lane.b32.xlu0 %v1314, 40
  %v1430 = vpop.permute.xlu0 %1429
  %1433 = vrot.lane.b32.xlu0 %v1317, 48
  %v1434 = vpop.permute.xlu0 %1433
  %1435 = vrot.lane.b32.xlu0 %v1320, 48
  %v1436 = vpop.permute.xlu0 %1435
  %v1439 = vsel %vm1378, %v1398, %v1281
  %v1440 = vsel %vm1378, %v1400, %v1284
  %v1441 = vsel %vm737, %v1439, %v1404
  %v1442 = vsel %vm737, %v1440, %v1406
  %v1443 = vsel %vm97, %v1441, %v1410
  %v1444 = vsel %vm97, %v1442, %v1412
  %v1445 = vsel %vm153, %v1443, %v1416
  %v1446 = vsel %vm153, %v1444, %v1418
  %v1447 = vsel %vm1387, %v1445, %v1422
  %v1448 = vsel %vm1387, %v1446, %v1424
  %v1449 = vsel %vm740, %v1447, %v1428
  %v1450 = vsel %vm740, %v1448, %v1430
  %v1451 = vsel %vm1392, %v1449, %v1434
  %v1452 = vsel %vm1392, %v1450, %v1436
  %v1453 = vld [vmem:[%s12] sm:$0xff]
  %v1454 = vld [vmem:[%s12 + $0x8] sm:$0xff]
  %v1455 = vld [vmem:[%s12 + $0x10] sm:$0xff]
  %v1456 = vld [vmem:[%s12 + $0x18] sm:$0xff]
  %v1457 = vld [vmem:[%s12 + $0x20] sm:$0xff]
  %v1458 = vld [vmem:[%s12 + $0x28] sm:$0xff]
  %v1459 = vld [vmem:[%s12 + $0x30] sm:$0xff]
  %v1460 = vld [vmem:[%s12 + $0x38] sm:$0xff]
  %1461 = vrot.lane.b32.xlu0 %v95, 32
  %v1462 = vpop.permute.xlu0 %1461
  %v1465 = vsel %vm742, %v1393, 0
  %v1468 = vsel %vm742, %v1394, 0
  %v1471 = vsel %vm742, %v1451, 0
  %v1474 = vsel %vm742, %v1452, 0
  %1476 = vmatpush.msra.mxu0 0.0
  %1477 = vmatpush.msra.mxu0 0.0
  %1478 = vmatpush.msra.mxu0 0.0
  %1479 = vmatpush.msra.mxu0 0.0
  %1480 = vmatpush.msra.mxu0 0.0
  %1481 = vmatpush.msra.mxu0 0.0
  %1482 = vmatpush.msra.mxu0 0.0
  %1483 = vmatpush.msra.mxu0 0.0
  %1484 = vmatpush.msra.mxu0 %v1460
  %1485 = vmatpush.msra.mxu0 %v1459
  %1486 = vmatpush.msra.mxu0 %v1458
  %1487 = vmatpush.msra.mxu0 %v1457
  %1488 = vmatpush.msra.mxu0 %v1456
  %1489 = vmatpush.msra.mxu0 %v1455
  %1490 = vmatpush.msra.mxu0 %v1454
  %1491 = vmatpush.msra.mxu0 %v1453
  %1492 = vmatmul.f32.gmra.mxu0 %v1465
  %v1493 = vpop.f32.mrf.mxu0
  %v1494 = vadd.f32 %v1462, %v1493
  %1495 = vmatmul.f32.gmra.mxu0 %v1468
  %v1496 = vpop.f32.mrf.mxu0
  %v1497 = vadd.f32 %v1462, %v1496
  %1498 = vmatmul.f32.gmra.mxu0 %v1471
  %v1499 = vpop.f32.mrf.mxu0
  %v1500 = vadd.f32 %v1462, %v1499
  %1501 = vmatmul.f32.gmra.mxu0 %v1474
  %v1502 = vpop.f32.mrf.mxu0
  %v1503 = vadd.f32 %v1462, %v1502
  %1504 = vdwg.mxu0
  %v1505 = vld [vmem:[%s3] sm:$0xff]
  %v1506 = vld [vmem:[%s3 + $0x8] sm:$0xff]
  %v1507 = vld [vmem:[%s3 + $0x10] sm:$0xff]
  %v1508 = vld [vmem:[%s3 + $0x18] sm:$0xff]
  %1509 = vrot.lane.b32.xlu0 %v128, 96
  %v1510 = vpop.permute.xlu0 %1509
  %1511 = vrot.lane.b32.xlu0 %v131, 96
  %v1512 = vpop.permute.xlu0 %1511
  %1513 = vrot.lane.b32.xlu0 %v134, 96
  %v1514 = vpop.permute.xlu0 %1513
  %1515 = vrot.lane.b32.xlu0 %v137, 96
  %v1516 = vpop.permute.xlu0 %1515
  %1525 = vrot.lane.b32.xlu0 %v1494, 32
  %v1526 = vpop.permute.xlu0 %1525
  %1527 = vrot.lane.b32.xlu0 %v1497, 32
  %v1528 = vpop.permute.xlu0 %1527
  %1529 = vrot.lane.b32.xlu0 %v1500, 32
  %v1530 = vpop.permute.xlu0 %1529
  %1531 = vrot.lane.b32.xlu0 %v1503, 32
  %v1532 = vpop.permute.xlu0 %1531
  %1541 = vrot.lane.b32.xlu0 %v1505, 64
  %v1542 = vpop.permute.xlu0 %1541
  %1543 = vrot.lane.b32.xlu0 %v1506, 64
  %v1544 = vpop.permute.xlu0 %1543
  %1545 = vrot.lane.b32.xlu0 %v1507, 64
  %v1546 = vpop.permute.xlu0 %1545
  %1547 = vrot.lane.b32.xlu0 %v1508, 64
  %v1548 = vpop.permute.xlu0 %1547
  %v1553 = vsel %vm153, %v1510, %v1526
  %v1554 = vsel %vm153, %v1512, %v1528
  %v1555 = vsel %vm153, %v1514, %v1530
  %v1556 = vsel %vm153, %v1516, %v1532
  %v1557 = vsel %vm742, %v1553, %v1542
  %v1558 = vsel %vm742, %v1554, %v1544
  %v1559 = vsel %vm742, %v1555, %v1546
  %v1560 = vsel %vm742, %v1556, %v1548
  %v1561 = vld [vmem:[%s15] sm:$0xff]
  %v1562 = vld [vmem:[%s15 + $0x8] sm:$0xff]
  %v1563 = vld [vmem:[%s15 + $0x10] sm:$0xff]
  %v1564 = vld [vmem:[%s15 + $0x18] sm:$0xff]
  %v1565 = vld [vmem:[%s15 + $0x20] sm:$0xff]
  %v1566 = vld [vmem:[%s15 + $0x28] sm:$0xff]
  %v1567 = vld [vmem:[%s15 + $0x30] sm:$0xff]
  %v1568 = vld [vmem:[%s15 + $0x38] sm:$0xff]
  %v1569 = vld [vmem:[%s15 + $0x40] sm:$0xff]
  %v1570 = vld [vmem:[%s15 + $0x48] sm:$0xff]
  %v1571 = vld [vmem:[%s15 + $0x50] sm:$0xff]
  %v1572 = vld [vmem:[%s15 + $0x58] sm:$0xff]
  %v1573 = vld [vmem:[%s15 + $0x60] sm:$0xff]
  %v1574 = vld [vmem:[%s15 + $0x68] sm:$0xff]
  %v1575 = vld [vmem:[%s15 + $0x70] sm:$0xff]
  %v1576 = vld [vmem:[%s15 + $0x78] sm:$0xff]
  %v1577 = vld [vmem:[%s15 + $0x80] sm:$0xff]
  %v1578 = vld [vmem:[%s15 + $0x88] sm:$0xff]
  %v1579 = vld [vmem:[%s15 + $0x90] sm:$0xff]
  %v1580 = vld [vmem:[%s15 + $0x98] sm:$0xff]
  %v1581 = vld [vmem:[%s15 + $0xa0] sm:$0xff]
  %v1582 = vld [vmem:[%s15 + $0xa8] sm:$0xff]
  %v1583 = vld [vmem:[%s15 + $0xb0] sm:$0xff]
  %v1584 = vld [vmem:[%s15 + $0xb8] sm:$0xff]
  %v1585 = vld [vmem:[%s15 + $0xc0] sm:$0xff]
  %v1586 = vld [vmem:[%s15 + $0xc8] sm:$0xff]
  %v1587 = vld [vmem:[%s15 + $0xd0] sm:$0xff]
  %v1588 = vld [vmem:[%s15 + $0xd8] sm:$0xff]
  %v1589 = vld [vmem:[%s15 + $0xe0] sm:$0xff]
  %v1590 = vld [vmem:[%s15 + $0xe8] sm:$0xff]
  %v1591 = vld [vmem:[%s15 + $0xf0] sm:$0xff]
  %v1592 = vld [vmem:[%s15 + $0xf8] sm:$0xff]
  %v1593 = vld [vmem:[%s15 + $0x100] sm:$0xff]
  %v1594 = vld [vmem:[%s15 + $0x108] sm:$0xff]
  %v1595 = vld [vmem:[%s15 + $0x110] sm:$0xff]
  %v1596 = vld [vmem:[%s15 + $0x118] sm:$0xff]
  %v1597 = vld [vmem:[%s15 + $0x120] sm:$0xff]
  %v1598 = vld [vmem:[%s15 + $0x128] sm:$0xff]
  %v1599 = vld [vmem:[%s15 + $0x130] sm:$0xff]
  %v1600 = vld [vmem:[%s15 + $0x138] sm:$0xff]
  %v1601 = vld [vmem:[%s15 + $0x140] sm:$0xff]
  %v1602 = vld [vmem:[%s15 + $0x148] sm:$0xff]
  %v1603 = vld [vmem:[%s15 + $0x150] sm:$0xff]
  %v1604 = vld [vmem:[%s15 + $0x158] sm:$0xff]
  %v1605 = vld [vmem:[%s15 + $0x160] sm:$0xff]
  %v1606 = vld [vmem:[%s15 + $0x168] sm:$0xff]
  %v1607 = vld [vmem:[%s15 + $0x170] sm:$0xff]
  %v1608 = vld [vmem:[%s15 + $0x178] sm:$0xff]
  %v1609 = vld [vmem:[%s15 + $0x180] sm:$0xff]
  %v1610 = vld [vmem:[%s15 + $0x188] sm:$0xff]
  %v1611 = vld [vmem:[%s15 + $0x190] sm:$0xff]
  %v1612 = vld [vmem:[%s15 + $0x198] sm:$0xff]
  %v1613 = vld [vmem:[%s15 + $0x1a0] sm:$0xff]
  %v1614 = vld [vmem:[%s15 + $0x1a8] sm:$0xff]
  %v1615 = vld [vmem:[%s15 + $0x1b0] sm:$0xff]
  %v1616 = vld [vmem:[%s15 + $0x1b8] sm:$0xff]
  %v1617 = vld [vmem:[%s15 + $0x1c0] sm:$0xff]
  %v1618 = vld [vmem:[%s15 + $0x1c8] sm:$0xff]
  %v1619 = vld [vmem:[%s15 + $0x1d0] sm:$0xff]
  %v1620 = vld [vmem:[%s15 + $0x1d8] sm:$0xff]
  %v1621 = vld [vmem:[%s15 + $0x1e0] sm:$0xff]
  %v1622 = vld [vmem:[%s15 + $0x1e8] sm:$0xff]
  %v1623 = vld [vmem:[%s15 + $0x1f0] sm:$0xff]
  %v1624 = vld [vmem:[%s15 + $0x1f8] sm:$0xff]
  %v1625 = vld [vmem:[%s15 + $0x200] sm:$0xff]
  %v1626 = vld [vmem:[%s15 + $0x208] sm:$0xff]
  %v1627 = vld [vmem:[%s15 + $0x210] sm:$0xff]
  %v1628 = vld [vmem:[%s15 + $0x218] sm:$0xff]
  %v1629 = vld [vmem:[%s15 + $0x220] sm:$0xff]
  %v1630 = vld [vmem:[%s15 + $0x228] sm:$0xff]
  %v1631 = vld [vmem:[%s15 + $0x230] sm:$0xff]
  %v1632 = vld [vmem:[%s15 + $0x238] sm:$0xff]
  %v1633 = vld [vmem:[%s15 + $0x240] sm:$0xff]
  %v1634 = vld [vmem:[%s15 + $0x248] sm:$0xff]
  %v1635 = vld [vmem:[%s15 + $0x250] sm:$0xff]
  %v1636 = vld [vmem:[%s15 + $0x258] sm:$0xff]
  %v1637 = vld [vmem:[%s15 + $0x260] sm:$0xff]
  %v1638 = vld [vmem:[%s15 + $0x268] sm:$0xff]
  %v1639 = vld [vmem:[%s15 + $0x270] sm:$0xff]
  %v1640 = vld [vmem:[%s15 + $0x278] sm:$0xff]
  %v1641 = vld [vmem:[%s15 + $0x280] sm:$0xff]
  %v1642 = vld [vmem:[%s15 + $0x288] sm:$0xff]
  %v1643 = vld [vmem:[%s15 + $0x290] sm:$0xff]
  %v1644 = vld [vmem:[%s15 + $0x298] sm:$0xff]
  %v1645 = vld [vmem:[%s15 + $0x2a0] sm:$0xff]
  %v1646 = vld [vmem:[%s15 + $0x2a8] sm:$0xff]
  %v1647 = vld [vmem:[%s15 + $0x2b0] sm:$0xff]
  %v1648 = vld [vmem:[%s15 + $0x2b8] sm:$0xff]
  %v1649 = vld [vmem:[%s15 + $0x2c0] sm:$0xff]
  %v1650 = vld [vmem:[%s15 + $0x2c8] sm:$0xff]
  %v1651 = vld [vmem:[%s15 + $0x2d0] sm:$0xff]
  %v1652 = vld [vmem:[%s15 + $0x2d8] sm:$0xff]
  %v1653 = vld [vmem:[%s15 + $0x2e0] sm:$0xff]
  %v1654 = vld [vmem:[%s15 + $0x2e8] sm:$0xff]
  %v1655 = vld [vmem:[%s15 + $0x2f0] sm:$0xff]
  %v1656 = vld [vmem:[%s15 + $0x2f8] sm:$0xff]
  %v1657 = vld [vmem:[%s15 + $0x300] sm:$0xff]
  %v1658 = vld [vmem:[%s15 + $0x308] sm:$0xff]
  %v1659 = vld [vmem:[%s15 + $0x310] sm:$0xff]
  %v1660 = vld [vmem:[%s15 + $0x318] sm:$0xff]
  %v1661 = vld [vmem:[%s15 + $0x320] sm:$0xff]
  %v1662 = vld [vmem:[%s15 + $0x328] sm:$0xff]
  %v1663 = vld [vmem:[%s15 + $0x330] sm:$0xff]
  %v1664 = vld [vmem:[%s15 + $0x338] sm:$0xff]
  %v1665 = vld [vmem:[%s15 + $0x340] sm:$0xff]
  %v1666 = vld [vmem:[%s15 + $0x348] sm:$0xff]
  %v1667 = vld [vmem:[%s15 + $0x350] sm:$0xff]
  %v1668 = vld [vmem:[%s15 + $0x358] sm:$0xff]
  %v1669 = vld [vmem:[%s15 + $0x360] sm:$0xff]
  %v1670 = vld [vmem:[%s15 + $0x368] sm:$0xff]
  %v1671 = vld [vmem:[%s15 + $0x370] sm:$0xff]
  %v1672 = vld [vmem:[%s15 + $0x378] sm:$0xff]
  %v1673 = vld [vmem:[%s15 + $0x380] sm:$0xff]
  %v1674 = vld [vmem:[%s15 + $0x388] sm:$0xff]
  %v1675 = vld [vmem:[%s15 + $0x390] sm:$0xff]
  %v1676 = vld [vmem:[%s15 + $0x398] sm:$0xff]
  %v1677 = vld [vmem:[%s15 + $0x3a0] sm:$0xff]
  %v1678 = vld [vmem:[%s15 + $0x3a8] sm:$0xff]
  %v1679 = vld [vmem:[%s15 + $0x3b0] sm:$0xff]
  %v1680 = vld [vmem:[%s15 + $0x3b8] sm:$0xff]
  %v1681 = vld [vmem:[%s15 + $0x3c0] sm:$0xff]
  %v1682 = vld [vmem:[%s15 + $0x3c8] sm:$0xff]
  %v1683 = vld [vmem:[%s15 + $0x3d0] sm:$0xff]
  %v1684 = vld [vmem:[%s15 + $0x3d8] sm:$0xff]
  %v1685 = vld [vmem:[%s15 + $0x3e0] sm:$0xff]
  %v1686 = vld [vmem:[%s15 + $0x3e8] sm:$0xff]
  %v1687 = vld [vmem:[%s15 + $0x3f0] sm:$0xff]
  %v1688 = vld [vmem:[%s15 + $0x3f8] sm:$0xff]
  %v1689 = vld [vmem:[%s15 + $0x400] sm:$0xff]
  %v1690 = vld [vmem:[%s15 + $0x408] sm:$0xff]
  %v1691 = vld [vmem:[%s15 + $0x410] sm:$0xff]
  %v1692 = vld [vmem:[%s15 + $0x418] sm:$0xff]
  %v1693 = vld [vmem:[%s15 + $0x420] sm:$0xff]
  %v1694 = vld [vmem:[%s15 + $0x428] sm:$0xff]
  %v1695 = vld [vmem:[%s15 + $0x430] sm:$0xff]
  %v1696 = vld [vmem:[%s15 + $0x438] sm:$0xff]
  %v1697 = vld [vmem:[%s15 + $0x440] sm:$0xff]
  %v1698 = vld [vmem:[%s15 + $0x448] sm:$0xff]
  %v1699 = vld [vmem:[%s15 + $0x450] sm:$0xff]
  %v1700 = vld [vmem:[%s15 + $0x458] sm:$0xff]
  %v1701 = vld [vmem:[%s15 + $0x460] sm:$0xff]
  %v1702 = vld [vmem:[%s15 + $0x468] sm:$0xff]
  %v1703 = vld [vmem:[%s15 + $0x470] sm:$0xff]
  %v1704 = vld [vmem:[%s15 + $0x478] sm:$0xff]
  %v1705 = vld [vmem:[%s15 + $0x480] sm:$0xff]
  %v1706 = vld [vmem:[%s15 + $0x488] sm:$0xff]
  %v1707 = vld [vmem:[%s15 + $0x490] sm:$0xff]
  %v1708 = vld [vmem:[%s15 + $0x498] sm:$0xff]
  %v1709 = vld [vmem:[%s15 + $0x4a0] sm:$0xff]
  %v1710 = vld [vmem:[%s15 + $0x4a8] sm:$0xff]
  %v1711 = vld [vmem:[%s15 + $0x4b0] sm:$0xff]
  %v1712 = vld [vmem:[%s15 + $0x4b8] sm:$0xff]
  %v1713 = vld [vmem:[%s15 + $0x4c0] sm:$0xff]
  %v1714 = vld [vmem:[%s15 + $0x4c8] sm:$0xff]
  %v1715 = vld [vmem:[%s15 + $0x4d0] sm:$0xff]
  %v1716 = vld [vmem:[%s15 + $0x4d8] sm:$0xff]
  %v1717 = vld [vmem:[%s15 + $0x4e0] sm:$0xff]
  %v1718 = vld [vmem:[%s15 + $0x4e8] sm:$0xff]
  %v1719 = vld [vmem:[%s15 + $0x4f0] sm:$0xff]
  %v1720 = vld [vmem:[%s15 + $0x4f8] sm:$0xff]
  %v1721 = vld [vmem:[%s15 + $0x500] sm:$0xff]
  %v1722 = vld [vmem:[%s15 + $0x508] sm:$0xff]
  %v1723 = vld [vmem:[%s15 + $0x510] sm:$0xff]
  %v1724 = vld [vmem:[%s15 + $0x518] sm:$0xff]
  %v1725 = vld [vmem:[%s15 + $0x520] sm:$0xff]
  %v1726 = vld [vmem:[%s15 + $0x528] sm:$0xff]
  %v1727 = vld [vmem:[%s15 + $0x530] sm:$0xff]
  %v1728 = vld [vmem:[%s15 + $0x538] sm:$0xff]
  %v1729 = vld [vmem:[%s15 + $0x540] sm:$0xff]
  %v1730 = vld [vmem:[%s15 + $0x548] sm:$0xff]
  %v1731 = vld [vmem:[%s15 + $0x550] sm:$0xff]
  %v1732 = vld [vmem:[%s15 + $0x558] sm:$0xff]
  %v1733 = vld [vmem:[%s15 + $0x560] sm:$0xff]
  %v1734 = vld [vmem:[%s15 + $0x568] sm:$0xff]
  %v1735 = vld [vmem:[%s15 + $0x570] sm:$0xff]
  %v1736 = vld [vmem:[%s15 + $0x578] sm:$0xff]
  %v1737 = vld [vmem:[%s15 + $0x580] sm:$0xff]
  %v1738 = vld [vmem:[%s15 + $0x588] sm:$0xff]
  %v1739 = vld [vmem:[%s15 + $0x590] sm:$0xff]
  %v1740 = vld [vmem:[%s15 + $0x598] sm:$0xff]
  %v1741 = vld [vmem:[%s15 + $0x5a0] sm:$0xff]
  %v1742 = vld [vmem:[%s15 + $0x5a8] sm:$0xff]
  %v1743 = vld [vmem:[%s15 + $0x5b0] sm:$0xff]
  %v1744 = vld [vmem:[%s15 + $0x5b8] sm:$0xff]
  %v1745 = vld [vmem:[%s15 + $0x5c0] sm:$0xff]
  %v1746 = vld [vmem:[%s15 + $0x5c8] sm:$0xff]
  %v1747 = vld [vmem:[%s15 + $0x5d0] sm:$0xff]
  %v1748 = vld [vmem:[%s15 + $0x5d8] sm:$0xff]
  %v1749 = vld [vmem:[%s15 + $0x5e0] sm:$0xff]
  %v1750 = vld [vmem:[%s15 + $0x5e8] sm:$0xff]
  %v1751 = vld [vmem:[%s15 + $0x5f0] sm:$0xff]
  %v1752 = vld [vmem:[%s15 + $0x5f8] sm:$0xff]
  %v1753 = vld [vmem:[%s15 + $0x600] sm:$0xff]
  %v1754 = vld [vmem:[%s15 + $0x608] sm:$0xff]
  %v1755 = vld [vmem:[%s15 + $0x610] sm:$0xff]
  %v1756 = vld [vmem:[%s15 + $0x618] sm:$0xff]
  %v1757 = vld [vmem:[%s15 + $0x620] sm:$0xff]
  %v1758 = vld [vmem:[%s15 + $0x628] sm:$0xff]
  %v1759 = vld [vmem:[%s15 + $0x630] sm:$0xff]
  %v1760 = vld [vmem:[%s15 + $0x638] sm:$0xff]
  %v1761 = vld [vmem:[%s15 + $0x640] sm:$0xff]
  %v1762 = vld [vmem:[%s15 + $0x648] sm:$0xff]
  %v1763 = vld [vmem:[%s15 + $0x650] sm:$0xff]
  %v1764 = vld [vmem:[%s15 + $0x658] sm:$0xff]
  %v1765 = vld [vmem:[%s15 + $0x660] sm:$0xff]
  %v1766 = vld [vmem:[%s15 + $0x668] sm:$0xff]
  %v1767 = vld [vmem:[%s15 + $0x670] sm:$0xff]
  %v1768 = vld [vmem:[%s15 + $0x678] sm:$0xff]
  %v1769 = vld [vmem:[%s15 + $0x680] sm:$0xff]
  %v1770 = vld [vmem:[%s15 + $0x688] sm:$0xff]
  %v1771 = vld [vmem:[%s15 + $0x690] sm:$0xff]
  %v1772 = vld [vmem:[%s15 + $0x698] sm:$0xff]
  %v1773 = vld [vmem:[%s15 + $0x6a0] sm:$0xff]
  %v1774 = vld [vmem:[%s15 + $0x6a8] sm:$0xff]
  %v1775 = vld [vmem:[%s15 + $0x6b0] sm:$0xff]
  %v1776 = vld [vmem:[%s15 + $0x6b8] sm:$0xff]
  %v1777 = vld [vmem:[%s15 + $0x6c0] sm:$0xff]
  %v1778 = vld [vmem:[%s15 + $0x6c8] sm:$0xff]
  %v1779 = vld [vmem:[%s15 + $0x6d0] sm:$0xff]
  %v1780 = vld [vmem:[%s15 + $0x6d8] sm:$0xff]
  %v1781 = vld [vmem:[%s15 + $0x6e0] sm:$0xff]
  %v1782 = vld [vmem:[%s15 + $0x6e8] sm:$0xff]
  %v1783 = vld [vmem:[%s15 + $0x6f0] sm:$0xff]
  %v1784 = vld [vmem:[%s15 + $0x6f8] sm:$0xff]
  %v1785 = vld [vmem:[%s15 + $0x700] sm:$0xff]
  %v1786 = vld [vmem:[%s15 + $0x708] sm:$0xff]
  %v1787 = vld [vmem:[%s15 + $0x710] sm:$0xff]
  %v1788 = vld [vmem:[%s15 + $0x718] sm:$0xff]
  %v1789 = vld [vmem:[%s15 + $0x720] sm:$0xff]
  %v1790 = vld [vmem:[%s15 + $0x728] sm:$0xff]
  %v1791 = vld [vmem:[%s15 + $0x730] sm:$0xff]
  %v1792 = vld [vmem:[%s15 + $0x738] sm:$0xff]
  %v1793 = vld [vmem:[%s15 + $0x740] sm:$0xff]
  %v1794 = vld [vmem:[%s15 + $0x748] sm:$0xff]
  %v1795 = vld [vmem:[%s15 + $0x750] sm:$0xff]
  %v1796 = vld [vmem:[%s15 + $0x758] sm:$0xff]
  %v1797 = vld [vmem:[%s15 + $0x760] sm:$0xff]
  %v1798 = vld [vmem:[%s15 + $0x768] sm:$0xff]
  %v1799 = vld [vmem:[%s15 + $0x770] sm:$0xff]
  %v1800 = vld [vmem:[%s15 + $0x778] sm:$0xff]
  %v1801 = vld [vmem:[%s16] sm:$0x3]
  %v1802 = vld [vmem:[%s16 + $0x2] sm:$0x3]
  %v1803 = vld [vmem:[%s16 + $0x4] sm:$0x3]
  %v1804 = vld [vmem:[%s16 + $0x6] sm:$0x3]
  %v1805 = vld [vmem:[%s16 + $0x8] sm:$0x3]
  %v1806 = vld [vmem:[%s16 + $0xa] sm:$0x3]
  %v1808 = vperm.slane %v1801, 0
  %v1809 = vperm.slane %v1801, 1
  %v1812 = vsel %vm153, %v1542, 0
  %v1814 = vsel %vm153, %v1544, 0
  %v1816 = vsel %vm153, %v1546, 0
  %v1818 = vsel %vm153, %v1548, 0
  %1820 = vmatpush.msra.mxu0 %v1591
  %1821 = vmatpush.msra.mxu0 %v1589
  %1822 = vmatpush.msra.mxu0 %v1587
  %1823 = vmatpush.msra.mxu0 %v1585
  %1824 = vmatpush.msra.mxu0 %v1583
  %1825 = vmatpush.msra.mxu0 %v1581
  %1826 = vmatpush.msra.mxu0 %v1579
  %1827 = vmatpush.msra.mxu0 %v1577
  %1828 = vmatpush.msra.mxu0 %v1575
  %1829 = vmatpush.msra.mxu0 %v1573
  %1830 = vmatpush.msra.mxu0 %v1571
  %1831 = vmatpush.msra.mxu0 %v1569
  %1832 = vmatpush.msra.mxu0 %v1567
  %1833 = vmatpush.msra.mxu0 %v1565
  %1834 = vmatpush.msra.mxu0 %v1563
  %1835 = vmatpush.msra.mxu0 %v1561
  %1836 = vmatmul.f32.gmra.mxu0 %v1557
  %v1837 = vpop.f32.mrf.mxu0
  %v1838 = vadd.f32 %v1808, %v1837
  %1839 = vmatmul.f32.gmra.mxu0 %v1558
  %v1840 = vpop.f32.mrf.mxu0
  %v1841 = vadd.f32 %v1808, %v1840
  %1842 = vmatmul.f32.gmra.mxu0 %v1559
  %v1843 = vpop.f32.mrf.mxu0
  %v1844 = vadd.f32 %v1808, %v1843
  %1845 = vmatmul.f32.gmra.mxu0 %v1560
  %v1846 = vpop.f32.mrf.mxu0
  %v1847 = vadd.f32 %v1808, %v1846
  %1848 = vdwg.mxu0
  %1849 = vmatpush.msra.mxu0 0.0
  %1850 = vmatpush.msra.mxu0 0.0
  %1851 = vmatpush.msra.mxu0 0.0
  %1852 = vmatpush.msra.mxu0 0.0
  %1853 = vmatpush.msra.mxu0 0.0
  %1854 = vmatpush.msra.mxu0 0.0
  %1855 = vmatpush.msra.mxu0 0.0
  %1856 = vmatpush.msra.mxu0 0.0
  %1857 = vmatpush.msra.mxu0 0.0
  %1858 = vmatpush.msra.mxu0 0.0
  %1859 = vmatpush.msra.mxu0 0.0
  %1860 = vmatpush.msra.mxu0 0.0
  %1861 = vmatpush.msra.mxu0 %v1599
  %1862 = vmatpush.msra.mxu0 %v1597
  %1863 = vmatpush.msra.mxu0 %v1595
  %1864 = vmatpush.msra.mxu0 %v1593
  %1865 = vmatmul.f32.gmra.mxu0 %v1812
  %v1866 = vpop.f32.mrf.mxu0
  %v1867 = vadd.f32 %v1838, %v1866
  %1868 = vmatmul.f32.gmra.mxu0 %v1814
  %v1869 = vpop.f32.mrf.mxu0
  %v1870 = vadd.f32 %v1841, %v1869
  %1871 = vmatmul.f32.gmra.mxu0 %v1816
  %v1872 = vpop.f32.mrf.mxu0
  %v1873 = vadd.f32 %v1844, %v1872
  %1874 = vmatmul.f32.gmra.mxu0 %v1818
  %v1875 = vpop.f32.mrf.mxu0
  %v1876 = vadd.f32 %v1847, %v1875
  %1877 = vdwg.mxu0
  %1878 = vmatpush.msra.mxu0 %v1592
  %1879 = vmatpush.msra.mxu0 %v1590
  %1880 = vmatpush.msra.mxu0 %v1588
  %1881 = vmatpush.msra.mxu0 %v1586
  %1882 = vmatpush.msra.mxu0 %v1584
  %1883 = vmatpush.msra.mxu0 %v1582
  %1884 = vmatpush.msra.mxu0 %v1580
  %1885 = vmatpush.msra.mxu0 %v1578
  %1886 = vmatpush.msra.mxu0 %v1576
  %1887 = vmatpush.msra.mxu0 %v1574
  %1888 = vmatpush.msra.mxu0 %v1572
  %1889 = vmatpush.msra.mxu0 %v1570
  %1890 = vmatpush.msra.mxu0 %v1568
  %1891 = vmatpush.msra.mxu0 %v1566
  %1892 = vmatpush.msra.mxu0 %v1564
  %1893 = vmatpush.msra.mxu0 %v1562
  %1894 = vmatmul.f32.gmra.mxu0 %v1557
  %v1895 = vpop.f32.mrf.mxu0
  %v1896 = vadd.f32 %v1809, %v1895
  %1897 = vmatmul.f32.gmra.mxu0 %v1558
  %v1898 = vpop.f32.mrf.mxu0
  %v1899 = vadd.f32 %v1809, %v1898
  %1900 = vmatmul.f32.gmra.mxu0 %v1559
  %v1901 = vpop.f32.mrf.mxu0
  %v1902 = vadd.f32 %v1809, %v1901
  %1903 = vmatmul.f32.gmra.mxu0 %v1560
  %v1904 = vpop.f32.mrf.mxu0
  %v1905 = vadd.f32 %v1809, %v1904
  %1906 = vdwg.mxu0
  %1907 = vmatpush.msra.mxu0 0.0
  %1908 = vmatpush.msra.mxu0 0.0
  %1909 = vmatpush.msra.mxu0 0.0
  %1910 = vmatpush.msra.mxu0 0.0
  %1911 = vmatpush.msra.mxu0 0.0
  %1912 = vmatpush.msra.mxu0 0.0
  %1913 = vmatpush.msra.mxu0 0.0
  %1914 = vmatpush.msra.mxu0 0.0
  %1915 = vmatpush.msra.mxu0 0.0
  %1916 = vmatpush.msra.mxu0 0.0
  %1917 = vmatpush.msra.mxu0 0.0
  %1918 = vmatpush.msra.mxu0 0.0
  %1919 = vmatpush.msra.mxu0 %v1600
  %1920 = vmatpush.msra.mxu0 %v1598
  %1921 = vmatpush.msra.mxu0 %v1596
  %1922 = vmatpush.msra.mxu0 %v1594
  %1923 = vmatmul.f32.gmra.mxu0 %v1812
  %v1924 = vpop.f32.mrf.mxu0
  %v1925 = vadd.f32 %v1896, %v1924
  %1926 = vmatmul.f32.gmra.mxu0 %v1814
  %v1927 = vpop.f32.mrf.mxu0
  %v1928 = vadd.f32 %v1899, %v1927
  %1929 = vmatmul.f32.gmra.mxu0 %v1816
  %v1930 = vpop.f32.mrf.mxu0
  %v1931 = vadd.f32 %v1902, %v1930
  %1932 = vmatmul.f32.gmra.mxu0 %v1818
  %v1933 = vpop.f32.mrf.mxu0
  %v1934 = vadd.f32 %v1905, %v1933
  %1935 = vdwg.mxu0
  %v1936 = vmax.f32 %v1867, 0.0
  %v1937 = vmax.f32 %v1925, 0.0
  %v1938 = vmax.f32 %v1870, 0.0
  %v1939 = vmax.f32 %v1928, 0.0
  %v1940 = vmax.f32 %v1873, 0.0
  %v1941 = vmax.f32 %v1931, 0.0
  %v1942 = vmax.f32 %v1876, 0.0
  %v1943 = vmax.f32 %v1934, 0.0
  %v1945 = vsel %vm153, %v1937, 0
  %v1948 = vsel %vm153, %v1939, 0
  %v1951 = vsel %vm153, %v1941, 0
  %v1954 = vsel %vm153, %v1943, 0
  %1956 = vmatpush.msra.mxu0 %v1631
  %1957 = vmatpush.msra.mxu0 %v1629
  %1958 = vmatpush.msra.mxu0 %v1627
  %1959 = vmatpush.msra.mxu0 %v1625
  %1960 = vmatpush.msra.mxu0 %v1623
  %1961 = vmatpush.msra.mxu0 %v1621
  %1962 = vmatpush.msra.mxu0 %v1619
  %1963 = vmatpush.msra.mxu0 %v1617
  %1964 = vmatpush.msra.mxu0 %v1615
  %1965 = vmatpush.msra.mxu0 %v1613
  %1966 = vmatpush.msra.mxu0 %v1611
  %1967 = vmatpush.msra.mxu0 %v1609
  %1968 = vmatpush.msra.mxu0 %v1607
  %1969 = vmatpush.msra.mxu0 %v1605
  %1970 = vmatpush.msra.mxu0 %v1603
  %1971 = vmatpush.msra.mxu0 %v1601
  %1972 = vmatmul.f32.gmra.mxu0 %v1936
  %v1973 = vpop.f32.mrf.mxu0
  %v1974 = vadd.f32 0.0, %v1973
  %1975 = vmatmul.f32.gmra.mxu0 %v1938
  %v1976 = vpop.f32.mrf.mxu0
  %v1977 = vadd.f32 0.0, %v1976
  %1978 = vmatmul.f32.gmra.mxu0 %v1940
  %v1979 = vpop.f32.mrf.mxu0
  %v1980 = vadd.f32 0.0, %v1979
  %1981 = vmatmul.f32.gmra.mxu0 %v1942
  %v1982 = vpop.f32.mrf.mxu0
  %v1983 = vadd.f32 0.0, %v1982
  %1984 = vdwg.mxu0
  %1985 = vmatpush.msra.mxu0 0.0
  %1986 = vmatpush.msra.mxu0 0.0
  %1987 = vmatpush.msra.mxu0 0.0
  %1988 = vmatpush.msra.mxu0 0.0
  %1989 = vmatpush.msra.mxu0 0.0
  %1990 = vmatpush.msra.mxu0 0.0
  %1991 = vmatpush.msra.mxu0 0.0
  %1992 = vmatpush.msra.mxu0 0.0
  %1993 = vmatpush.msra.mxu0 0.0
  %1994 = vmatpush.msra.mxu0 0.0
  %1995 = vmatpush.msra.mxu0 0.0
  %1996 = vmatpush.msra.mxu0 0.0
  %1997 = vmatpush.msra.mxu0 %v1639
  %1998 = vmatpush.msra.mxu0 %v1637
  %1999 = vmatpush.msra.mxu0 %v1635
  %2000 = vmatpush.msra.mxu0 %v1633
  %2001 = vmatmul.f32.gmra.mxu0 %v1945
  %v2002 = vpop.f32.mrf.mxu0
  %v2003 = vadd.f32 %v1974, %v2002
  %2004 = vmatmul.f32.gmra.mxu0 %v1948
  %v2005 = vpop.f32.mrf.mxu0
  %v2006 = vadd.f32 %v1977, %v2005
  %2007 = vmatmul.f32.gmra.mxu0 %v1951
  %v2008 = vpop.f32.mrf.mxu0
  %v2009 = vadd.f32 %v1980, %v2008
  %2010 = vmatmul.f32.gmra.mxu0 %v1954
  %v2011 = vpop.f32.mrf.mxu0
  %v2012 = vadd.f32 %v1983, %v2011
  %2013 = vdwg.mxu0
  %2014 = vmatpush.msra.mxu0 %v1632
  %2015 = vmatpush.msra.mxu0 %v1630
  %2016 = vmatpush.msra.mxu0 %v1628
  %2017 = vmatpush.msra.mxu0 %v1626
  %2018 = vmatpush.msra.mxu0 %v1624
  %2019 = vmatpush.msra.mxu0 %v1622
  %2020 = vmatpush.msra.mxu0 %v1620
  %2021 = vmatpush.msra.mxu0 %v1618
  %2022 = vmatpush.msra.mxu0 %v1616
  %2023 = vmatpush.msra.mxu0 %v1614
  %2024 = vmatpush.msra.mxu0 %v1612
  %2025 = vmatpush.msra.mxu0 %v1610
  %2026 = vmatpush.msra.mxu0 %v1608
  %2027 = vmatpush.msra.mxu0 %v1606
  %2028 = vmatpush.msra.mxu0 %v1604
  %2029 = vmatpush.msra.mxu0 %v1602
  %2030 = vmatmul.f32.gmra.mxu0 %v1936
  %v2031 = vpop.f32.mrf.mxu0
  %v2032 = vadd.f32 0.0, %v2031
  %2033 = vmatmul.f32.gmra.mxu0 %v1938
  %v2034 = vpop.f32.mrf.mxu0
  %v2035 = vadd.f32 0.0, %v2034
  %2036 = vmatmul.f32.gmra.mxu0 %v1940
  %v2037 = vpop.f32.mrf.mxu0
  %v2038 = vadd.f32 0.0, %v2037
  %2039 = vmatmul.f32.gmra.mxu0 %v1942
  %v2040 = vpop.f32.mrf.mxu0
  %v2041 = vadd.f32 0.0, %v2040
  %2042 = vdwg.mxu0
  %2043 = vmatpush.msra.mxu0 0.0
  %2044 = vmatpush.msra.mxu0 0.0
  %2045 = vmatpush.msra.mxu0 0.0
  %2046 = vmatpush.msra.mxu0 0.0
  %2047 = vmatpush.msra.mxu0 0.0
  %2048 = vmatpush.msra.mxu0 0.0
  %2049 = vmatpush.msra.mxu0 0.0
  %2050 = vmatpush.msra.mxu0 0.0
  %2051 = vmatpush.msra.mxu0 0.0
  %2052 = vmatpush.msra.mxu0 0.0
  %2053 = vmatpush.msra.mxu0 0.0
  %2054 = vmatpush.msra.mxu0 0.0
  %2055 = vmatpush.msra.mxu0 %v1640
  %2056 = vmatpush.msra.mxu0 %v1638
  %2057 = vmatpush.msra.mxu0 %v1636
  %2058 = vmatpush.msra.mxu0 %v1634
  %2059 = vmatmul.f32.gmra.mxu0 %v1945
  %v2060 = vpop.f32.mrf.mxu0
  %v2061 = vadd.f32 %v2032, %v2060
  %2062 = vmatmul.f32.gmra.mxu0 %v1948
  %v2063 = vpop.f32.mrf.mxu0
  %v2064 = vadd.f32 %v2035, %v2063
  %2065 = vmatmul.f32.gmra.mxu0 %v1951
  %v2066 = vpop.f32.mrf.mxu0
  %v2067 = vadd.f32 %v2038, %v2066
  %2068 = vmatmul.f32.gmra.mxu0 %v1954
  %v2069 = vpop.f32.mrf.mxu0
  %v2070 = vadd.f32 %v2041, %v2069
  %2071 = vdwg.mxu0
  %v2072 = vadd.f32 %v1557, %v2003
  %v2073 = vadd.f32 %v1542, %v2061
  %v2074 = vadd.f32 %v1558, %v2006
  %v2075 = vadd.f32 %v1544, %v2064
  %v2076 = vadd.f32 %v1559, %v2009
  %v2077 = vadd.f32 %v1546, %v2067
  %v2078 = vadd.f32 %v1560, %v2012
  %v2079 = vadd.f32 %v1548, %v2070
  %v2081 = vperm.slane %v1802, 0
  %v2082 = vperm.slane %v1802, 1
  %v2085 = vadd.f32 %v2072, %v2081
  %v2086 = vadd.f32 %v2073, %v2082
  %v2087 = vadd.f32 %v2074, %v2081
  %v2088 = vadd.f32 %v2075, %v2082
  %v2089 = vadd.f32 %v2076, %v2081
  %v2090 = vadd.f32 %v2077, %v2082
  %v2091 = vadd.f32 %v2078, %v2081
  %v2092 = vadd.f32 %v2079, %v2082
  %v2094 = vperm.slane %v1803, 0
  %v2095 = vperm.slane %v1803, 1
  %v2099 = vsel %vm153, %v2086, 0
  %v2102 = vsel %vm153, %v2088, 0
  %v2105 = vsel %vm153, %v2090, 0
  %v2108 = vsel %vm153, %v2092, 0
  %2110 = vmatpush.msra.mxu0 %v1671
  %2111 = vmatpush.msra.mxu0 %v1669
  %2112 = vmatpush.msra.mxu0 %v1667
  %2113 = vmatpush.msra.mxu0 %v1665
  %2114 = vmatpush.msra.mxu0 %v1663
  %2115 = vmatpush.msra.mxu0 %v1661
  %2116 = vmatpush.msra.mxu0 %v1659
  %2117 = vmatpush.msra.mxu0 %v1657
  %2118 = vmatpush.msra.mxu0 %v1655
  %2119 = vmatpush.msra.mxu0 %v1653
  %2120 = vmatpush.msra.mxu0 %v1651
  %2121 = vmatpush.msra.mxu0 %v1649
  %2122 = vmatpush.msra.mxu0 %v1647
  %2123 = vmatpush.msra.mxu0 %v1645
  %2124 = vmatpush.msra.mxu0 %v1643
  %2125 = vmatpush.msra.mxu0 %v1641
  %2126 = vmatmul.f32.gmra.mxu0 %v2085
  %v2127 = vpop.f32.mrf.mxu0
  %v2128 = vadd.f32 %v2094, %v2127
  %2129 = vmatmul.f32.gmra.mxu0 %v2087
  %v2130 = vpop.f32.mrf.mxu0
  %v2131 = vadd.f32 %v2094, %v2130
  %2132 = vmatmul.f32.gmra.mxu0 %v2089
  %v2133 = vpop.f32.mrf.mxu0
  %v2134 = vadd.f32 %v2094, %v2133
  %2135 = vmatmul.f32.gmra.mxu0 %v2091
  %v2136 = vpop.f32.mrf.mxu0
  %v2137 = vadd.f32 %v2094, %v2136
  %2138 = vdwg.mxu0
  %2139 = vmatpush.msra.mxu0 0.0
  %2140 = vmatpush.msra.mxu0 0.0
  %2141 = vmatpush.msra.mxu0 0.0
  %2142 = vmatpush.msra.mxu0 0.0
  %2143 = vmatpush.msra.mxu0 0.0
  %2144 = vmatpush.msra.mxu0 0.0
  %2145 = vmatpush.msra.mxu0 0.0
  %2146 = vmatpush.msra.mxu0 0.0
  %2147 = vmatpush.msra.mxu0 0.0
  %2148 = vmatpush.msra.mxu0 0.0
  %2149 = vmatpush.msra.mxu0 0.0
  %2150 = vmatpush.msra.mxu0 0.0
  %2151 = vmatpush.msra.mxu0 %v1679
  %2152 = vmatpush.msra.mxu0 %v1677
  %2153 = vmatpush.msra.mxu0 %v1675
  %2154 = vmatpush.msra.mxu0 %v1673
  %2155 = vmatmul.f32.gmra.mxu0 %v2099
  %v2156 = vpop.f32.mrf.mxu0
  %v2157 = vadd.f32 %v2128, %v2156
  %2158 = vmatmul.f32.gmra.mxu0 %v2102
  %v2159 = vpop.f32.mrf.mxu0
  %v2160 = vadd.f32 %v2131, %v2159
  %2161 = vmatmul.f32.gmra.mxu0 %v2105
  %v2162 = vpop.f32.mrf.mxu0
  %v2163 = vadd.f32 %v2134, %v2162
  %2164 = vmatmul.f32.gmra.mxu0 %v2108
  %v2165 = vpop.f32.mrf.mxu0
  %v2166 = vadd.f32 %v2137, %v2165
  %2167 = vdwg.mxu0
  %2168 = vmatpush.msra.mxu0 %v1672
  %2169 = vmatpush.msra.mxu0 %v1670
  %2170 = vmatpush.msra.mxu0 %v1668
  %2171 = vmatpush.msra.mxu0 %v1666
  %2172 = vmatpush.msra.mxu0 %v1664
  %2173 = vmatpush.msra.mxu0 %v1662
  %2174 = vmatpush.msra.mxu0 %v1660
  %2175 = vmatpush.msra.mxu0 %v1658
  %2176 = vmatpush.msra.mxu0 %v1656
  %2177 = vmatpush.msra.mxu0 %v1654
  %2178 = vmatpush.msra.mxu0 %v1652
  %2179 = vmatpush.msra.mxu0 %v1650
  %2180 = vmatpush.msra.mxu0 %v1648
  %2181 = vmatpush.msra.mxu0 %v1646
  %2182 = vmatpush.msra.mxu0 %v1644
  %2183 = vmatpush.msra.mxu0 %v1642
  %2184 = vmatmul.f32.gmra.mxu0 %v2085
  %v2185 = vpop.f32.mrf.mxu0
  %v2186 = vadd.f32 %v2095, %v2185
  %2187 = vmatmul.f32.gmra.mxu0 %v2087
  %v2188 = vpop.f32.mrf.mxu0
  %v2189 = vadd.f32 %v2095, %v2188
  %2190 = vmatmul.f32.gmra.mxu0 %v2089
  %v2191 = vpop.f32.mrf.mxu0
  %v2192 = vadd.f32 %v2095, %v2191
  %2193 = vmatmul.f32.gmra.mxu0 %v2091
  %v2194 = vpop.f32.mrf.mxu0
  %v2195 = vadd.f32 %v2095, %v2194
  %2196 = vdwg.mxu0
  %2197 = vmatpush.msra.mxu0 0.0
  %2198 = vmatpush.msra.mxu0 0.0
  %2199 = vmatpush.msra.mxu0 0.0
  %2200 = vmatpush.msra.mxu0 0.0
  %2201 = vmatpush.msra.mxu0 0.0
  %2202 = vmatpush.msra.mxu0 0.0
  %2203 = vmatpush.msra.mxu0 0.0
  %2204 = vmatpush.msra.mxu0 0.0
  %2205 = vmatpush.msra.mxu0 0.0
  %2206 = vmatpush.msra.mxu0 0.0
  %2207 = vmatpush.msra.mxu0 0.0
  %2208 = vmatpush.msra.mxu0 0.0
  %2209 = vmatpush.msra.mxu0 %v1680
  %2210 = vmatpush.msra.mxu0 %v1678
  %2211 = vmatpush.msra.mxu0 %v1676
  %2212 = vmatpush.msra.mxu0 %v1674
  %2213 = vmatmul.f32.gmra.mxu0 %v2099
  %v2214 = vpop.f32.mrf.mxu0
  %v2215 = vadd.f32 %v2186, %v2214
  %2216 = vmatmul.f32.gmra.mxu0 %v2102
  %v2217 = vpop.f32.mrf.mxu0
  %v2218 = vadd.f32 %v2189, %v2217
  %2219 = vmatmul.f32.gmra.mxu0 %v2105
  %v2220 = vpop.f32.mrf.mxu0
  %v2221 = vadd.f32 %v2192, %v2220
  %2222 = vmatmul.f32.gmra.mxu0 %v2108
  %v2223 = vpop.f32.mrf.mxu0
  %v2224 = vadd.f32 %v2195, %v2223
  %2225 = vdwg.mxu0
  %v2226 = vmax.f32 %v2157, 0.0
  %v2227 = vmax.f32 %v2215, 0.0
  %v2228 = vmax.f32 %v2160, 0.0
  %v2229 = vmax.f32 %v2218, 0.0
  %v2230 = vmax.f32 %v2163, 0.0
  %v2231 = vmax.f32 %v2221, 0.0
  %v2232 = vmax.f32 %v2166, 0.0
  %v2233 = vmax.f32 %v2224, 0.0
  %v2235 = vsel %vm153, %v2227, 0
  %v2238 = vsel %vm153, %v2229, 0
  %v2241 = vsel %vm153, %v2231, 0
  %v2244 = vsel %vm153, %v2233, 0
  %2246 = vmatpush.msra.mxu0 %v1711
  %2247 = vmatpush.msra.mxu0 %v1709
  %2248 = vmatpush.msra.mxu0 %v1707
  %2249 = vmatpush.msra.mxu0 %v1705
  %2250 = vmatpush.msra.mxu0 %v1703
  %2251 = vmatpush.msra.mxu0 %v1701
  %2252 = vmatpush.msra.mxu0 %v1699
  %2253 = vmatpush.msra.mxu0 %v1697
  %2254 = vmatpush.msra.mxu0 %v1695
  %2255 = vmatpush.msra.mxu0 %v1693
  %2256 = vmatpush.msra.mxu0 %v1691
  %2257 = vmatpush.msra.mxu0 %v1689
  %2258 = vmatpush.msra.mxu0 %v1687
  %2259 = vmatpush.msra.mxu0 %v1685
  %2260 = vmatpush.msra.mxu0 %v1683
  %2261 = vmatpush.msra.mxu0 %v1681
  %2262 = vmatmul.f32.gmra.mxu0 %v2226
  %v2263 = vpop.f32.mrf.mxu0
  %v2264 = vadd.f32 0.0, %v2263
  %2265 = vmatmul.f32.gmra.mxu0 %v2228
  %v2266 = vpop.f32.mrf.mxu0
  %v2267 = vadd.f32 0.0, %v2266
  %2268 = vmatmul.f32.gmra.mxu0 %v2230
  %v2269 = vpop.f32.mrf.mxu0
  %v2270 = vadd.f32 0.0, %v2269
  %2271 = vmatmul.f32.gmra.mxu0 %v2232
  %v2272 = vpop.f32.mrf.mxu0
  %v2273 = vadd.f32 0.0, %v2272
  %2274 = vdwg.mxu0
  %2275 = vmatpush.msra.mxu0 0.0
  %2276 = vmatpush.msra.mxu0 0.0
  %2277 = vmatpush.msra.mxu0 0.0
  %2278 = vmatpush.msra.mxu0 0.0
  %2279 = vmatpush.msra.mxu0 0.0
  %2280 = vmatpush.msra.mxu0 0.0
  %2281 = vmatpush.msra.mxu0 0.0
  %2282 = vmatpush.msra.mxu0 0.0
  %2283 = vmatpush.msra.mxu0 0.0
  %2284 = vmatpush.msra.mxu0 0.0
  %2285 = vmatpush.msra.mxu0 0.0
  %2286 = vmatpush.msra.mxu0 0.0
  %2287 = vmatpush.msra.mxu0 %v1719
  %2288 = vmatpush.msra.mxu0 %v1717
  %2289 = vmatpush.msra.mxu0 %v1715
  %2290 = vmatpush.msra.mxu0 %v1713
  %2291 = vmatmul.f32.gmra.mxu0 %v2235
  %v2292 = vpop.f32.mrf.mxu0
  %v2293 = vadd.f32 %v2264, %v2292
  %2294 = vmatmul.f32.gmra.mxu0 %v2238
  %v2295 = vpop.f32.mrf.mxu0
  %v2296 = vadd.f32 %v2267, %v2295
  %2297 = vmatmul.f32.gmra.mxu0 %v2241
  %v2298 = vpop.f32.mrf.mxu0
  %v2299 = vadd.f32 %v2270, %v2298
  %2300 = vmatmul.f32.gmra.mxu0 %v2244
  %v2301 = vpop.f32.mrf.mxu0
  %v2302 = vadd.f32 %v2273, %v2301
  %2303 = vdwg.mxu0
  %2304 = vmatpush.msra.mxu0 %v1712
  %2305 = vmatpush.msra.mxu0 %v1710
  %2306 = vmatpush.msra.mxu0 %v1708
  %2307 = vmatpush.msra.mxu0 %v1706
  %2308 = vmatpush.msra.mxu0 %v1704
  %2309 = vmatpush.msra.mxu0 %v1702
  %2310 = vmatpush.msra.mxu0 %v1700
  %2311 = vmatpush.msra.mxu0 %v1698
  %2312 = vmatpush.msra.mxu0 %v1696
  %2313 = vmatpush.msra.mxu0 %v1694
  %2314 = vmatpush.msra.mxu0 %v1692
  %2315 = vmatpush.msra.mxu0 %v1690
  %2316 = vmatpush.msra.mxu0 %v1688
  %2317 = vmatpush.msra.mxu0 %v1686
  %2318 = vmatpush.msra.mxu0 %v1684
  %2319 = vmatpush.msra.mxu0 %v1682
  %2320 = vmatmul.f32.gmra.mxu0 %v2226
  %v2321 = vpop.f32.mrf.mxu0
  %v2322 = vadd.f32 0.0, %v2321
  %2323 = vmatmul.f32.gmra.mxu0 %v2228
  %v2324 = vpop.f32.mrf.mxu0
  %v2325 = vadd.f32 0.0, %v2324
  %2326 = vmatmul.f32.gmra.mxu0 %v2230
  %v2327 = vpop.f32.mrf.mxu0
  %v2328 = vadd.f32 0.0, %v2327
  %2329 = vmatmul.f32.gmra.mxu0 %v2232
  %v2330 = vpop.f32.mrf.mxu0
  %v2331 = vadd.f32 0.0, %v2330
  %2332 = vdwg.mxu0
  %2333 = vmatpush.msra.mxu0 0.0
  %2334 = vmatpush.msra.mxu0 0.0
  %2335 = vmatpush.msra.mxu0 0.0
  %2336 = vmatpush.msra.mxu0 0.0
  %2337 = vmatpush.msra.mxu0 0.0
  %2338 = vmatpush.msra.mxu0 0.0
  %2339 = vmatpush.msra.mxu0 0.0
  %2340 = vmatpush.msra.mxu0 0.0
  %2341 = vmatpush.msra.mxu0 0.0
  %2342 = vmatpush.msra.mxu0 0.0
  %2343 = vmatpush.msra.mxu0 0.0
  %2344 = vmatpush.msra.mxu0 0.0
  %2345 = vmatpush.msra.mxu0 %v1720
  %2346 = vmatpush.msra.mxu0 %v1718
  %2347 = vmatpush.msra.mxu0 %v1716
  %2348 = vmatpush.msra.mxu0 %v1714
  %2349 = vmatmul.f32.gmra.mxu0 %v2235
  %v2350 = vpop.f32.mrf.mxu0
  %v2351 = vadd.f32 %v2322, %v2350
  %2352 = vmatmul.f32.gmra.mxu0 %v2238
  %v2353 = vpop.f32.mrf.mxu0
  %v2354 = vadd.f32 %v2325, %v2353
  %2355 = vmatmul.f32.gmra.mxu0 %v2241
  %v2356 = vpop.f32.mrf.mxu0
  %v2357 = vadd.f32 %v2328, %v2356
  %2358 = vmatmul.f32.gmra.mxu0 %v2244
  %v2359 = vpop.f32.mrf.mxu0
  %v2360 = vadd.f32 %v2331, %v2359
  %2361 = vdwg.mxu0
  %v2362 = vadd.f32 %v2085, %v2293
  %v2363 = vadd.f32 %v2086, %v2351
  %v2364 = vadd.f32 %v2087, %v2296
  %v2365 = vadd.f32 %v2088, %v2354
  %v2366 = vadd.f32 %v2089, %v2299
  %v2367 = vadd.f32 %v2090, %v2357
  %v2368 = vadd.f32 %v2091, %v2302
  %v2369 = vadd.f32 %v2092, %v2360
  %v2371 = vperm.slane %v1804, 0
  %v2372 = vperm.slane %v1804, 1
  %v2375 = vadd.f32 %v2362, %v2371
  %v2376 = vadd.f32 %v2363, %v2372
  %v2377 = vadd.f32 %v2364, %v2371
  %v2378 = vadd.f32 %v2365, %v2372
  %v2379 = vadd.f32 %v2366, %v2371
  %v2380 = vadd.f32 %v2367, %v2372
  %v2381 = vadd.f32 %v2368, %v2371
  %v2382 = vadd.f32 %v2369, %v2372
  %v2384 = vperm.slane %v1805, 0
  %v2385 = vperm.slane %v1805, 1
  %v2389 = vsel %vm153, %v2376, 0
  %v2392 = vsel %vm153, %v2378, 0
  %v2395 = vsel %vm153, %v2380, 0
  %v2398 = vsel %vm153, %v2382, 0
  %2400 = vmatpush.msra.mxu0 %v1751
  %2401 = vmatpush.msra.mxu0 %v1749
  %2402 = vmatpush.msra.mxu0 %v1747
  %2403 = vmatpush.msra.mxu0 %v1745
  %2404 = vmatpush.msra.mxu0 %v1743
  %2405 = vmatpush.msra.mxu0 %v1741
  %2406 = vmatpush.msra.mxu0 %v1739
  %2407 = vmatpush.msra.mxu0 %v1737
  %2408 = vmatpush.msra.mxu0 %v1735
  %2409 = vmatpush.msra.mxu0 %v1733
  %2410 = vmatpush.msra.mxu0 %v1731
  %2411 = vmatpush.msra.mxu0 %v1729
  %2412 = vmatpush.msra.mxu0 %v1727
  %2413 = vmatpush.msra.mxu0 %v1725
  %2414 = vmatpush.msra.mxu0 %v1723
  %2415 = vmatpush.msra.mxu0 %v1721
  %2416 = vmatmul.f32.gmra.mxu0 %v2375
  %v2417 = vpop.f32.mrf.mxu0
  %v2418 = vadd.f32 %v2384, %v2417
  %2419 = vmatmul.f32.gmra.mxu0 %v2377
  %v2420 = vpop.f32.mrf.mxu0
  %v2421 = vadd.f32 %v2384, %v2420
  %2422 = vmatmul.f32.gmra.mxu0 %v2379
  %v2423 = vpop.f32.mrf.mxu0
  %v2424 = vadd.f32 %v2384, %v2423
  %2425 = vmatmul.f32.gmra.mxu0 %v2381
  %v2426 = vpop.f32.mrf.mxu0
  %v2427 = vadd.f32 %v2384, %v2426
  %2428 = vdwg.mxu0
  %2429 = vmatpush.msra.mxu0 0.0
  %2430 = vmatpush.msra.mxu0 0.0
  %2431 = vmatpush.msra.mxu0 0.0
  %2432 = vmatpush.msra.mxu0 0.0
  %2433 = vmatpush.msra.mxu0 0.0
  %2434 = vmatpush.msra.mxu0 0.0
  %2435 = vmatpush.msra.mxu0 0.0
  %2436 = vmatpush.msra.mxu0 0.0
  %2437 = vmatpush.msra.mxu0 0.0
  %2438 = vmatpush.msra.mxu0 0.0
  %2439 = vmatpush.msra.mxu0 0.0
  %2440 = vmatpush.msra.mxu0 0.0
  %2441 = vmatpush.msra.mxu0 %v1759
  %2442 = vmatpush.msra.mxu0 %v1757
  %2443 = vmatpush.msra.mxu0 %v1755
  %2444 = vmatpush.msra.mxu0 %v1753
  %2445 = vmatmul.f32.gmra.mxu0 %v2389
  %v2446 = vpop.f32.mrf.mxu0
  %v2447 = vadd.f32 %v2418, %v2446
  %2448 = vmatmul.f32.gmra.mxu0 %v2392
  %v2449 = vpop.f32.mrf.mxu0
  %v2450 = vadd.f32 %v2421, %v2449
  %2451 = vmatmul.f32.gmra.mxu0 %v2395
  %v2452 = vpop.f32.mrf.mxu0
  %v2453 = vadd.f32 %v2424, %v2452
  %2454 = vmatmul.f32.gmra.mxu0 %v2398
  %v2455 = vpop.f32.mrf.mxu0
  %v2456 = vadd.f32 %v2427, %v2455
  %2457 = vdwg.mxu0
  %2458 = vmatpush.msra.mxu0 %v1752
  %2459 = vmatpush.msra.mxu0 %v1750
  %2460 = vmatpush.msra.mxu0 %v1748
  %2461 = vmatpush.msra.mxu0 %v1746
  %2462 = vmatpush.msra.mxu0 %v1744
  %2463 = vmatpush.msra.mxu0 %v1742
  %2464 = vmatpush.msra.mxu0 %v1740
  %2465 = vmatpush.msra.mxu0 %v1738
  %2466 = vmatpush.msra.mxu0 %v1736
  %2467 = vmatpush.msra.mxu0 %v1734
  %2468 = vmatpush.msra.mxu0 %v1732
  %2469 = vmatpush.msra.mxu0 %v1730
  %2470 = vmatpush.msra.mxu0 %v1728
  %2471 = vmatpush.msra.mxu0 %v1726
  %2472 = vmatpush.msra.mxu0 %v1724
  %2473 = vmatpush.msra.mxu0 %v1722
  %2474 = vmatmul.f32.gmra.mxu0 %v2375
  %v2475 = vpop.f32.mrf.mxu0
  %v2476 = vadd.f32 %v2385, %v2475
  %2477 = vmatmul.f32.gmra.mxu0 %v2377
  %v2478 = vpop.f32.mrf.mxu0
  %v2479 = vadd.f32 %v2385, %v2478
  %2480 = vmatmul.f32.gmra.mxu0 %v2379
  %v2481 = vpop.f32.mrf.mxu0
  %v2482 = vadd.f32 %v2385, %v2481
  %2483 = vmatmul.f32.gmra.mxu0 %v2381
  %v2484 = vpop.f32.mrf.mxu0
  %v2485 = vadd.f32 %v2385, %v2484
  %2486 = vdwg.mxu0
  %2487 = vmatpush.msra.mxu0 0.0
  %2488 = vmatpush.msra.mxu0 0.0
  %2489 = vmatpush.msra.mxu0 0.0
  %2490 = vmatpush.msra.mxu0 0.0
  %2491 = vmatpush.msra.mxu0 0.0
  %2492 = vmatpush.msra.mxu0 0.0
  %2493 = vmatpush.msra.mxu0 0.0
  %2494 = vmatpush.msra.mxu0 0.0
  %2495 = vmatpush.msra.mxu0 0.0
  %2496 = vmatpush.msra.mxu0 0.0
  %2497 = vmatpush.msra.mxu0 0.0
  %2498 = vmatpush.msra.mxu0 0.0
  %2499 = vmatpush.msra.mxu0 %v1760
  %2500 = vmatpush.msra.mxu0 %v1758
  %2501 = vmatpush.msra.mxu0 %v1756
  %2502 = vmatpush.msra.mxu0 %v1754
  %2503 = vmatmul.f32.gmra.mxu0 %v2389
  %v2504 = vpop.f32.mrf.mxu0
  %v2505 = vadd.f32 %v2476, %v2504
  %2506 = vmatmul.f32.gmra.mxu0 %v2392
  %v2507 = vpop.f32.mrf.mxu0
  %v2508 = vadd.f32 %v2479, %v2507
  %2509 = vmatmul.f32.gmra.mxu0 %v2395
  %v2510 = vpop.f32.mrf.mxu0
  %v2511 = vadd.f32 %v2482, %v2510
  %2512 = vmatmul.f32.gmra.mxu0 %v2398
  %v2513 = vpop.f32.mrf.mxu0
  %v2514 = vadd.f32 %v2485, %v2513
  %2515 = vdwg.mxu0
  %v2516 = vmax.f32 %v2447, 0.0
  %v2517 = vmax.f32 %v2505, 0.0
  %v2518 = vmax.f32 %v2450, 0.0
  %v2519 = vmax.f32 %v2508, 0.0
  %v2520 = vmax.f32 %v2453, 0.0
  %v2521 = vmax.f32 %v2511, 0.0
  %v2522 = vmax.f32 %v2456, 0.0
  %v2523 = vmax.f32 %v2514, 0.0
  %v2525 = vsel %vm153, %v2517, 0
  %v2528 = vsel %vm153, %v2519, 0
  %v2531 = vsel %vm153, %v2521, 0
  %v2534 = vsel %vm153, %v2523, 0
  %2536 = vmatpush.msra.mxu0 %v1791
  %2537 = vmatpush.msra.mxu0 %v1789
  %2538 = vmatpush.msra.mxu0 %v1787
  %2539 = vmatpush.msra.mxu0 %v1785
  %2540 = vmatpush.msra.mxu0 %v1783
  %2541 = vmatpush.msra.mxu0 %v1781
  %2542 = vmatpush.msra.mxu0 %v1779
  %2543 = vmatpush.msra.mxu0 %v1777
  %2544 = vmatpush.msra.mxu0 %v1775
  %2545 = vmatpush.msra.mxu0 %v1773
  %2546 = vmatpush.msra.mxu0 %v1771
  %2547 = vmatpush.msra.mxu0 %v1769
  %2548 = vmatpush.msra.mxu0 %v1767
  %2549 = vmatpush.msra.mxu0 %v1765
  %2550 = vmatpush.msra.mxu0 %v1763
  %2551 = vmatpush.msra.mxu0 %v1761
  %2552 = vmatmul.f32.gmra.mxu0 %v2516
  %v2553 = vpop.f32.mrf.mxu0
  %v2554 = vadd.f32 0.0, %v2553
  %2555 = vmatmul.f32.gmra.mxu0 %v2518
  %v2556 = vpop.f32.mrf.mxu0
  %v2557 = vadd.f32 0.0, %v2556
  %2558 = vmatmul.f32.gmra.mxu0 %v2520
  %v2559 = vpop.f32.mrf.mxu0
  %v2560 = vadd.f32 0.0, %v2559
  %2561 = vmatmul.f32.gmra.mxu0 %v2522
  %v2562 = vpop.f32.mrf.mxu0
  %v2563 = vadd.f32 0.0, %v2562
  %2564 = vdwg.mxu0
  %2565 = vmatpush.msra.mxu0 0.0
  %2566 = vmatpush.msra.mxu0 0.0
  %2567 = vmatpush.msra.mxu0 0.0
  %2568 = vmatpush.msra.mxu0 0.0
  %2569 = vmatpush.msra.mxu0 0.0
  %2570 = vmatpush.msra.mxu0 0.0
  %2571 = vmatpush.msra.mxu0 0.0
  %2572 = vmatpush.msra.mxu0 0.0
  %2573 = vmatpush.msra.mxu0 0.0
  %2574 = vmatpush.msra.mxu0 0.0
  %2575 = vmatpush.msra.mxu0 0.0
  %2576 = vmatpush.msra.mxu0 0.0
  %2577 = vmatpush.msra.mxu0 %v1799
  %2578 = vmatpush.msra.mxu0 %v1797
  %2579 = vmatpush.msra.mxu0 %v1795
  %2580 = vmatpush.msra.mxu0 %v1793
  %2581 = vmatmul.f32.gmra.mxu0 %v2525
  %v2582 = vpop.f32.mrf.mxu0
  %v2583 = vadd.f32 %v2554, %v2582
  %2584 = vmatmul.f32.gmra.mxu0 %v2528
  %v2585 = vpop.f32.mrf.mxu0
  %v2586 = vadd.f32 %v2557, %v2585
  %2587 = vmatmul.f32.gmra.mxu0 %v2531
  %v2588 = vpop.f32.mrf.mxu0
  %v2589 = vadd.f32 %v2560, %v2588
  %2590 = vmatmul.f32.gmra.mxu0 %v2534
  %v2591 = vpop.f32.mrf.mxu0
  %v2592 = vadd.f32 %v2563, %v2591
  %2593 = vdwg.mxu0
  %2594 = vmatpush.msra.mxu0 %v1792
  %2595 = vmatpush.msra.mxu0 %v1790
  %2596 = vmatpush.msra.mxu0 %v1788
  %2597 = vmatpush.msra.mxu0 %v1786
  %2598 = vmatpush.msra.mxu0 %v1784
  %2599 = vmatpush.msra.mxu0 %v1782
  %2600 = vmatpush.msra.mxu0 %v1780
  %2601 = vmatpush.msra.mxu0 %v1778
  %2602 = vmatpush.msra.mxu0 %v1776
  %2603 = vmatpush.msra.mxu0 %v1774
  %2604 = vmatpush.msra.mxu0 %v1772
  %2605 = vmatpush.msra.mxu0 %v1770
  %2606 = vmatpush.msra.mxu0 %v1768
  %2607 = vmatpush.msra.mxu0 %v1766
  %2608 = vmatpush.msra.mxu0 %v1764
  %2609 = vmatpush.msra.mxu0 %v1762
  %2610 = vmatmul.f32.gmra.mxu0 %v2516
  %v2611 = vpop.f32.mrf.mxu0
  %v2612 = vadd.f32 0.0, %v2611
  %2613 = vmatmul.f32.gmra.mxu0 %v2518
  %v2614 = vpop.f32.mrf.mxu0
  %v2615 = vadd.f32 0.0, %v2614
  %2616 = vmatmul.f32.gmra.mxu0 %v2520
  %v2617 = vpop.f32.mrf.mxu0
  %v2618 = vadd.f32 0.0, %v2617
  %2619 = vmatmul.f32.gmra.mxu0 %v2522
  %v2620 = vpop.f32.mrf.mxu0
  %v2621 = vadd.f32 0.0, %v2620
  %2622 = vdwg.mxu0
  %2623 = vmatpush.msra.mxu0 0.0
  %2624 = vmatpush.msra.mxu0 0.0
  %2625 = vmatpush.msra.mxu0 0.0
  %2626 = vmatpush.msra.mxu0 0.0
  %2627 = vmatpush.msra.mxu0 0.0
  %2628 = vmatpush.msra.mxu0 0.0
  %2629 = vmatpush.msra.mxu0 0.0
  %2630 = vmatpush.msra.mxu0 0.0
  %2631 = vmatpush.msra.mxu0 0.0
  %2632 = vmatpush.msra.mxu0 0.0
  %2633 = vmatpush.msra.mxu0 0.0
  %2634 = vmatpush.msra.mxu0 0.0
  %2635 = vmatpush.msra.mxu0 %v1800
  %2636 = vmatpush.msra.mxu0 %v1798
  %2637 = vmatpush.msra.mxu0 %v1796
  %2638 = vmatpush.msra.mxu0 %v1794
  %2639 = vmatmul.f32.gmra.mxu0 %v2525
  %v2640 = vpop.f32.mrf.mxu0
  %v2641 = vadd.f32 %v2612, %v2640
  %2642 = vmatmul.f32.gmra.mxu0 %v2528
  %v2643 = vpop.f32.mrf.mxu0
  %v2644 = vadd.f32 %v2615, %v2643
  %2645 = vmatmul.f32.gmra.mxu0 %v2531
  %v2646 = vpop.f32.mrf.mxu0
  %v2647 = vadd.f32 %v2618, %v2646
  %2648 = vmatmul.f32.gmra.mxu0 %v2534
  %v2649 = vpop.f32.mrf.mxu0
  %v2650 = vadd.f32 %v2621, %v2649
  %2651 = vdwg.mxu0
  %v2652 = vadd.f32 %v2375, %v2583
  %v2653 = vadd.f32 %v2376, %v2641
  %v2654 = vadd.f32 %v2377, %v2586
  %v2655 = vadd.f32 %v2378, %v2644
  %v2656 = vadd.f32 %v2379, %v2589
  %v2657 = vadd.f32 %v2380, %v2647
  %v2658 = vadd.f32 %v2381, %v2592
  %v2659 = vadd.f32 %v2382, %v2650
  %v2661 = vperm.slane %v1806, 0
  %v2662 = vperm.slane %v1806, 1
  %v2665 = vadd.f32 %v2652, %v2661
  %v2666 = vadd.f32 %v2653, %v2662
  %v2667 = vadd.f32 %v2654, %v2661
  %v2668 = vadd.f32 %v2655, %v2662
  %v2669 = vadd.f32 %v2656, %v2661
  %v2670 = vadd.f32 %v2657, %v2662
  %v2671 = vadd.f32 %v2658, %v2661
  %v2672 = vadd.f32 %v2659, %v2662
  %v2673 = vld [vmem:[%s17] sm:$0xff]
  %v2674 = vld [vmem:[%s18] sm:$0xf]
  %2676 = vset.pattern.permute.xlu0 0
  %2677 = vperm.xlu0 %2676, %v2674
  %v2678 = vpop.permute.xlu0 %2677
  %2681 = vst [vmem:[#allocation1] ss:$2 sm:$0xff] %v2673
  %v2682 = vld.sshfl [vmem:[#allocation1] sm:$0xff pattern:$0x75316420]
  %v2683 = vld.sshfl [vmem:[#allocation1 + $0x8] sm:$0xff pattern:$0x75316420]
  %v2685 = vsel %vm153, %v2683, 0
  %v2688 = vsel %vm153, %v2666, 0
  %v2691 = vsel %vm153, %v2668, 0
  %v2694 = vsel %vm153, %v2670, 0
  %v2697 = vsel %vm153, %v2672, 0
  %2699 = vmatpush.xpose.msra.mxu0 0.0
  %2700 = vmatpush.xpose.msra.mxu0 0.0
  %2701 = vmatpush.xpose.msra.mxu0 0.0
  %2702 = vmatpush.xpose.msra.mxu0 0.0
  %2703 = vmatpush.xpose.msra.mxu0 0.0
  %2704 = vmatpush.xpose.msra.mxu0 0.0
  %2705 = vmatpush.xpose.msra.mxu0 0.0
  %2706 = vmatpush.xpose.msra.mxu0 0.0
  %2707 = vmatpush.xpose.msra.mxu0 0.0
  %2708 = vmatpush.xpose.msra.mxu0 0.0
  %2709 = vmatpush.xpose.msra.mxu0 0.0
  %2710 = vmatpush.xpose.msra.mxu0 0.0
  %2711 = vmatpush.xpose.msra.mxu0 %v2671
  %2712 = vmatpush.xpose.msra.mxu0 %v2669
  %2713 = vmatpush.xpose.msra.mxu0 %v2667
  %2714 = vmatpush.xpose.msra.mxu0 %v2665
  %2715 = vmatmul.f32.gmra.mxu0 %v2682
  %v2716 = vpop.f32.mrf.mxu0
  %v2717 = vadd.f32 %v2678, %v2716
  %2718 = vdwg.mxu0
  %2719 = vmatpush.xpose.msra.mxu0 0.0
  %2720 = vmatpush.xpose.msra.mxu0 0.0
  %2721 = vmatpush.xpose.msra.mxu0 0.0
  %2722 = vmatpush.xpose.msra.mxu0 0.0
  %2723 = vmatpush.xpose.msra.mxu0 0.0
  %2724 = vmatpush.xpose.msra.mxu0 0.0
  %2725 = vmatpush.xpose.msra.mxu0 0.0
  %2726 = vmatpush.xpose.msra.mxu0 0.0
  %2727 = vmatpush.xpose.msra.mxu0 0.0
  %2728 = vmatpush.xpose.msra.mxu0 0.0
  %2729 = vmatpush.xpose.msra.mxu0 0.0
  %2730 = vmatpush.xpose.msra.mxu0 0.0
  %2731 = vmatpush.xpose.msra.mxu0 %v2697
  %2732 = vmatpush.xpose.msra.mxu0 %v2694
  %2733 = vmatpush.xpose.msra.mxu0 %v2691
  %2734 = vmatpush.xpose.msra.mxu0 %v2688
  %2735 = vmatmul.f32.gmra.mxu0 %v2685
  %v2736 = vpop.f32.mrf.mxu0
  %v2737 = vadd.f32 %v2717, %v2736
  %2738 = vdwg.mxu0
  %vm2739 = vcmask 257024
  %2740 = vst.msk [vmem:[%s19] sm:$0xf] %vm2739, %v2737
  // Predicated region
  $region78: #{stgib_forward.1} parent=0 // pred_check
    _
  $region79: #{stgib_forward.1} parent=0 // pred_check_branch
    %2742 = sbr.rel (0) target = $region81
  $region80: #{stgib_forward.1} parent=0 // pred_region
    _
  $region81: #{stgib_forward.1} parent=0 // pred_fallthru
    _
  // Predicated region
  $region82: #{stgib_forward.1} parent=0 // pred_check
    _
  $region83: #{stgib_forward.1} parent=0 // pred_check_branch
    %2744 = sbr.rel (0) target = $region85
  $region84: #{stgib_forward.1} parent=0 // pred_region
    _
  $region85: #{stgib_forward.1} parent=0 // pred_fallthru
    _

</llo_original>
